<compile_context>
chip_gen: v7x
topology: tpu7x:2x2x1
jax: 0.10.0
libtpu: 0.0.40
codegen_flags: <defaults>
</compile_context>

<pallas_src>
import jax
import jax.numpy as jnp
from jax.experimental import pallas as pl
from jax.experimental.pallas import tpu as pltpu


def _pick_bt(batch, max_bt=8):
    """Largest divisor of `batch` (<= max_bt) that still leaves >= 2 grid steps."""
    best = 1
    for cand in range(1, min(batch, max_bt) + 1):
        if batch % cand == 0 and (batch // cand) >= 2:
            best = cand
    return best


def _make_kernel(Bt, Hz, Wz, Wx, L):
    def kernel(x_ref, z_ref, o_ref):
        # x_ref: (Bt, C, S)  search features, flat spatial (i*Wx + w) on lanes
        # z_ref: (Bt, T, C)  template taps as rows (t = p*Wz + q), C on lanes
        # o_ref: (Bt, 1, L)  flat response; valid entries at s = i*Wx + j, j < Wo
        for bt in range(Bt):
            x_b = x_ref[bt, :, :]                              # (C, S)
            acc = jnp.zeros((1, L), dtype=jnp.float32)
            for p in range(Hz):
                z_p = z_ref[bt, p * Wz:(p + 1) * Wz, :]        # (Wz, C)
                # MXU: r_p[q, s] = sum_c z[p, q, c] * x[c, s]
                r_p = jnp.dot(z_p, x_b,
                              preferred_element_type=jnp.float32)  # (Wz, S) f32
                for q in range(Wz):
                    off = p * Wx + q
                    # out_flat[s] += r_p[q, s + off]; shift folded into a
                    # static (in-bounds) lane slice: off + L <= S always.
                    acc = acc + r_p[q:q + 1, off:off + L]
            o_ref[bt, :, :] = (0.1 * acc).astype(o_ref.dtype)
    return kernel


def siamfc_corr(x_f, z_f):
    """Grouped SiamFC cross-correlation head. Returns {'cls': (B, 1, Ho, Wo)}."""
    B, C, Hx, Wx = x_f.shape
    Bz, Cz, Hz, Wz = z_f.shape
    assert B == Bz and C == Cz
    Ho = Hx - Hz + 1
    Wo = Wx - Wz + 1
    S = Hx * Wx                     # flattened search spatial extent
    T = Hz * Wz                     # number of template taps
    L = (Ho - 1) * Wx + Wo          # flat span containing every valid output

    Bt = _pick_bt(B)

    # Layout plumbing (XLA side, cheap): flat spatial on lanes for x,
    # one (tap, channel) row per template position for z.
    x_flat = x_f.reshape(B, C, S)
    z_rows = jnp.transpose(z_f.reshape(B, C, T), (0, 2, 1))

    grid_spec = pltpu.PrefetchScalarGridSpec(
        num_scalar_prefetch=0,
        grid=(B // Bt,),
        in_specs=[
            pl.BlockSpec((Bt, C, S), lambda b: (b, 0, 0)),
            pl.BlockSpec((Bt, T, C), lambda b: (b, 0, 0)),
        ],
        out_specs=pl.BlockSpec((Bt, 1, L), lambda b: (b, 0, 0)),
    )

    out_flat = pl.pallas_call(
        _make_kernel(Bt, Hz, Wz, Wx, L),
        out_shape=jax.ShapeDtypeStruct((B, 1, L), x_f.dtype),
        grid_spec=grid_spec,
        compiler_params=pltpu.CompilerParams(
            dimension_semantics=("parallel",)),
    )(x_flat, z_rows)

    # Un-flatten: valid outputs live at flat index i*Wx + j (j < Wo).
    cls = jnp.pad(out_flat, ((0, 0), (0, 0), (0, Ho * Wx - L)))
    cls = cls.reshape(B, 1, Ho, Wx)[:, :, :, :Wo]
    return {"cls": cls}


def _reference(x_f, z_f):
    # Pure-JAX reference: grouped conv identical to F.conv2d(px, pk, groups=B).
    B, C, Hx, Wx = x_f.shape
    _, _, Hz, Wz = z_f.shape
    px = x_f.reshape(1, B * C, Hx, Wx)
    po = jax.lax.conv_general_dilated(
        px, z_f, window_strides=(1, 1), padding="VALID",
        dimension_numbers=("NCHW", "OIHW", "NCHW"),
        feature_group_count=B)
    return 0.1 * po.reshape(B, 1, Hx - Hz + 1, Wx - Wz + 1)


if __name__ == "__main__":
    key = jax.random.PRNGKey(0)
    kx, kz = jax.random.split(key)

    B, C, Hx, Wx = 4, 64, 16, 16
    Hz, Wz = 8, 8

    x_f = jax.random.normal(kx, (B, C, Hx, Wx), dtype=jnp.float32)
    z_f = jax.random.normal(kz, (B, C, Hz, Wz), dtype=jnp.float32)

    out = siamfc_corr(x_f, z_f)
    cls = jax.block_until_ready(out["cls"])

    ref = _reference(x_f, z_f)
    assert cls.shape == (B, 1, Hx - Hz + 1, Wx - Wz + 1)
    assert jnp.allclose(cls, ref, atol=1e-2, rtol=1e-3), (
        float(jnp.max(jnp.abs(cls - ref))))

    print("KERNEL_OK")
</pallas_src>

<mosaic_0001>
module attributes {stable_mosaic.version = 11 : i64} {
  func.func @kernel(%arg0: i32, %arg1: memref<2x64x256xf32, #tpu.memory_space<vmem>>, %arg2: memref<2x64x64xf32, #tpu.memory_space<vmem>>, %arg3: memref<2x1x137xf32, #tpu.memory_space<vmem>>) attributes {dimension_semantics = [#tpu.dimension_semantics<parallel>], iteration_bounds = array<i64: 2>, scalar_prefetch = 0 : i64, scratch_operands = 0 : i64, tpu.core_type = #tpu.core_type<tc>, window_params = [{transform_indices = @transform_0, window_bounds = array<i64: 2, 64, 256>}, {transform_indices = @transform_1, window_bounds = array<i64: 2, 64, 64>}, {transform_indices = @transform_2, window_bounds = array<i64: 2, 1, 137>}]} {
    %c0 = arith.constant 0 : index
    %c0_0 = arith.constant 0 : index
    %c0_1 = arith.constant 0 : index
    %0 = vector.load %arg1[%c0, %c0_0, %c0_1] : memref<2x64x256xf32, #tpu.memory_space<vmem>>, vector<1x64x256xf32>
    %1 = vector.shape_cast %0 : vector<1x64x256xf32> to vector<64x256xf32>
    %cst = arith.constant 0.000000e+00 : f32
    %2 = vector.broadcast %cst : f32 to vector<1x137xf32>
    %c0_2 = arith.constant 0 : index
    %c0_3 = arith.constant 0 : index
    %c0_4 = arith.constant 0 : index
    %3 = vector.load %arg2[%c0_2, %c0_3, %c0_4] : memref<2x64x64xf32, #tpu.memory_space<vmem>>, vector<1x8x64xf32>
    %4 = vector.shape_cast %3 : vector<1x8x64xf32> to vector<8x64xf32>
    %cst_5 = arith.constant dense<0.000000e+00> : vector<8x256xf32>
    %5 = tpu.matmul %4, %1, %cst_5 {dimension_numbers = #tpu.dot_dimension_numbers<[1], [0], [0], [1], [0, 0, 1, 1], [], []>} : vector<8x64xf32>, vector<64x256xf32>, vector<8x256xf32> -> vector<8x256xf32>
    %6 = vector.extract_strided_slice %5 {offsets = [0, 0], sizes = [1, 137], strides = [1, 1]} : vector<8x256xf32> to vector<1x137xf32>
    %7 = arith.addf %2, %6 : vector<1x137xf32>
    %8 = vector.extract_strided_slice %5 {offsets = [1, 1], sizes = [1, 137], strides = [1, 1]} : vector<8x256xf32> to vector<1x137xf32>
    %9 = arith.addf %7, %8 : vector<1x137xf32>
    %10 = vector.extract_strided_slice %5 {offsets = [2, 2], sizes = [1, 137], strides = [1, 1]} : vector<8x256xf32> to vector<1x137xf32>
    %11 = arith.addf %9, %10 : vector<1x137xf32>
    %12 = vector.extract_strided_slice %5 {offsets = [3, 3], sizes = [1, 137], strides = [1, 1]} : vector<8x256xf32> to vector<1x137xf32>
    %13 = arith.addf %11, %12 : vector<1x137xf32>
    %14 = vector.extract_strided_slice %5 {offsets = [4, 4], sizes = [1, 137], strides = [1, 1]} : vector<8x256xf32> to vector<1x137xf32>
    %15 = arith.addf %13, %14 : vector<1x137xf32>
    %16 = vector.extract_strided_slice %5 {offsets = [5, 5], sizes = [1, 137], strides = [1, 1]} : vector<8x256xf32> to vector<1x137xf32>
    %17 = arith.addf %15, %16 : vector<1x137xf32>
    %18 = vector.extract_strided_slice %5 {offsets = [6, 6], sizes = [1, 137], strides = [1, 1]} : vector<8x256xf32> to vector<1x137xf32>
    %19 = arith.addf %17, %18 : vector<1x137xf32>
    %20 = vector.extract_strided_slice %5 {offsets = [7, 7], sizes = [1, 137], strides = [1, 1]} : vector<8x256xf32> to vector<1x137xf32>
    %21 = arith.addf %19, %20 : vector<1x137xf32>
    %c0_6 = arith.constant 0 : index
    %c8 = arith.constant 8 : index
    %c0_7 = arith.constant 0 : index
    %22 = vector.load %arg2[%c0_6, %c8, %c0_7] : memref<2x64x64xf32, #tpu.memory_space<vmem>>, vector<1x8x64xf32>
    %23 = vector.shape_cast %22 : vector<1x8x64xf32> to vector<8x64xf32>
    %cst_8 = arith.constant dense<0.000000e+00> : vector<8x256xf32>
    %24 = tpu.matmul %23, %1, %cst_8 {dimension_numbers = #tpu.dot_dimension_numbers<[1], [0], [0], [1], [0, 0, 1, 1], [], []>} : vector<8x64xf32>, vector<64x256xf32>, vector<8x256xf32> -> vector<8x256xf32>
    %25 = vector.extract_strided_slice %24 {offsets = [0, 16], sizes = [1, 137], strides = [1, 1]} : vector<8x256xf32> to vector<1x137xf32>
    %26 = arith.addf %21, %25 : vector<1x137xf32>
    %27 = vector.extract_strided_slice %24 {offsets = [1, 17], sizes = [1, 137], strides = [1, 1]} : vector<8x256xf32> to vector<1x137xf32>
    %28 = arith.addf %26, %27 : vector<1x137xf32>
    %29 = vector.extract_strided_slice %24 {offsets = [2, 18], sizes = [1, 137], strides = [1, 1]} : vector<8x256xf32> to vector<1x137xf32>
    %30 = arith.addf %28, %29 : vector<1x137xf32>
    %31 = vector.extract_strided_slice %24 {offsets = [3, 19], sizes = [1, 137], strides = [1, 1]} : vector<8x256xf32> to vector<1x137xf32>
    %32 = arith.addf %30, %31 : vector<1x137xf32>
    %33 = vector.extract_strided_slice %24 {offsets = [4, 20], sizes = [1, 137], strides = [1, 1]} : vector<8x256xf32> to vector<1x137xf32>
    %34 = arith.addf %32, %33 : vector<1x137xf32>
    %35 = vector.extract_strided_slice %24 {offsets = [5, 21], sizes = [1, 137], strides = [1, 1]} : vector<8x256xf32> to vector<1x137xf32>
    %36 = arith.addf %34, %35 : vector<1x137xf32>
    %37 = vector.extract_strided_slice %24 {offsets = [6, 22], sizes = [1, 137], strides = [1, 1]} : vector<8x256xf32> to vector<1x137xf32>
    %38 = arith.addf %36, %37 : vector<1x137xf32>
    %39 = vector.extract_strided_slice %24 {offsets = [7, 23], sizes = [1, 137], strides = [1, 1]} : vector<8x256xf32> to vector<1x137xf32>
    %40 = arith.addf %38, %39 : vector<1x137xf32>
    %c0_9 = arith.constant 0 : index
    %c16 = arith.constant 16 : index
    %c0_10 = arith.constant 0 : index
    %41 = vector.load %arg2[%c0_9, %c16, %c0_10] : memref<2x64x64xf32, #tpu.memory_space<vmem>>, vector<1x8x64xf32>
    %42 = vector.shape_cast %41 : vector<1x8x64xf32> to vector<8x64xf32>
    %cst_11 = arith.constant dense<0.000000e+00> : vector<8x256xf32>
    %43 = tpu.matmul %42, %1, %cst_11 {dimension_numbers = #tpu.dot_dimension_numbers<[1], [0], [0], [1], [0, 0, 1, 1], [], []>} : vector<8x64xf32>, vector<64x256xf32>, vector<8x256xf32> -> vector<8x256xf32>
    %44 = vector.extract_strided_slice %43 {offsets = [0, 32], sizes = [1, 137], strides = [1, 1]} : vector<8x256xf32> to vector<1x137xf32>
    %45 = arith.addf %40, %44 : vector<1x137xf32>
    %46 = vector.extract_strided_slice %43 {offsets = [1, 33], sizes = [1, 137], strides = [1, 1]} : vector<8x256xf32> to vector<1x137xf32>
    %47 = arith.addf %45, %46 : vector<1x137xf32>
    %48 = vector.extract_strided_slice %43 {offsets = [2, 34], sizes = [1, 137], strides = [1, 1]} : vector<8x256xf32> to vector<1x137xf32>
    %49 = arith.addf %47, %48 : vector<1x137xf32>
    %50 = vector.extract_strided_slice %43 {offsets = [3, 35], sizes = [1, 137], strides = [1, 1]} : vector<8x256xf32> to vector<1x137xf32>
    %51 = arith.addf %49, %50 : vector<1x137xf32>
    %52 = vector.extract_strided_slice %43 {offsets = [4, 36], sizes = [1, 137], strides = [1, 1]} : vector<8x256xf32> to vector<1x137xf32>
    %53 = arith.addf %51, %52 : vector<1x137xf32>
    %54 = vector.extract_strided_slice %43 {offsets = [5, 37], sizes = [1, 137], strides = [1, 1]} : vector<8x256xf32> to vector<1x137xf32>
    %55 = arith.addf %53, %54 : vector<1x137xf32>
    %56 = vector.extract_strided_slice %43 {offsets = [6, 38], sizes = [1, 137], strides = [1, 1]} : vector<8x256xf32> to vector<1x137xf32>
    %57 = arith.addf %55, %56 : vector<1x137xf32>
    %58 = vector.extract_strided_slice %43 {offsets = [7, 39], sizes = [1, 137], strides = [1, 1]} : vector<8x256xf32> to vector<1x137xf32>
    %59 = arith.addf %57, %58 : vector<1x137xf32>
    %c0_12 = arith.constant 0 : index
    %c24 = arith.constant 24 : index
    %c0_13 = arith.constant 0 : index
    %60 = vector.load %arg2[%c0_12, %c24, %c0_13] : memref<2x64x64xf32, #tpu.memory_space<vmem>>, vector<1x8x64xf32>
    %61 = vector.shape_cast %60 : vector<1x8x64xf32> to vector<8x64xf32>
    %cst_14 = arith.constant dense<0.000000e+00> : vector<8x256xf32>
    %62 = tpu.matmul %61, %1, %cst_14 {dimension_numbers = #tpu.dot_dimension_numbers<[1], [0], [0], [1], [0, 0, 1, 1], [], []>} : vector<8x64xf32>, vector<64x256xf32>, vector<8x256xf32> -> vector<8x256xf32>
    %63 = vector.extract_strided_slice %62 {offsets = [0, 48], sizes = [1, 137], strides = [1, 1]} : vector<8x256xf32> to vector<1x137xf32>
    %64 = arith.addf %59, %63 : vector<1x137xf32>
    %65 = vector.extract_strided_slice %62 {offsets = [1, 49], sizes = [1, 137], strides = [1, 1]} : vector<8x256xf32> to vector<1x137xf32>
    %66 = arith.addf %64, %65 : vector<1x137xf32>
    %67 = vector.extract_strided_slice %62 {offsets = [2, 50], sizes = [1, 137], strides = [1, 1]} : vector<8x256xf32> to vector<1x137xf32>
    %68 = arith.addf %66, %67 : vector<1x137xf32>
    %69 = vector.extract_strided_slice %62 {offsets = [3, 51], sizes = [1, 137], strides = [1, 1]} : vector<8x256xf32> to vector<1x137xf32>
    %70 = arith.addf %68, %69 : vector<1x137xf32>
    %71 = vector.extract_strided_slice %62 {offsets = [4, 52], sizes = [1, 137], strides = [1, 1]} : vector<8x256xf32> to vector<1x137xf32>
    %72 = arith.addf %70, %71 : vector<1x137xf32>
    %73 = vector.extract_strided_slice %62 {offsets = [5, 53], sizes = [1, 137], strides = [1, 1]} : vector<8x256xf32> to vector<1x137xf32>
    %74 = arith.addf %72, %73 : vector<1x137xf32>
    %75 = vector.extract_strided_slice %62 {offsets = [6, 54], sizes = [1, 137], strides = [1, 1]} : vector<8x256xf32> to vector<1x137xf32>
    %76 = arith.addf %74, %75 : vector<1x137xf32>
    %77 = vector.extract_strided_slice %62 {offsets = [7, 55], sizes = [1, 137], strides = [1, 1]} : vector<8x256xf32> to vector<1x137xf32>
    %78 = arith.addf %76, %77 : vector<1x137xf32>
    %c0_15 = arith.constant 0 : index
    %c32 = arith.constant 32 : index
    %c0_16 = arith.constant 0 : index
    %79 = vector.load %arg2[%c0_15, %c32, %c0_16] : memref<2x64x64xf32, #tpu.memory_space<vmem>>, vector<1x8x64xf32>
    %80 = vector.shape_cast %79 : vector<1x8x64xf32> to vector<8x64xf32>
    %cst_17 = arith.constant dense<0.000000e+00> : vector<8x256xf32>
    %81 = tpu.matmul %80, %1, %cst_17 {dimension_numbers = #tpu.dot_dimension_numbers<[1], [0], [0], [1], [0, 0, 1, 1], [], []>} : vector<8x64xf32>, vector<64x256xf32>, vector<8x256xf32> -> vector<8x256xf32>
    %82 = vector.extract_strided_slice %81 {offsets = [0, 64], sizes = [1, 137], strides = [1, 1]} : vector<8x256xf32> to vector<1x137xf32>
    %83 = arith.addf %78, %82 : vector<1x137xf32>
    %84 = vector.extract_strided_slice %81 {offsets = [1, 65], sizes = [1, 137], strides = [1, 1]} : vector<8x256xf32> to vector<1x137xf32>
    %85 = arith.addf %83, %84 : vector<1x137xf32>
    %86 = vector.extract_strided_slice %81 {offsets = [2, 66], sizes = [1, 137], strides = [1, 1]} : vector<8x256xf32> to vector<1x137xf32>
    %87 = arith.addf %85, %86 : vector<1x137xf32>
    %88 = vector.extract_strided_slice %81 {offsets = [3, 67], sizes = [1, 137], strides = [1, 1]} : vector<8x256xf32> to vector<1x137xf32>
    %89 = arith.addf %87, %88 : vector<1x137xf32>
    %90 = vector.extract_strided_slice %81 {offsets = [4, 68], sizes = [1, 137], strides = [1, 1]} : vector<8x256xf32> to vector<1x137xf32>
    %91 = arith.addf %89, %90 : vector<1x137xf32>
    %92 = vector.extract_strided_slice %81 {offsets = [5, 69], sizes = [1, 137], strides = [1, 1]} : vector<8x256xf32> to vector<1x137xf32>
    %93 = arith.addf %91, %92 : vector<1x137xf32>
    %94 = vector.extract_strided_slice %81 {offsets = [6, 70], sizes = [1, 137], strides = [1, 1]} : vector<8x256xf32> to vector<1x137xf32>
    %95 = arith.addf %93, %94 : vector<1x137xf32>
    %96 = vector.extract_strided_slice %81 {offsets = [7, 71], sizes = [1, 137], strides = [1, 1]} : vector<8x256xf32> to vector<1x137xf32>
    %97 = arith.addf %95, %96 : vector<1x137xf32>
    %c0_18 = arith.constant 0 : index
    %c40 = arith.constant 40 : index
    %c0_19 = arith.constant 0 : index
    %98 = vector.load %arg2[%c0_18, %c40, %c0_19] : memref<2x64x64xf32, #tpu.memory_space<vmem>>, vector<1x8x64xf32>
    %99 = vector.shape_cast %98 : vector<1x8x64xf32> to vector<8x64xf32>
    %cst_20 = arith.constant dense<0.000000e+00> : vector<8x256xf32>
    %100 = tpu.matmul %99, %1, %cst_20 {dimension_numbers = #tpu.dot_dimension_numbers<[1], [0], [0], [1], [0, 0, 1, 1], [], []>} : vector<8x64xf32>, vector<64x256xf32>, vector<8x256xf32> -> vector<8x256xf32>
    %101 = vector.extract_strided_slice %100 {offsets = [0, 80], sizes = [1, 137], strides = [1, 1]} : vector<8x256xf32> to vector<1x137xf32>
    %102 = arith.addf %97, %101 : vector<1x137xf32>
    %103 = vector.extract_strided_slice %100 {offsets = [1, 81], sizes = [1, 137], strides = [1, 1]} : vector<8x256xf32> to vector<1x137xf32>
    %104 = arith.addf %102, %103 : vector<1x137xf32>
    %105 = vector.extract_strided_slice %100 {offsets = [2, 82], sizes = [1, 137], strides = [1, 1]} : vector<8x256xf32> to vector<1x137xf32>
    %106 = arith.addf %104, %105 : vector<1x137xf32>
    %107 = vector.extract_strided_slice %100 {offsets = [3, 83], sizes = [1, 137], strides = [1, 1]} : vector<8x256xf32> to vector<1x137xf32>
    %108 = arith.addf %106, %107 : vector<1x137xf32>
    %109 = vector.extract_strided_slice %100 {offsets = [4, 84], sizes = [1, 137], strides = [1, 1]} : vector<8x256xf32> to vector<1x137xf32>
    %110 = arith.addf %108, %109 : vector<1x137xf32>
    %111 = vector.extract_strided_slice %100 {offsets = [5, 85], sizes = [1, 137], strides = [1, 1]} : vector<8x256xf32> to vector<1x137xf32>
    %112 = arith.addf %110, %111 : vector<1x137xf32>
    %113 = vector.extract_strided_slice %100 {offsets = [6, 86], sizes = [1, 137], strides = [1, 1]} : vector<8x256xf32> to vector<1x137xf32>
    %114 = arith.addf %112, %113 : vector<1x137xf32>
    %115 = vector.extract_strided_slice %100 {offsets = [7, 87], sizes = [1, 137], strides = [1, 1]} : vector<8x256xf32> to vector<1x137xf32>
    %116 = arith.addf %114, %115 : vector<1x137xf32>
    %c0_21 = arith.constant 0 : index
    %c48 = arith.constant 48 : index
    %c0_22 = arith.constant 0 : index
    %117 = vector.load %arg2[%c0_21, %c48, %c0_22] : memref<2x64x64xf32, #tpu.memory_space<vmem>>, vector<1x8x64xf32>
    %118 = vector.shape_cast %117 : vector<1x8x64xf32> to vector<8x64xf32>
    %cst_23 = arith.constant dense<0.000000e+00> : vector<8x256xf32>
    %119 = tpu.matmul %118, %1, %cst_23 {dimension_numbers = #tpu.dot_dimension_numbers<[1], [0], [0], [1], [0, 0, 1, 1], [], []>} : vector<8x64xf32>, vector<64x256xf32>, vector<8x256xf32> -> vector<8x256xf32>
    %120 = vector.extract_strided_slice %119 {offsets = [0, 96], sizes = [1, 137], strides = [1, 1]} : vector<8x256xf32> to vector<1x137xf32>
    %121 = arith.addf %116, %120 : vector<1x137xf32>
    %122 = vector.extract_strided_slice %119 {offsets = [1, 97], sizes = [1, 137], strides = [1, 1]} : vector<8x256xf32> to vector<1x137xf32>
    %123 = arith.addf %121, %122 : vector<1x137xf32>
    %124 = vector.extract_strided_slice %119 {offsets = [2, 98], sizes = [1, 137], strides = [1, 1]} : vector<8x256xf32> to vector<1x137xf32>
    %125 = arith.addf %123, %124 : vector<1x137xf32>
    %126 = vector.extract_strided_slice %119 {offsets = [3, 99], sizes = [1, 137], strides = [1, 1]} : vector<8x256xf32> to vector<1x137xf32>
    %127 = arith.addf %125, %126 : vector<1x137xf32>
    %128 = vector.extract_strided_slice %119 {offsets = [4, 100], sizes = [1, 137], strides = [1, 1]} : vector<8x256xf32> to vector<1x137xf32>
    %129 = arith.addf %127, %128 : vector<1x137xf32>
    %130 = vector.extract_strided_slice %119 {offsets = [5, 101], sizes = [1, 137], strides = [1, 1]} : vector<8x256xf32> to vector<1x137xf32>
    %131 = arith.addf %129, %130 : vector<1x137xf32>
    %132 = vector.extract_strided_slice %119 {offsets = [6, 102], sizes = [1, 137], strides = [1, 1]} : vector<8x256xf32> to vector<1x137xf32>
    %133 = arith.addf %131, %132 : vector<1x137xf32>
    %134 = vector.extract_strided_slice %119 {offsets = [7, 103], sizes = [1, 137], strides = [1, 1]} : vector<8x256xf32> to vector<1x137xf32>
    %135 = arith.addf %133, %134 : vector<1x137xf32>
    %c0_24 = arith.constant 0 : index
    %c56 = arith.constant 56 : index
    %c0_25 = arith.constant 0 : index
    %136 = vector.load %arg2[%c0_24, %c56, %c0_25] : memref<2x64x64xf32, #tpu.memory_space<vmem>>, vector<1x8x64xf32>
    %137 = vector.shape_cast %136 : vector<1x8x64xf32> to vector<8x64xf32>
    %cst_26 = arith.constant dense<0.000000e+00> : vector<8x256xf32>
    %138 = tpu.matmul %137, %1, %cst_26 {dimension_numbers = #tpu.dot_dimension_numbers<[1], [0], [0], [1], [0, 0, 1, 1], [], []>} : vector<8x64xf32>, vector<64x256xf32>, vector<8x256xf32> -> vector<8x256xf32>
    %139 = vector.extract_strided_slice %138 {offsets = [0, 112], sizes = [1, 137], strides = [1, 1]} : vector<8x256xf32> to vector<1x137xf32>
    %140 = arith.addf %135, %139 : vector<1x137xf32>
    %141 = vector.extract_strided_slice %138 {offsets = [1, 113], sizes = [1, 137], strides = [1, 1]} : vector<8x256xf32> to vector<1x137xf32>
    %142 = arith.addf %140, %141 : vector<1x137xf32>
    %143 = vector.extract_strided_slice %138 {offsets = [2, 114], sizes = [1, 137], strides = [1, 1]} : vector<8x256xf32> to vector<1x137xf32>
    %144 = arith.addf %142, %143 : vector<1x137xf32>
    %145 = vector.extract_strided_slice %138 {offsets = [3, 115], sizes = [1, 137], strides = [1, 1]} : vector<8x256xf32> to vector<1x137xf32>
    %146 = arith.addf %144, %145 : vector<1x137xf32>
    %147 = vector.extract_strided_slice %138 {offsets = [4, 116], sizes = [1, 137], strides = [1, 1]} : vector<8x256xf32> to vector<1x137xf32>
    %148 = arith.addf %146, %147 : vector<1x137xf32>
    %149 = vector.extract_strided_slice %138 {offsets = [5, 117], sizes = [1, 137], strides = [1, 1]} : vector<8x256xf32> to vector<1x137xf32>
    %150 = arith.addf %148, %149 : vector<1x137xf32>
    %151 = vector.extract_strided_slice %138 {offsets = [6, 118], sizes = [1, 137], strides = [1, 1]} : vector<8x256xf32> to vector<1x137xf32>
    %152 = arith.addf %150, %151 : vector<1x137xf32>
    %153 = vector.extract_strided_slice %138 {offsets = [7, 119], sizes = [1, 137], strides = [1, 1]} : vector<8x256xf32> to vector<1x137xf32>
    %154 = arith.addf %152, %153 : vector<1x137xf32>
    %cst_27 = arith.constant 1.000000e-01 : f32
    %155 = vector.broadcast %cst_27 : f32 to vector<1x137xf32>
    %156 = arith.mulf %155, %154 : vector<1x137xf32>
    %c0_28 = arith.constant 0 : index
    %c0_29 = arith.constant 0 : index
    %c0_30 = arith.constant 0 : index
    %157 = vector.load %arg3[%c0_28, %c0_29, %c0_30] : memref<2x1x137xf32, #tpu.memory_space<vmem>>, vector<1x1x137xf32>
    %158 = vector.shape_cast %157 : vector<1x1x137xf32> to vector<1x137xf32>
    %159 = vector.shape_cast %156 : vector<1x137xf32> to vector<1x1x137xf32>
    tpu.vector_store %arg3[%c0_28, %c0_29, %c0_30], %159 {strides = array<i32>} : memref<2x1x137xf32, #tpu.memory_space<vmem>>, vector<1x1x137xf32>,
    %c1 = arith.constant 1 : index
    %c0_31 = arith.constant 0 : index
    %c0_32 = arith.constant 0 : index
    %160 = vector.load %arg1[%c1, %c0_31, %c0_32] : memref<2x64x256xf32, #tpu.memory_space<vmem>>, vector<1x64x256xf32>
    %161 = vector.shape_cast %160 : vector<1x64x256xf32> to vector<64x256xf32>
    %cst_33 = arith.constant 0.000000e+00 : f32
    %162 = vector.broadcast %cst_33 : f32 to vector<1x137xf32>
    %c1_34 = arith.constant 1 : index
    %c0_35 = arith.constant 0 : index
    %c0_36 = arith.constant 0 : index
    %163 = vector.load %arg2[%c1_34, %c0_35, %c0_36] : memref<2x64x64xf32, #tpu.memory_space<vmem>>, vector<1x8x64xf32>
    %164 = vector.shape_cast %163 : vector<1x8x64xf32> to vector<8x64xf32>
    %cst_37 = arith.constant dense<0.000000e+00> : vector<8x256xf32>
    %165 = tpu.matmul %164, %161, %cst_37 {dimension_numbers = #tpu.dot_dimension_numbers<[1], [0], [0], [1], [0, 0, 1, 1], [], []>} : vector<8x64xf32>, vector<64x256xf32>, vector<8x256xf32> -> vector<8x256xf32>
    %166 = vector.extract_strided_slice %165 {offsets = [0, 0], sizes = [1, 137], strides = [1, 1]} : vector<8x256xf32> to vector<1x137xf32>
    %167 = arith.addf %162, %166 : vector<1x137xf32>
    %168 = vector.extract_strided_slice %165 {offsets = [1, 1], sizes = [1, 137], strides = [1, 1]} : vector<8x256xf32> to vector<1x137xf32>
    %169 = arith.addf %167, %168 : vector<1x137xf32>
    %170 = vector.extract_strided_slice %165 {offsets = [2, 2], sizes = [1, 137], strides = [1, 1]} : vector<8x256xf32> to vector<1x137xf32>
    %171 = arith.addf %169, %170 : vector<1x137xf32>
    %172 = vector.extract_strided_slice %165 {offsets = [3, 3], sizes = [1, 137], strides = [1, 1]} : vector<8x256xf32> to vector<1x137xf32>
    %173 = arith.addf %171, %172 : vector<1x137xf32>
    %174 = vector.extract_strided_slice %165 {offsets = [4, 4], sizes = [1, 137], strides = [1, 1]} : vector<8x256xf32> to vector<1x137xf32>
    %175 = arith.addf %173, %174 : vector<1x137xf32>
    %176 = vector.extract_strided_slice %165 {offsets = [5, 5], sizes = [1, 137], strides = [1, 1]} : vector<8x256xf32> to vector<1x137xf32>
    %177 = arith.addf %175, %176 : vector<1x137xf32>
    %178 = vector.extract_strided_slice %165 {offsets = [6, 6], sizes = [1, 137], strides = [1, 1]} : vector<8x256xf32> to vector<1x137xf32>
    %179 = arith.addf %177, %178 : vector<1x137xf32>
    %180 = vector.extract_strided_slice %165 {offsets = [7, 7], sizes = [1, 137], strides = [1, 1]} : vector<8x256xf32> to vector<1x137xf32>
    %181 = arith.addf %179, %180 : vector<1x137xf32>
    %c1_38 = arith.constant 1 : index
    %c8_39 = arith.constant 8 : index
    %c0_40 = arith.constant 0 : index
    %182 = vector.load %arg2[%c1_38, %c8_39, %c0_40] : memref<2x64x64xf32, #tpu.memory_space<vmem>>, vector<1x8x64xf32>
    %183 = vector.shape_cast %182 : vector<1x8x64xf32> to vector<8x64xf32>
    %cst_41 = arith.constant dense<0.000000e+00> : vector<8x256xf32>
    %184 = tpu.matmul %183, %161, %cst_41 {dimension_numbers = #tpu.dot_dimension_numbers<[1], [0], [0], [1], [0, 0, 1, 1], [], []>} : vector<8x64xf32>, vector<64x256xf32>, vector<8x256xf32> -> vector<8x256xf32>
    %185 = vector.extract_strided_slice %184 {offsets = [0, 16], sizes = [1, 137], strides = [1, 1]} : vector<8x256xf32> to vector<1x137xf32>
    %186 = arith.addf %181, %185 : vector<1x137xf32>
    %187 = vector.extract_strided_slice %184 {offsets = [1, 17], sizes = [1, 137], strides = [1, 1]} : vector<8x256xf32> to vector<1x137xf32>
    %188 = arith.addf %186, %187 : vector<1x137xf32>
    %189 = vector.extract_strided_slice %184 {offsets = [2, 18], sizes = [1, 137], strides = [1, 1]} : vector<8x256xf32> to vector<1x137xf32>
    %190 = arith.addf %188, %189 : vector<1x137xf32>
    %191 = vector.extract_strided_slice %184 {offsets = [3, 19], sizes = [1, 137], strides = [1, 1]} : vector<8x256xf32> to vector<1x137xf32>
    %192 = arith.addf %190, %191 : vector<1x137xf32>
    %193 = vector.extract_strided_slice %184 {offsets = [4, 20], sizes = [1, 137], strides = [1, 1]} : vector<8x256xf32> to vector<1x137xf32>
    %194 = arith.addf %192, %193 : vector<1x137xf32>
    %195 = vector.extract_strided_slice %184 {offsets = [5, 21], sizes = [1, 137], strides = [1, 1]} : vector<8x256xf32> to vector<1x137xf32>
    %196 = arith.addf %194, %195 : vector<1x137xf32>
    %197 = vector.extract_strided_slice %184 {offsets = [6, 22], sizes = [1, 137], strides = [1, 1]} : vector<8x256xf32> to vector<1x137xf32>
    %198 = arith.addf %196, %197 : vector<1x137xf32>
    %199 = vector.extract_strided_slice %184 {offsets = [7, 23], sizes = [1, 137], strides = [1, 1]} : vector<8x256xf32> to vector<1x137xf32>
    %200 = arith.addf %198, %199 : vector<1x137xf32>
    %c1_42 = arith.constant 1 : index
    %c16_43 = arith.constant 16 : index
    %c0_44 = arith.constant 0 : index
    %201 = vector.load %arg2[%c1_42, %c16_43, %c0_44] : memref<2x64x64xf32, #tpu.memory_space<vmem>>, vector<1x8x64xf32>
    %202 = vector.shape_cast %201 : vector<1x8x64xf32> to vector<8x64xf32>
    %cst_45 = arith.constant dense<0.000000e+00> : vector<8x256xf32>
    %203 = tpu.matmul %202, %161, %cst_45 {dimension_numbers = #tpu.dot_dimension_numbers<[1], [0], [0], [1], [0, 0, 1, 1], [], []>} : vector<8x64xf32>, vector<64x256xf32>, vector<8x256xf32> -> vector<8x256xf32>
    %204 = vector.extract_strided_slice %203 {offsets = [0, 32], sizes = [1, 137], strides = [1, 1]} : vector<8x256xf32> to vector<1x137xf32>
    %205 = arith.addf %200, %204 : vector<1x137xf32>
    %206 = vector.extract_strided_slice %203 {offsets = [1, 33], sizes = [1, 137], strides = [1, 1]} : vector<8x256xf32> to vector<1x137xf32>
    %207 = arith.addf %205, %206 : vector<1x137xf32>
    %208 = vector.extract_strided_slice %203 {offsets = [2, 34], sizes = [1, 137], strides = [1, 1]} : vector<8x256xf32> to vector<1x137xf32>
    %209 = arith.addf %207, %208 : vector<1x137xf32>
    %210 = vector.extract_strided_slice %203 {offsets = [3, 35], sizes = [1, 137], strides = [1, 1]} : vector<8x256xf32> to vector<1x137xf32>
    %211 = arith.addf %209, %210 : vector<1x137xf32>
    %212 = vector.extract_strided_slice %203 {offsets = [4, 36], sizes = [1, 137], strides = [1, 1]} : vector<8x256xf32> to vector<1x137xf32>
    %213 = arith.addf %211, %212 : vector<1x137xf32>
    %214 = vector.extract_strided_slice %203 {offsets = [5, 37], sizes = [1, 137], strides = [1, 1]} : vector<8x256xf32> to vector<1x137xf32>
    %215 = arith.addf %213, %214 : vector<1x137xf32>
    %216 = vector.extract_strided_slice %203 {offsets = [6, 38], sizes = [1, 137], strides = [1, 1]} : vector<8x256xf32> to vector<1x137xf32>
    %217 = arith.addf %215, %216 : vector<1x137xf32>
    %218 = vector.extract_strided_slice %203 {offsets = [7, 39], sizes = [1, 137], strides = [1, 1]} : vector<8x256xf32> to vector<1x137xf32>
    %219 = arith.addf %217, %218 : vector<1x137xf32>
    %c1_46 = arith.constant 1 : index
    %c24_47 = arith.constant 24 : index
    %c0_48 = arith.constant 0 : index
    %220 = vector.load %arg2[%c1_46, %c24_47, %c0_48] : memref<2x64x64xf32, #tpu.memory_space<vmem>>, vector<1x8x64xf32>
    %221 = vector.shape_cast %220 : vector<1x8x64xf32> to vector<8x64xf32>
    %cst_49 = arith.constant dense<0.000000e+00> : vector<8x256xf32>
    %222 = tpu.matmul %221, %161, %cst_49 {dimension_numbers = #tpu.dot_dimension_numbers<[1], [0], [0], [1], [0, 0, 1, 1], [], []>} : vector<8x64xf32>, vector<64x256xf32>, vector<8x256xf32> -> vector<8x256xf32>
    %223 = vector.extract_strided_slice %222 {offsets = [0, 48], sizes = [1, 137], strides = [1, 1]} : vector<8x256xf32> to vector<1x137xf32>
    %224 = arith.addf %219, %223 : vector<1x137xf32>
    %225 = vector.extract_strided_slice %222 {offsets = [1, 49], sizes = [1, 137], strides = [1, 1]} : vector<8x256xf32> to vector<1x137xf32>
    %226 = arith.addf %224, %225 : vector<1x137xf32>
    %227 = vector.extract_strided_slice %222 {offsets = [2, 50], sizes = [1, 137], strides = [1, 1]} : vector<8x256xf32> to vector<1x137xf32>
    %228 = arith.addf %226, %227 : vector<1x137xf32>
    %229 = vector.extract_strided_slice %222 {offsets = [3, 51], sizes = [1, 137], strides = [1, 1]} : vector<8x256xf32> to vector<1x137xf32>
    %230 = arith.addf %228, %229 : vector<1x137xf32>
    %231 = vector.extract_strided_slice %222 {offsets = [4, 52], sizes = [1, 137], strides = [1, 1]} : vector<8x256xf32> to vector<1x137xf32>
    %232 = arith.addf %230, %231 : vector<1x137xf32>
    %233 = vector.extract_strided_slice %222 {offsets = [5, 53], sizes = [1, 137], strides = [1, 1]} : vector<8x256xf32> to vector<1x137xf32>
    %234 = arith.addf %232, %233 : vector<1x137xf32>
    %235 = vector.extract_strided_slice %222 {offsets = [6, 54], sizes = [1, 137], strides = [1, 1]} : vector<8x256xf32> to vector<1x137xf32>
    %236 = arith.addf %234, %235 : vector<1x137xf32>
    %237 = vector.extract_strided_slice %222 {offsets = [7, 55], sizes = [1, 137], strides = [1, 1]} : vector<8x256xf32> to vector<1x137xf32>
    %238 = arith.addf %236, %237 : vector<1x137xf32>
    %c1_50 = arith.constant 1 : index
    %c32_51 = arith.constant 32 : index
    %c0_52 = arith.constant 0 : index
    %239 = vector.load %arg2[%c1_50, %c32_51, %c0_52] : memref<2x64x64xf32, #tpu.memory_space<vmem>>, vector<1x8x64xf32>
    %240 = vector.shape_cast %239 : vector<1x8x64xf32> to vector<8x64xf32>
    %cst_53 = arith.constant dense<0.000000e+00> : vector<8x256xf32>
    %241 = tpu.matmul %240, %161, %cst_53 {dimension_numbers = #tpu.dot_dimension_numbers<[1], [0], [0], [1], [0, 0, 1, 1], [], []>} : vector<8x64xf32>, vector<64x256xf32>, vector<8x256xf32> -> vector<8x256xf32>
    %242 = vector.extract_strided_slice %241 {offsets = [0, 64], sizes = [1, 137], strides = [1, 1]} : vector<8x256xf32> to vector<1x137xf32>
    %243 = arith.addf %238, %242 : vector<1x137xf32>
    %244 = vector.extract_strided_slice %241 {offsets = [1, 65], sizes = [1, 137], strides = [1, 1]} : vector<8x256xf32> to vector<1x137xf32>
    %245 = arith.addf %243, %244 : vector<1x137xf32>
    %246 = vector.extract_strided_slice %241 {offsets = [2, 66], sizes = [1, 137], strides = [1, 1]} : vector<8x256xf32> to vector<1x137xf32>
    %247 = arith.addf %245, %246 : vector<1x137xf32>
    %248 = vector.extract_strided_slice %241 {offsets = [3, 67], sizes = [1, 137], strides = [1, 1]} : vector<8x256xf32> to vector<1x137xf32>
    %249 = arith.addf %247, %248 : vector<1x137xf32>
    %250 = vector.extract_strided_slice %241 {offsets = [4, 68], sizes = [1, 137], strides = [1, 1]} : vector<8x256xf32> to vector<1x137xf32>
    %251 = arith.addf %249, %250 : vector<1x137xf32>
    %252 = vector.extract_strided_slice %241 {offsets = [5, 69], sizes = [1, 137], strides = [1, 1]} : vector<8x256xf32> to vector<1x137xf32>
    %253 = arith.addf %251, %252 : vector<1x137xf32>
    %254 = vector.extract_strided_slice %241 {offsets = [6, 70], sizes = [1, 137], strides = [1, 1]} : vector<8x256xf32> to vector<1x137xf32>
    %255 = arith.addf %253, %254 : vector<1x137xf32>
    %256 = vector.extract_strided_slice %241 {offsets = [7, 71], sizes = [1, 137], strides = [1, 1]} : vector<8x256xf32> to vector<1x137xf32>
    %257 = arith.addf %255, %256 : vector<1x137xf32>
    %c1_54 = arith.constant 1 : index
    %c40_55 = arith.constant 40 : index
    %c0_56 = arith.constant 0 : index
    %258 = vector.load %arg2[%c1_54, %c40_55, %c0_56] : memref<2x64x64xf32, #tpu.memory_space<vmem>>, vector<1x8x64xf32>
    %259 = vector.shape_cast %258 : vector<1x8x64xf32> to vector<8x64xf32>
    %cst_57 = arith.constant dense<0.000000e+00> : vector<8x256xf32>
    %260 = tpu.matmul %259, %161, %cst_57 {dimension_numbers = #tpu.dot_dimension_numbers<[1], [0], [0], [1], [0, 0, 1, 1], [], []>} : vector<8x64xf32>, vector<64x256xf32>, vector<8x256xf32> -> vector<8x256xf32>
    %261 = vector.extract_strided_slice %260 {offsets = [0, 80], sizes = [1, 137], strides = [1, 1]} : vector<8x256xf32> to vector<1x137xf32>
    %262 = arith.addf %257, %261 : vector<1x137xf32>
    %263 = vector.extract_strided_slice %260 {offsets = [1, 81], sizes = [1, 137], strides = [1, 1]} : vector<8x256xf32> to vector<1x137xf32>
    %264 = arith.addf %262, %263 : vector<1x137xf32>
    %265 = vector.extract_strided_slice %260 {offsets = [2, 82], sizes = [1, 137], strides = [1, 1]} : vector<8x256xf32> to vector<1x137xf32>
    %266 = arith.addf %264, %265 : vector<1x137xf32>
    %267 = vector.extract_strided_slice %260 {offsets = [3, 83], sizes = [1, 137], strides = [1, 1]} : vector<8x256xf32> to vector<1x137xf32>
    %268 = arith.addf %266, %267 : vector<1x137xf32>
    %269 = vector.extract_strided_slice %260 {offsets = [4, 84], sizes = [1, 137], strides = [1, 1]} : vector<8x256xf32> to vector<1x137xf32>
    %270 = arith.addf %268, %269 : vector<1x137xf32>
    %271 = vector.extract_strided_slice %260 {offsets = [5, 85], sizes = [1, 137], strides = [1, 1]} : vector<8x256xf32> to vector<1x137xf32>
    %272 = arith.addf %270, %271 : vector<1x137xf32>
    %273 = vector.extract_strided_slice %260 {offsets = [6, 86], sizes = [1, 137], strides = [1, 1]} : vector<8x256xf32> to vector<1x137xf32>
    %274 = arith.addf %272, %273 : vector<1x137xf32>
    %275 = vector.extract_strided_slice %260 {offsets = [7, 87], sizes = [1, 137], strides = [1, 1]} : vector<8x256xf32> to vector<1x137xf32>
    %276 = arith.addf %274, %275 : vector<1x137xf32>
    %c1_58 = arith.constant 1 : index
    %c48_59 = arith.constant 48 : index
    %c0_60 = arith.constant 0 : index
    %277 = vector.load %arg2[%c1_58, %c48_59, %c0_60] : memref<2x64x64xf32, #tpu.memory_space<vmem>>, vector<1x8x64xf32>
    %278 = vector.shape_cast %277 : vector<1x8x64xf32> to vector<8x64xf32>
    %cst_61 = arith.constant dense<0.000000e+00> : vector<8x256xf32>
    %279 = tpu.matmul %278, %161, %cst_61 {dimension_numbers = #tpu.dot_dimension_numbers<[1], [0], [0], [1], [0, 0, 1, 1], [], []>} : vector<8x64xf32>, vector<64x256xf32>, vector<8x256xf32> -> vector<8x256xf32>
    %280 = vector.extract_strided_slice %279 {offsets = [0, 96], sizes = [1, 137], strides = [1, 1]} : vector<8x256xf32> to vector<1x137xf32>
    %281 = arith.addf %276, %280 : vector<1x137xf32>
    %282 = vector.extract_strided_slice %279 {offsets = [1, 97], sizes = [1, 137], strides = [1, 1]} : vector<8x256xf32> to vector<1x137xf32>
    %283 = arith.addf %281, %282 : vector<1x137xf32>
    %284 = vector.extract_strided_slice %279 {offsets = [2, 98], sizes = [1, 137], strides = [1, 1]} : vector<8x256xf32> to vector<1x137xf32>
    %285 = arith.addf %283, %284 : vector<1x137xf32>
    %286 = vector.extract_strided_slice %279 {offsets = [3, 99], sizes = [1, 137], strides = [1, 1]} : vector<8x256xf32> to vector<1x137xf32>
    %287 = arith.addf %285, %286 : vector<1x137xf32>
    %288 = vector.extract_strided_slice %279 {offsets = [4, 100], sizes = [1, 137], strides = [1, 1]} : vector<8x256xf32> to vector<1x137xf32>
    %289 = arith.addf %287, %288 : vector<1x137xf32>
    %290 = vector.extract_strided_slice %279 {offsets = [5, 101], sizes = [1, 137], strides = [1, 1]} : vector<8x256xf32> to vector<1x137xf32>
    %291 = arith.addf %289, %290 : vector<1x137xf32>
    %292 = vector.extract_strided_slice %279 {offsets = [6, 102], sizes = [1, 137], strides = [1, 1]} : vector<8x256xf32> to vector<1x137xf32>
    %293 = arith.addf %291, %292 : vector<1x137xf32>
    %294 = vector.extract_strided_slice %279 {offsets = [7, 103], sizes = [1, 137], strides = [1, 1]} : vector<8x256xf32> to vector<1x137xf32>
    %295 = arith.addf %293, %294 : vector<1x137xf32>
    %c1_62 = arith.constant 1 : index
    %c56_63 = arith.constant 56 : index
    %c0_64 = arith.constant 0 : index
    %296 = vector.load %arg2[%c1_62, %c56_63, %c0_64] : memref<2x64x64xf32, #tpu.memory_space<vmem>>, vector<1x8x64xf32>
    %297 = vector.shape_cast %296 : vector<1x8x64xf32> to vector<8x64xf32>
    %cst_65 = arith.constant dense<0.000000e+00> : vector<8x256xf32>
    %298 = tpu.matmul %297, %161, %cst_65 {dimension_numbers = #tpu.dot_dimension_numbers<[1], [0], [0], [1], [0, 0, 1, 1], [], []>} : vector<8x64xf32>, vector<64x256xf32>, vector<8x256xf32> -> vector<8x256xf32>
    %299 = vector.extract_strided_slice %298 {offsets = [0, 112], sizes = [1, 137], strides = [1, 1]} : vector<8x256xf32> to vector<1x137xf32>
    %300 = arith.addf %295, %299 : vector<1x137xf32>
    %301 = vector.extract_strided_slice %298 {offsets = [1, 113], sizes = [1, 137], strides = [1, 1]} : vector<8x256xf32> to vector<1x137xf32>
    %302 = arith.addf %300, %301 : vector<1x137xf32>
    %303 = vector.extract_strided_slice %298 {offsets = [2, 114], sizes = [1, 137], strides = [1, 1]} : vector<8x256xf32> to vector<1x137xf32>
    %304 = arith.addf %302, %303 : vector<1x137xf32>
    %305 = vector.extract_strided_slice %298 {offsets = [3, 115], sizes = [1, 137], strides = [1, 1]} : vector<8x256xf32> to vector<1x137xf32>
    %306 = arith.addf %304, %305 : vector<1x137xf32>
    %307 = vector.extract_strided_slice %298 {offsets = [4, 116], sizes = [1, 137], strides = [1, 1]} : vector<8x256xf32> to vector<1x137xf32>
    %308 = arith.addf %306, %307 : vector<1x137xf32>
    %309 = vector.extract_strided_slice %298 {offsets = [5, 117], sizes = [1, 137], strides = [1, 1]} : vector<8x256xf32> to vector<1x137xf32>
    %310 = arith.addf %308, %309 : vector<1x137xf32>
    %311 = vector.extract_strided_slice %298 {offsets = [6, 118], sizes = [1, 137], strides = [1, 1]} : vector<8x256xf32> to vector<1x137xf32>
    %312 = arith.addf %310, %311 : vector<1x137xf32>
    %313 = vector.extract_strided_slice %298 {offsets = [7, 119], sizes = [1, 137], strides = [1, 1]} : vector<8x256xf32> to vector<1x137xf32>
    %314 = arith.addf %312, %313 : vector<1x137xf32>
    %cst_66 = arith.constant 1.000000e-01 : f32
    %315 = vector.broadcast %cst_66 : f32 to vector<1x137xf32>
    %316 = arith.mulf %315, %314 : vector<1x137xf32>
    %c1_67 = arith.constant 1 : index
    %c0_68 = arith.constant 0 : index
    %c0_69 = arith.constant 0 : index
    %317 = vector.load %arg3[%c1_67, %c0_68, %c0_69] : memref<2x1x137xf32, #tpu.memory_space<vmem>>, vector<1x1x137xf32>
    %318 = vector.shape_cast %317 : vector<1x1x137xf32> to vector<1x137xf32>
    %319 = vector.shape_cast %316 : vector<1x137xf32> to vector<1x1x137xf32>
    tpu.vector_store %arg3[%c1_67, %c0_68, %c0_69], %319 {strides = array<i32>} : memref<2x1x137xf32, #tpu.memory_space<vmem>>, vector<1x1x137xf32>,
    return
  }
  func.func @transform_0(%arg0: i32) -> (i32, i32, i32) {
    %c0_i32 = arith.constant 0 : i32
    %c0_i32_0 = arith.constant 0 : i32
    %c0_i32_1 = arith.constant 0 : i32
    return %arg0, %c0_i32, %c0_i32_0 : i32, i32, i32
  }
  func.func @transform_1(%arg0: i32) -> (i32, i32, i32) {
    %c0_i32 = arith.constant 0 : i32
    %c0_i32_0 = arith.constant 0 : i32
    %c0_i32_1 = arith.constant 0 : i32
    return %arg0, %c0_i32, %c0_i32_0 : i32, i32, i32
  }
  func.func @transform_2(%arg0: i32) -> (i32, i32, i32) {
    %c0_i32 = arith.constant 0 : i32
    %c0_i32_0 = arith.constant 0 : i32
    %c0_i32_1 = arith.constant 0 : i32
    return %arg0, %c0_i32, %c0_i32_0 : i32, i32, i32
  }
}

</mosaic_0001>

<llo_original>
// kernel: tpu_custom_call.1
$region0: #{tpu_custom_call.1}
  #allocation0 [shape = 'u32[]', space=smem, size = 0x4, offset = 0x4, fixed_abs, tag = 'smem constant byte address 0x4 - core index']
  #allocation1 [shape = 'u32[144,128]{1,0:T(1,128)}', space=vmem, size = 0x12000, scoped, tag = 'internal scratch']
  %s0 = inlined_call_operand.hbm [shape: f32[4,64,256], index: 0, kind: input, shape index: {}]
  %s1 = inlined_call_operand.hbm [shape: f32[4,64,64], index: 1, kind: input, shape index: {}]
  %s2 = inlined_call_operand.hbm [shape: f32[4,1,137], index: 2, kind: output, shape index: {}]
  %s3 = sld [smem:[#allocation0]]
  $region49: #{tpu_custom_call.1} parent=0
    _
  %s5 = ssub.s32 1, %s3
  %s6 = scalar_select 0, %s5, %s3
  $region1: #{tpu_custom_call.1} parent=0
    #allocation2 [shape = 'u8[262144]{0}', space=vmem, size = 0x40000, scoped, tag = 'input window, operand 0']
    #allocation3 [shape = 's32[2]{0}', space=sflag, size = 0x8, scoped, tag = 'scoped memory for tpu_custom_call.1']
    #allocation4 [shape = 's32[2]{0}', space=sflag, size = 0x8, scoped, tag = 'scoped memory for tpu_custom_call.1']
    #allocation5 [shape = 'u8[131072]{0}', space=vmem, size = 0x20000, scoped, tag = 'input window, operand 1']
    #allocation6 [shape = 's32[2]{0}', space=sflag, size = 0x8, scoped, tag = 'scoped memory for tpu_custom_call.1']
    #allocation7 [shape = 'u8[4096]{0}', space=vmem, size = 0x1000, scoped, tag = 'output window, operand 0']
    %7 = vsyncpa [#allocation3], 0
    %s8 = scalar_lea.sflag [#allocation3], 1
    %9 = vsyncpa %s8, 0
    %10 = vsyncpa [#allocation6], 0
    %s11 = scalar_lea.sflag [#allocation6], 1
    %12 = vsyncpa %s11, 0
    %13 = vsyncpa [#allocation4], 0
    %s14 = scalar_lea.sflag [#allocation4], 1
    %15 = vsyncpa %s14, 0
    loop: start=0, step=1, limit=4
    $region2: #{tpu_custom_call.1} parent=1 // loop_pre_header
      _
    $region3: #{tpu_custom_call.1} parent=1 // loop_header
      %s17 = sphi 0, %s21
      %p18 = scmp.ge.s32.totalorder %s17, 4
      %s27 = sphi 0, %s29
      %s30 = sphi 0, %s27
      %s31 = sphi 0, %s30
      %s47 = sphi 0, %s31
      %s53 = sphi 0, %s55
      %s56 = sphi 0, %s53
      %s57 = sphi 0, %s56
      %s73 = sphi 0, %s57
      %s79 = sphi 0, %s81
      %s82 = sphi 0, %s79
      %s83 = sphi 0, %s82
      %s99 = sphi 0, %s83
    $region4: #{tpu_custom_call.1} parent=1 // loop_header_branch
      %20 = sbr.rel (%p18) target = $region8
    $region5: #{tpu_custom_call.1} parent=1 // loop_body
      %s22 = ssub.s32 %s17, 1
      %s23 = ssub.s32 %s17, 2
      %s24 = sadd.s32 %s17, 1
      %s25 = ssub.s32 %s17, %s24
      %p26 = scmp.eq.s32.totalorder %s25, 0
      %s28 = sadd.s32 %s27, 1
      %s29 = scalar_select %p26, %s27, %s28
      %p32 = pneg %p26
      %p33 = scmp.eq.s32.totalorder %s17, 1
      %p34 = por %p32, %p33
      %p35 = scmp.ne.s32.totalorder %s27, %s30
      %p36 = scmp.eq.s32.totalorder %s17, 0
      %p37 = por %p35, %p36
      %p38 = scmp.ne.s32.totalorder %s27, %s30
      %p39 = scmp.eq.s32.totalorder %s22, 1
      %p40 = por %p38, %p39
      %p41 = scmp.ne.s32.totalorder %s30, %s31
      %p42 = scmp.eq.s32.totalorder %s22, 0
      %p43 = por %p41, %p42
      %p44 = scmp.ne.s32.totalorder %s30, %s31
      %p45 = scmp.eq.s32.totalorder %s23, 1
      %p46 = por %p44, %p45
      %p48 = scmp.ne.s32.totalorder %s31, %s47
      %p49 = scmp.eq.s32.totalorder %s23, 0
      %p50 = por %p48, %p49
      %s51 = ssub.s32 %s17, %s24
      %p52 = scmp.eq.s32.totalorder %s51, 0
      %s54 = sadd.s32 %s53, 1
      %s55 = scalar_select %p52, %s53, %s54
      %p58 = pneg %p52
      %p59 = scmp.eq.s32.totalorder %s17, 1
      %p60 = por %p58, %p59
      %p61 = scmp.ne.s32.totalorder %s53, %s56
      %p62 = scmp.eq.s32.totalorder %s17, 0
      %p63 = por %p61, %p62
      %p64 = scmp.ne.s32.totalorder %s53, %s56
      %p65 = scmp.eq.s32.totalorder %s22, 1
      %p66 = por %p64, %p65
      %p67 = scmp.ne.s32.totalorder %s56, %s57
      %p68 = scmp.eq.s32.totalorder %s22, 0
      %p69 = por %p67, %p68
      %p70 = scmp.ne.s32.totalorder %s56, %s57
      %p71 = scmp.eq.s32.totalorder %s23, 1
      %p72 = por %p70, %p71
      %p74 = scmp.ne.s32.totalorder %s57, %s73
      %p75 = scmp.eq.s32.totalorder %s23, 0
      %p76 = por %p74, %p75
      %s77 = ssub.s32 %s17, %s24
      %p78 = scmp.eq.s32.totalorder %s77, 0
      %s80 = sadd.s32 %s79, 1
      %s81 = scalar_select %p78, %s79, %s80
      %p84 = pneg %p78
      %p85 = scmp.eq.s32.totalorder %s17, 1
      %p86 = por %p84, %p85
      %p87 = scmp.ne.s32.totalorder %s79, %s82
      %p88 = scmp.eq.s32.totalorder %s17, 0
      %p89 = por %p87, %p88
      %p90 = scmp.ne.s32.totalorder %s79, %s82
      %p91 = scmp.eq.s32.totalorder %s22, 1
      %p92 = por %p90, %p91
      %p93 = scmp.ne.s32.totalorder %s82, %s83
      %p94 = scmp.eq.s32.totalorder %s22, 0
      %p95 = por %p93, %p94
      %p96 = scmp.ne.s32.totalorder %s82, %s83
      %p97 = scmp.eq.s32.totalorder %s23, 1
      %p98 = por %p96, %p97
      %p100 = scmp.ne.s32.totalorder %s83, %s99
      %p101 = scmp.eq.s32.totalorder %s23, 0
      %p102 = por %p100, %p101
      %p103 = scmp.le.s32.totalorder 1, %s17
      %p104 = scmp.lt.s32.totalorder %s17, 3
      %p105 = pnand %p103, %p104
      %p106 = pneg %p105
      // Predicated region
      $region9: #{tpu_custom_call.1} parent=5 // pred_check
        _
      $region10: #{tpu_custom_call.1} parent=5 // pred_check_branch
        %108 = sbr.rel (%p105) target = $region12
      $region11: #{tpu_custom_call.1} parent=5 // pred_region
        %s109 = ssub.s32 %s17, 1
      $region12: #{tpu_custom_call.1} parent=5 // pred_fallthru
        _
      %p110 = scmp.lt.s32.totalorder %s17, 2
      // Predicated region
      $region13: #{tpu_custom_call.1} parent=5 // pred_check
        %p111 = pneg %p110
      $region14: #{tpu_custom_call.1} parent=5 // pred_check_branch
        %113 = sbr.rel (%p111) target = $region16
      $region15: #{tpu_custom_call.1} parent=5 // pred_region
        // Predicated region
        $region17: #{tpu_custom_call.1} parent=15 // pred_check
          %p114 = pneg %p37
        $region18: #{tpu_custom_call.1} parent=15 // pred_check_branch
          %116 = sbr.rel (%p114) target = $region20
        $region19: #{tpu_custom_call.1} parent=15 // pred_region
          %s117 = sand.u32 %s27, 1
          %s118 = scalar_lea.sflag [#allocation3], %s117
          %s119 = sand.u32 %s27, 1
          %s120 = smul.addr %s119, 256
          %s121 = scalar_lea.vmem [#allocation2], %s120
          %s122 = smul.u32 2, %s17
          %s124 = ssub.s32 4096, 4096
          %125 = vsyncadd %s118, %s124
          %s126 = smul.addr %s122, 16
          %s127 = smul.addr %s126, 128
          %s128 = scalar_lea.hbm %s0, %s127
          %s129 = sshll.u32 %s121, 4
          %s130 = int_to_ptr.vmem [resolvable:$true] %s129
          %135 = dma.hbm_to_vmem [thread:$0]  %s128, 4096, %s130, %s118, 256, 256, 16
        $region20: #{tpu_custom_call.1} parent=15 // pred_fallthru
          _
        // Predicated region
        $region21: #{tpu_custom_call.1} parent=15 // pred_check
          %p136 = pneg %p63
        $region22: #{tpu_custom_call.1} parent=15 // pred_check_branch
          %138 = sbr.rel (%p136) target = $region24
        $region23: #{tpu_custom_call.1} parent=15 // pred_region
          %s139 = sand.u32 %s53, 1
          %s140 = scalar_lea.sflag [#allocation6], %s139
          %s141 = sand.u32 %s53, 1
          %s142 = smul.addr %s141, 128
          %s143 = scalar_lea.vmem [#allocation5], %s142
          %s144 = smul.u32 2, %s17
          %s146 = ssub.s32 2048, 2048
          %147 = vsyncadd %s140, %s146
          %s148 = smul.addr %s144, 8
          %s149 = smul.addr %s148, 128
          %s150 = scalar_lea.hbm %s1, %s149
          %s151 = sshll.u32 %s143, 4
          %s152 = int_to_ptr.vmem [resolvable:$true] %s151
          %157 = dma.hbm_to_vmem [thread:$0]  %s150, 2048, %s152, %s140, 128, 128, 8
        $region24: #{tpu_custom_call.1} parent=15 // pred_fallthru
          _
      $region16: #{tpu_custom_call.1} parent=5 // pred_fallthru
        _
      %p158 = scmp.le.s32.totalorder 1, %s17
      %p159 = scmp.lt.s32.totalorder %s17, 3
      %p160 = pnand %p158, %p159
      %p161 = pneg %p160
      // Predicated region
      $region25: #{tpu_custom_call.1} parent=5 // pred_check
        _
      $region26: #{tpu_custom_call.1} parent=5 // pred_check_branch
        %163 = sbr.rel (%p160) target = $region28
      $region27: #{tpu_custom_call.1} parent=5 // pred_region
        %s164 = ssub.s32 %s17, 1
        %s165 = sand.u32 %s30, 1
        %s166 = scalar_lea.sflag [#allocation3], %s165
        %s167 = sand.u32 %s30, 1
        %s168 = smul.addr %s167, 256
        %s169 = scalar_lea.vmem [#allocation2], %s168
        // Predicated region
        $region29: #{tpu_custom_call.1} parent=27 // pred_check
          %p170 = pneg %p43
        $region30: #{tpu_custom_call.1} parent=27 // pred_check_branch
          %172 = sbr.rel (%p170) target = $region32
        $region31: #{tpu_custom_call.1} parent=27 // pred_region
          %173 = dma.done %s166, 4096
        $region32: #{tpu_custom_call.1} parent=27 // pred_fallthru
          _
        %s174 = sand.u32 %s56, 1
        %s175 = scalar_lea.sflag [#allocation6], %s174
        %s176 = sand.u32 %s56, 1
        %s177 = smul.addr %s176, 128
        %s178 = scalar_lea.vmem [#allocation5], %s177
        // Predicated region
        $region33: #{tpu_custom_call.1} parent=27 // pred_check
          %p179 = pneg %p69
        $region34: #{tpu_custom_call.1} parent=27 // pred_check_branch
          %181 = sbr.rel (%p179) target = $region36
        $region35: #{tpu_custom_call.1} parent=27 // pred_region
          %182 = dma.done %s175, 2048
        $region36: #{tpu_custom_call.1} parent=27 // pred_fallthru
          _
        %s183 = sand.u32 %s30, 1
        %s184 = scalar_lea.sflag [#allocation3], %s183
        %s185 = sand.u32 %s30, 1
        %s186 = smul.addr %s185, 256
        %s187 = scalar_lea.vmem [#allocation2], %s186
        %p188 = pneg %p43
        %p189 = pneg %p40
        %s190 = sand.u32 %s56, 1
        %s191 = scalar_lea.sflag [#allocation6], %s190
        %s192 = sand.u32 %s56, 1
        %s193 = smul.addr %s192, 128
        %s194 = scalar_lea.vmem [#allocation5], %s193
        %p195 = pneg %p69
        %p196 = pneg %p66
        %p197 = pneg %p95
        %p198 = pneg %p92
        %s199 = sand.u32 %s82, 1
        %s200 = scalar_lea.sflag [#allocation4], %s199
        %s201 = sand.u32 %s82, 1
        %s202 = smul.addr %s201, 4
        %s203 = scalar_lea.vmem [#allocation7], %s202
        %s204 = smul.u32 2, %s22
        %s205 = smul.u32 2, %s22
        %s206 = smul.u32 2, %s22
        %v207 = vld [vmem:[%s169] sm:$0xff]
        %v208 = vld [vmem:[%s169 + $0x8] sm:$0xff]
        %v209 = vld [vmem:[%s169 + $0x10] sm:$0xff]
        %v210 = vld [vmem:[%s169 + $0x18] sm:$0xff]
        %v211 = vld [vmem:[%s169 + $0x20] sm:$0xff]
        %v212 = vld [vmem:[%s169 + $0x28] sm:$0xff]
        %v213 = vld [vmem:[%s169 + $0x30] sm:$0xff]
        %v214 = vld [vmem:[%s169 + $0x38] sm:$0xff]
        %v215 = vld [vmem:[%s169 + $0x40] sm:$0xff]
        %v216 = vld [vmem:[%s169 + $0x48] sm:$0xff]
        %v217 = vld [vmem:[%s169 + $0x50] sm:$0xff]
        %v218 = vld [vmem:[%s169 + $0x58] sm:$0xff]
        %v219 = vld [vmem:[%s169 + $0x60] sm:$0xff]
        %v220 = vld [vmem:[%s169 + $0x68] sm:$0xff]
        %v221 = vld [vmem:[%s169 + $0x70] sm:$0xff]
        %v222 = vld [vmem:[%s169 + $0x78] sm:$0xff]
        %v223 = vld [vmem:[%s178] sm:$0xff]
        %vm224 = vcmask 523264
        %v226 = vsel %vm224, %v223, 0
        %228 = vmatprep.subr.mxu0 %v208
        %229 = vmatpush1.msra.mxu0 %v207
        %230 = vmatprep.subr.mxu0 %v210
        %231 = vmatpush1.msra.mxu0 %v209
        %232 = vmatprep.subr.mxu0 %v212
        %233 = vmatpush1.msra.mxu0 %v211
        %234 = vmatprep.subr.mxu0 %v214
        %235 = vmatpush1.msra.mxu0 %v213
        %236 = vmatprep.subr.mxu0 %v216
        %237 = vmatpush1.msra.mxu0 %v215
        %238 = vmatprep.subr.mxu0 %v218
        %239 = vmatpush1.msra.mxu0 %v217
        %240 = vmatprep.subr.mxu0 %v220
        %241 = vmatpush1.msra.mxu0 %v219
        %242 = vmatprep.subr.mxu0 %v222
        %243 = vmatpush1.msra.mxu0 %v221
        %244 = vmatprep.subr.mxu0 0.0
        %245 = vmatpush1.msra.mxu0 0.0
        %246 = vmatprep.subr.mxu0 0.0
        %247 = vmatpush1.msra.mxu0 0.0
        %248 = vmatprep.subr.mxu0 0.0
        %249 = vmatpush1.msra.mxu0 0.0
        %250 = vmatprep.subr.mxu0 0.0
        %251 = vmatpush1.msra.mxu0 0.0
        %252 = vmatprep.subr.mxu0 0.0
        %253 = vmatpush1.msra.mxu0 0.0
        %254 = vmatprep.subr.mxu0 0.0
        %255 = vmatpush1.msra.mxu0 0.0
        %256 = vmatprep.subr.mxu0 0.0
        %257 = vmatpush1.msra.mxu0 0.0
        %258 = vmatprep.subr.mxu0 0.0
        %259 = vmatpush1.msra.mxu0 0.0
        %260 = vmatprep.subr.mxu0 0.0
        %261 = vmatpush1.msra.mxu0 0.0
        %262 = vmatprep.subr.mxu0 0.0
        %263 = vmatpush1.msra.mxu0 0.0
        %264 = vmatprep.subr.mxu0 0.0
        %265 = vmatpush1.msra.mxu0 0.0
        %266 = vmatprep.subr.mxu0 0.0
        %267 = vmatpush1.msra.mxu0 0.0
        %268 = vmatprep.subr.mxu0 0.0
        %269 = vmatpush1.msra.mxu0 0.0
        %270 = vmatprep.subr.mxu0 0.0
        %271 = vmatpush1.msra.mxu0 0.0
        %272 = vmatprep.subr.mxu0 0.0
        %273 = vmatpush1.msra.mxu0 0.0
        %274 = vmatprep.subr.mxu0 0.0
        %275 = vmatpush1.msra.mxu0 0.0
        %276 = vmatprep.subr.mxu0 0.0
        %277 = vmatpush1.msra.mxu0 0.0
        %278 = vmatprep.subr.mxu0 0.0
        %279 = vmatpush1.msra.mxu0 0.0
        %280 = vmatprep.subr.mxu0 0.0
        %281 = vmatpush1.msra.mxu0 0.0
        %282 = vmatprep.subr.mxu0 0.0
        %283 = vmatpush1.msra.mxu0 0.0
        %284 = vmatprep.subr.mxu0 0.0
        %285 = vmatpush1.msra.mxu0 0.0
        %286 = vmatprep.subr.mxu0 0.0
        %287 = vmatpush1.msra.mxu0 0.0
        %288 = vmatprep.subr.mxu0 0.0
        %289 = vmatpush1.msra.mxu0 0.0
        %290 = vmatprep.subr.mxu0 0.0
        %291 = vmatpush1.msra.mxu0 0.0
        %292 = vmatprep.mubr.f32.mxu0 0.0
        %293 = vmatmul.mubr.f32.gmra.mrb[0].mxu0 %v226
        %v294 = vpop.f32.mrb[0].mxu0
        %v295 = vadd.f32 0.0, %v294
        %v296 = vpop.f32.mrb[0].mxu0
        %v297 = vadd.f32 0.0, %v296
        %298 = vdwg.mxu0
        %v299 = vadd.f32 %v295, 0.0
        %v300 = vadd.f32 %v297, 0.0
        %v303 = vrot.slane %v295, 1
        %v304 = vrot.slane %v297, 1
        %305 = vrot.lane.b32.xlu0 %v303, 127
        %v306 = vpop.permute.xlu0 %305
        %307 = vrot.lane.b32.xlu0 %v304, 127
        %v308 = vpop.permute.xlu0 %307
        %vm309 = vcmask 1039360
        %v310 = vsel %vm309, %v306, %v308
        %v313 = vadd.f32 %v299, %v310
        %v314 = vadd.f32 %v300, %v308
        %v315 = vrot.slane %v295, 2
        %v316 = vrot.slane %v297, 2
        %317 = vrot.lane.b32.xlu0 %v315, 126
        %v318 = vpop.permute.xlu0 %317
        %319 = vrot.lane.b32.xlu0 %v316, 126
        %v320 = vpop.permute.xlu0 %319
        %vm321 = vcmask 1031168
        %v322 = vsel %vm321, %v318, %v320
        %v325 = vadd.f32 %v313, %v322
        %v326 = vadd.f32 %v314, %v320
        %v327 = vrot.slane %v295, 3
        %v328 = vrot.slane %v297, 3
        %329 = vrot.lane.b32.xlu0 %v327, 125
        %v330 = vpop.permute.xlu0 %329
        %331 = vrot.lane.b32.xlu0 %v328, 125
        %v332 = vpop.permute.xlu0 %331
        %vm333 = vcmask 1022976
        %v334 = vsel %vm333, %v330, %v332
        %v337 = vadd.f32 %v325, %v334
        %v338 = vadd.f32 %v326, %v332
        %v339 = vrot.slane %v295, 4
        %v340 = vrot.slane %v297, 4
        %341 = vrot.lane.b32.xlu0 %v339, 124
        %v342 = vpop.permute.xlu0 %341
        %343 = vrot.lane.b32.xlu0 %v340, 124
        %v344 = vpop.permute.xlu0 %343
        %vm345 = vcmask 1014784
        %v346 = vsel %vm345, %v342, %v344
        %v349 = vadd.f32 %v337, %v346
        %v350 = vadd.f32 %v338, %v344
        %v351 = vrot.slane %v295, 5
        %v352 = vrot.slane %v297, 5
        %353 = vrot.lane.b32.xlu0 %v351, 123
        %v354 = vpop.permute.xlu0 %353
        %355 = vrot.lane.b32.xlu0 %v352, 123
        %v356 = vpop.permute.xlu0 %355
        %vm357 = vcmask 1006592
        %v358 = vsel %vm357, %v354, %v356
        %v361 = vadd.f32 %v349, %v358
        %v362 = vadd.f32 %v350, %v356
        %v363 = vrot.slane %v295, 6
        %v364 = vrot.slane %v297, 6
        %365 = vrot.lane.b32.xlu0 %v363, 122
        %v366 = vpop.permute.xlu0 %365
        %367 = vrot.lane.b32.xlu0 %v364, 122
        %v368 = vpop.permute.xlu0 %367
        %vm369 = vcmask 998400
        %v370 = vsel %vm369, %v366, %v368
        %v373 = vadd.f32 %v361, %v370
        %v374 = vadd.f32 %v362, %v368
        %v375 = vrot.slane %v295, 7
        %v376 = vrot.slane %v297, 7
        %377 = vrot.lane.b32.xlu0 %v375, 121
        %v378 = vpop.permute.xlu0 %377
        %379 = vrot.lane.b32.xlu0 %v376, 121
        %v380 = vpop.permute.xlu0 %379
        %vm381 = vcmask 990208
        %v382 = vsel %vm381, %v378, %v380
        %v385 = vadd.f32 %v373, %v382
        %v386 = vadd.f32 %v374, %v380
        %v387 = vld [vmem:[%s178 + $0x8] sm:$0xff]
        %v389 = vsel %vm224, %v387, 0
        %391 = vmatprep.subr.mxu0 %v208
        %392 = vmatpush1.msra.mxu0 %v207
        %393 = vmatprep.subr.mxu0 %v210
        %394 = vmatpush1.msra.mxu0 %v209
        %395 = vmatprep.subr.mxu0 %v212
        %396 = vmatpush1.msra.mxu0 %v211
        %397 = vmatprep.subr.mxu0 %v214
        %398 = vmatpush1.msra.mxu0 %v213
        %399 = vmatprep.subr.mxu0 %v216
        %400 = vmatpush1.msra.mxu0 %v215
        %401 = vmatprep.subr.mxu0 %v218
        %402 = vmatpush1.msra.mxu0 %v217
        %403 = vmatprep.subr.mxu0 %v220
        %404 = vmatpush1.msra.mxu0 %v219
        %405 = vmatprep.subr.mxu0 %v222
        %406 = vmatpush1.msra.mxu0 %v221
        %407 = vmatprep.subr.mxu0 0.0
        %408 = vmatpush1.msra.mxu0 0.0
        %409 = vmatprep.subr.mxu0 0.0
        %410 = vmatpush1.msra.mxu0 0.0
        %411 = vmatprep.subr.mxu0 0.0
        %412 = vmatpush1.msra.mxu0 0.0
        %413 = vmatprep.subr.mxu0 0.0
        %414 = vmatpush1.msra.mxu0 0.0
        %415 = vmatprep.subr.mxu0 0.0
        %416 = vmatpush1.msra.mxu0 0.0
        %417 = vmatprep.subr.mxu0 0.0
        %418 = vmatpush1.msra.mxu0 0.0
        %419 = vmatprep.subr.mxu0 0.0
        %420 = vmatpush1.msra.mxu0 0.0
        %421 = vmatprep.subr.mxu0 0.0
        %422 = vmatpush1.msra.mxu0 0.0
        %423 = vmatprep.subr.mxu0 0.0
        %424 = vmatpush1.msra.mxu0 0.0
        %425 = vmatprep.subr.mxu0 0.0
        %426 = vmatpush1.msra.mxu0 0.0
        %427 = vmatprep.subr.mxu0 0.0
        %428 = vmatpush1.msra.mxu0 0.0
        %429 = vmatprep.subr.mxu0 0.0
        %430 = vmatpush1.msra.mxu0 0.0
        %431 = vmatprep.subr.mxu0 0.0
        %432 = vmatpush1.msra.mxu0 0.0
        %433 = vmatprep.subr.mxu0 0.0
        %434 = vmatpush1.msra.mxu0 0.0
        %435 = vmatprep.subr.mxu0 0.0
        %436 = vmatpush1.msra.mxu0 0.0
        %437 = vmatprep.subr.mxu0 0.0
        %438 = vmatpush1.msra.mxu0 0.0
        %439 = vmatprep.subr.mxu0 0.0
        %440 = vmatpush1.msra.mxu0 0.0
        %441 = vmatprep.subr.mxu0 0.0
        %442 = vmatpush1.msra.mxu0 0.0
        %443 = vmatprep.subr.mxu0 0.0
        %444 = vmatpush1.msra.mxu0 0.0
        %445 = vmatprep.subr.mxu0 0.0
        %446 = vmatpush1.msra.mxu0 0.0
        %447 = vmatprep.subr.mxu0 0.0
        %448 = vmatpush1.msra.mxu0 0.0
        %449 = vmatprep.subr.mxu0 0.0
        %450 = vmatpush1.msra.mxu0 0.0
        %451 = vmatprep.subr.mxu0 0.0
        %452 = vmatpush1.msra.mxu0 0.0
        %453 = vmatprep.subr.mxu0 0.0
        %454 = vmatpush1.msra.mxu0 0.0
        %455 = vmatprep.mubr.f32.mxu0 0.0
        %456 = vmatmul.mubr.f32.gmra.mrb[0].mxu0 %v389
        %v457 = vpop.f32.mrb[0].mxu0
        %v458 = vadd.f32 0.0, %v457
        %v459 = vpop.f32.mrb[0].mxu0
        %v460 = vadd.f32 0.0, %v459
        %461 = vdwg.mxu0
        %464 = vrot.lane.b32.xlu0 %v458, 112
        %v465 = vpop.permute.xlu0 %464
        %466 = vrot.lane.b32.xlu0 %v460, 112
        %v467 = vpop.permute.xlu0 %466
        %vm468 = vcmask 916480
        %v469 = vsel %vm468, %v465, %v467
        %v472 = vadd.f32 %v385, %v469
        %v473 = vadd.f32 %v386, %v467
        %v474 = vrot.slane %v458, 1
        %v475 = vrot.slane %v460, 1
        %476 = vrot.lane.b32.xlu0 %v474, 111
        %v477 = vpop.permute.xlu0 %476
        %478 = vrot.lane.b32.xlu0 %v475, 111
        %v479 = vpop.permute.xlu0 %478
        %vm480 = vcmask 908288
        %v481 = vsel %vm480, %v477, %v479
        %v484 = vadd.f32 %v472, %v481
        %v485 = vadd.f32 %v473, %v479
        %v486 = vrot.slane %v458, 2
        %v487 = vrot.slane %v460, 2
        %488 = vrot.lane.b32.xlu0 %v486, 110
        %v489 = vpop.permute.xlu0 %488
        %490 = vrot.lane.b32.xlu0 %v487, 110
        %v491 = vpop.permute.xlu0 %490
        %vm492 = vcmask 900096
        %v493 = vsel %vm492, %v489, %v491
        %v496 = vadd.f32 %v484, %v493
        %v497 = vadd.f32 %v485, %v491
        %v498 = vrot.slane %v458, 3
        %v499 = vrot.slane %v460, 3
        %500 = vrot.lane.b32.xlu0 %v498, 109
        %v501 = vpop.permute.xlu0 %500
        %502 = vrot.lane.b32.xlu0 %v499, 109
        %v503 = vpop.permute.xlu0 %502
        %vm504 = vcmask 891904
        %v505 = vsel %vm504, %v501, %v503
        %v508 = vadd.f32 %v496, %v505
        %v509 = vadd.f32 %v497, %v503
        %v510 = vrot.slane %v458, 4
        %v511 = vrot.slane %v460, 4
        %512 = vrot.lane.b32.xlu0 %v510, 108
        %v513 = vpop.permute.xlu0 %512
        %514 = vrot.lane.b32.xlu0 %v511, 108
        %v515 = vpop.permute.xlu0 %514
        %vm516 = vcmask 883712
        %v517 = vsel %vm516, %v513, %v515
        %v520 = vadd.f32 %v508, %v517
        %v521 = vadd.f32 %v509, %v515
        %v522 = vrot.slane %v458, 5
        %v523 = vrot.slane %v460, 5
        %524 = vrot.lane.b32.xlu0 %v522, 107
        %v525 = vpop.permute.xlu0 %524
        %526 = vrot.lane.b32.xlu0 %v523, 107
        %v527 = vpop.permute.xlu0 %526
        %vm528 = vcmask 875520
        %v529 = vsel %vm528, %v525, %v527
        %v532 = vadd.f32 %v520, %v529
        %v533 = vadd.f32 %v521, %v527
        %v534 = vrot.slane %v458, 6
        %v535 = vrot.slane %v460, 6
        %536 = vrot.lane.b32.xlu0 %v534, 106
        %v537 = vpop.permute.xlu0 %536
        %538 = vrot.lane.b32.xlu0 %v535, 106
        %v539 = vpop.permute.xlu0 %538
        %vm540 = vcmask 867328
        %v541 = vsel %vm540, %v537, %v539
        %v544 = vadd.f32 %v532, %v541
        %v545 = vadd.f32 %v533, %v539
        %v546 = vrot.slane %v458, 7
        %v547 = vrot.slane %v460, 7
        %548 = vrot.lane.b32.xlu0 %v546, 105
        %v549 = vpop.permute.xlu0 %548
        %550 = vrot.lane.b32.xlu0 %v547, 105
        %v551 = vpop.permute.xlu0 %550
        %vm552 = vcmask 859136
        %v553 = vsel %vm552, %v549, %v551
        %v556 = vadd.f32 %v544, %v553
        %v557 = vadd.f32 %v545, %v551
        %v558 = vld [vmem:[%s178 + $0x10] sm:$0xff]
        %v560 = vsel %vm224, %v558, 0
        %562 = vmatprep.subr.mxu0 %v208
        %563 = vmatpush1.msra.mxu0 %v207
        %564 = vmatprep.subr.mxu0 %v210
        %565 = vmatpush1.msra.mxu0 %v209
        %566 = vmatprep.subr.mxu0 %v212
        %567 = vmatpush1.msra.mxu0 %v211
        %568 = vmatprep.subr.mxu0 %v214
        %569 = vmatpush1.msra.mxu0 %v213
        %570 = vmatprep.subr.mxu0 %v216
        %571 = vmatpush1.msra.mxu0 %v215
        %572 = vmatprep.subr.mxu0 %v218
        %573 = vmatpush1.msra.mxu0 %v217
        %574 = vmatprep.subr.mxu0 %v220
        %575 = vmatpush1.msra.mxu0 %v219
        %576 = vmatprep.subr.mxu0 %v222
        %577 = vmatpush1.msra.mxu0 %v221
        %578 = vmatprep.subr.mxu0 0.0
        %579 = vmatpush1.msra.mxu0 0.0
        %580 = vmatprep.subr.mxu0 0.0
        %581 = vmatpush1.msra.mxu0 0.0
        %582 = vmatprep.subr.mxu0 0.0
        %583 = vmatpush1.msra.mxu0 0.0
        %584 = vmatprep.subr.mxu0 0.0
        %585 = vmatpush1.msra.mxu0 0.0
        %586 = vmatprep.subr.mxu0 0.0
        %587 = vmatpush1.msra.mxu0 0.0
        %588 = vmatprep.subr.mxu0 0.0
        %589 = vmatpush1.msra.mxu0 0.0
        %590 = vmatprep.subr.mxu0 0.0
        %591 = vmatpush1.msra.mxu0 0.0
        %592 = vmatprep.subr.mxu0 0.0
        %593 = vmatpush1.msra.mxu0 0.0
        %594 = vmatprep.subr.mxu0 0.0
        %595 = vmatpush1.msra.mxu0 0.0
        %596 = vmatprep.subr.mxu0 0.0
        %597 = vmatpush1.msra.mxu0 0.0
        %598 = vmatprep.subr.mxu0 0.0
        %599 = vmatpush1.msra.mxu0 0.0
        %600 = vmatprep.subr.mxu0 0.0
        %601 = vmatpush1.msra.mxu0 0.0
        %602 = vmatprep.subr.mxu0 0.0
        %603 = vmatpush1.msra.mxu0 0.0
        %604 = vmatprep.subr.mxu0 0.0
        %605 = vmatpush1.msra.mxu0 0.0
        %606 = vmatprep.subr.mxu0 0.0
        %607 = vmatpush1.msra.mxu0 0.0
        %608 = vmatprep.subr.mxu0 0.0
        %609 = vmatpush1.msra.mxu0 0.0
        %610 = vmatprep.subr.mxu0 0.0
        %611 = vmatpush1.msra.mxu0 0.0
        %612 = vmatprep.subr.mxu0 0.0
        %613 = vmatpush1.msra.mxu0 0.0
        %614 = vmatprep.subr.mxu0 0.0
        %615 = vmatpush1.msra.mxu0 0.0
        %616 = vmatprep.subr.mxu0 0.0
        %617 = vmatpush1.msra.mxu0 0.0
        %618 = vmatprep.subr.mxu0 0.0
        %619 = vmatpush1.msra.mxu0 0.0
        %620 = vmatprep.subr.mxu0 0.0
        %621 = vmatpush1.msra.mxu0 0.0
        %622 = vmatprep.subr.mxu0 0.0
        %623 = vmatpush1.msra.mxu0 0.0
        %624 = vmatprep.subr.mxu0 0.0
        %625 = vmatpush1.msra.mxu0 0.0
        %626 = vmatprep.mubr.f32.mxu0 0.0
        %627 = vmatmul.mubr.f32.gmra.mrb[0].mxu0 %v560
        %v628 = vpop.f32.mrb[0].mxu0
        %v629 = vadd.f32 0.0, %v628
        %v630 = vpop.f32.mrb[0].mxu0
        %v631 = vadd.f32 0.0, %v630
        %632 = vdwg.mxu0
        %635 = vrot.lane.b32.xlu0 %v629, 96
        %v636 = vpop.permute.xlu0 %635
        %637 = vrot.lane.b32.xlu0 %v631, 96
        %v638 = vpop.permute.xlu0 %637
        %vm639 = vcmask 785408
        %v640 = vsel %vm639, %v636, %v638
        %v643 = vadd.f32 %v556, %v640
        %v644 = vadd.f32 %v557, %v638
        %v645 = vrot.slane %v629, 1
        %v646 = vrot.slane %v631, 1
        %647 = vrot.lane.b32.xlu0 %v645, 95
        %v648 = vpop.permute.xlu0 %647
        %649 = vrot.lane.b32.xlu0 %v646, 95
        %v650 = vpop.permute.xlu0 %649
        %vm651 = vcmask 777216
        %v652 = vsel %vm651, %v648, %v650
        %v655 = vadd.f32 %v643, %v652
        %v656 = vadd.f32 %v644, %v650
        %v657 = vrot.slane %v629, 2
        %v658 = vrot.slane %v631, 2
        %659 = vrot.lane.b32.xlu0 %v657, 94
        %v660 = vpop.permute.xlu0 %659
        %661 = vrot.lane.b32.xlu0 %v658, 94
        %v662 = vpop.permute.xlu0 %661
        %vm663 = vcmask 769024
        %v664 = vsel %vm663, %v660, %v662
        %v667 = vadd.f32 %v655, %v664
        %v668 = vadd.f32 %v656, %v662
        %v669 = vrot.slane %v629, 3
        %v670 = vrot.slane %v631, 3
        %671 = vrot.lane.b32.xlu0 %v669, 93
        %v672 = vpop.permute.xlu0 %671
        %673 = vrot.lane.b32.xlu0 %v670, 93
        %v674 = vpop.permute.xlu0 %673
        %vm675 = vcmask 760832
        %v676 = vsel %vm675, %v672, %v674
        %v679 = vadd.f32 %v667, %v676
        %v680 = vadd.f32 %v668, %v674
        %v681 = vrot.slane %v629, 4
        %v682 = vrot.slane %v631, 4
        %683 = vrot.lane.b32.xlu0 %v681, 92
        %v684 = vpop.permute.xlu0 %683
        %685 = vrot.lane.b32.xlu0 %v682, 92
        %v686 = vpop.permute.xlu0 %685
        %vm687 = vcmask 752640
        %v688 = vsel %vm687, %v684, %v686
        %v691 = vadd.f32 %v679, %v688
        %v692 = vadd.f32 %v680, %v686
        %v693 = vrot.slane %v629, 5
        %v694 = vrot.slane %v631, 5
        %695 = vrot.lane.b32.xlu0 %v693, 91
        %v696 = vpop.permute.xlu0 %695
        %697 = vrot.lane.b32.xlu0 %v694, 91
        %v698 = vpop.permute.xlu0 %697
        %vm699 = vcmask 744448
        %v700 = vsel %vm699, %v696, %v698
        %v703 = vadd.f32 %v691, %v700
        %v704 = vadd.f32 %v692, %v698
        %v705 = vrot.slane %v629, 6
        %v706 = vrot.slane %v631, 6
        %707 = vrot.lane.b32.xlu0 %v705, 90
        %v708 = vpop.permute.xlu0 %707
        %709 = vrot.lane.b32.xlu0 %v706, 90
        %v710 = vpop.permute.xlu0 %709
        %vm711 = vcmask 736256
        %v712 = vsel %vm711, %v708, %v710
        %v715 = vadd.f32 %v703, %v712
        %v716 = vadd.f32 %v704, %v710
        %v717 = vrot.slane %v629, 7
        %v718 = vrot.slane %v631, 7
        %719 = vrot.lane.b32.xlu0 %v717, 89
        %v720 = vpop.permute.xlu0 %719
        %721 = vrot.lane.b32.xlu0 %v718, 89
        %v722 = vpop.permute.xlu0 %721
        %vm723 = vcmask 728064
        %v724 = vsel %vm723, %v720, %v722
        %v727 = vadd.f32 %v715, %v724
        %v728 = vadd.f32 %v716, %v722
        %v729 = vld [vmem:[%s178 + $0x18] sm:$0xff]
        %v731 = vsel %vm224, %v729, 0
        %733 = vmatprep.subr.mxu0 %v208
        %734 = vmatpush1.msra.mxu0 %v207
        %735 = vmatprep.subr.mxu0 %v210
        %736 = vmatpush1.msra.mxu0 %v209
        %737 = vmatprep.subr.mxu0 %v212
        %738 = vmatpush1.msra.mxu0 %v211
        %739 = vmatprep.subr.mxu0 %v214
        %740 = vmatpush1.msra.mxu0 %v213
        %741 = vmatprep.subr.mxu0 %v216
        %742 = vmatpush1.msra.mxu0 %v215
        %743 = vmatprep.subr.mxu0 %v218
        %744 = vmatpush1.msra.mxu0 %v217
        %745 = vmatprep.subr.mxu0 %v220
        %746 = vmatpush1.msra.mxu0 %v219
        %747 = vmatprep.subr.mxu0 %v222
        %748 = vmatpush1.msra.mxu0 %v221
        %749 = vmatprep.subr.mxu0 0.0
        %750 = vmatpush1.msra.mxu0 0.0
        %751 = vmatprep.subr.mxu0 0.0
        %752 = vmatpush1.msra.mxu0 0.0
        %753 = vmatprep.subr.mxu0 0.0
        %754 = vmatpush1.msra.mxu0 0.0
        %755 = vmatprep.subr.mxu0 0.0
        %756 = vmatpush1.msra.mxu0 0.0
        %757 = vmatprep.subr.mxu0 0.0
        %758 = vmatpush1.msra.mxu0 0.0
        %759 = vmatprep.subr.mxu0 0.0
        %760 = vmatpush1.msra.mxu0 0.0
        %761 = vmatprep.subr.mxu0 0.0
        %762 = vmatpush1.msra.mxu0 0.0
        %763 = vmatprep.subr.mxu0 0.0
        %764 = vmatpush1.msra.mxu0 0.0
        %765 = vmatprep.subr.mxu0 0.0
        %766 = vmatpush1.msra.mxu0 0.0
        %767 = vmatprep.subr.mxu0 0.0
        %768 = vmatpush1.msra.mxu0 0.0
        %769 = vmatprep.subr.mxu0 0.0
        %770 = vmatpush1.msra.mxu0 0.0
        %771 = vmatprep.subr.mxu0 0.0
        %772 = vmatpush1.msra.mxu0 0.0
        %773 = vmatprep.subr.mxu0 0.0
        %774 = vmatpush1.msra.mxu0 0.0
        %775 = vmatprep.subr.mxu0 0.0
        %776 = vmatpush1.msra.mxu0 0.0
        %777 = vmatprep.subr.mxu0 0.0
        %778 = vmatpush1.msra.mxu0 0.0
        %779 = vmatprep.subr.mxu0 0.0
        %780 = vmatpush1.msra.mxu0 0.0
        %781 = vmatprep.subr.mxu0 0.0
        %782 = vmatpush1.msra.mxu0 0.0
        %783 = vmatprep.subr.mxu0 0.0
        %784 = vmatpush1.msra.mxu0 0.0
        %785 = vmatprep.subr.mxu0 0.0
        %786 = vmatpush1.msra.mxu0 0.0
        %787 = vmatprep.subr.mxu0 0.0
        %788 = vmatpush1.msra.mxu0 0.0
        %789 = vmatprep.subr.mxu0 0.0
        %790 = vmatpush1.msra.mxu0 0.0
        %791 = vmatprep.subr.mxu0 0.0
        %792 = vmatpush1.msra.mxu0 0.0
        %793 = vmatprep.subr.mxu0 0.0
        %794 = vmatpush1.msra.mxu0 0.0
        %795 = vmatprep.subr.mxu0 0.0
        %796 = vmatpush1.msra.mxu0 0.0
        %797 = vmatprep.mubr.f32.mxu0 0.0
        %798 = vmatmul.mubr.f32.gmra.mrb[0].mxu0 %v731
        %v799 = vpop.f32.mrb[0].mxu0
        %v800 = vadd.f32 0.0, %v799
        %v801 = vpop.f32.mrb[0].mxu0
        %v802 = vadd.f32 0.0, %v801
        %803 = vdwg.mxu0
        %806 = vrot.lane.b32.xlu0 %v800, 80
        %v807 = vpop.permute.xlu0 %806
        %808 = vrot.lane.b32.xlu0 %v802, 80
        %v809 = vpop.permute.xlu0 %808
        %vm810 = vcmask 654336
        %v811 = vsel %vm810, %v807, %v809
        %v814 = vadd.f32 %v727, %v811
        %v815 = vadd.f32 %v728, %v809
        %v816 = vrot.slane %v800, 1
        %v817 = vrot.slane %v802, 1
        %818 = vrot.lane.b32.xlu0 %v816, 79
        %v819 = vpop.permute.xlu0 %818
        %820 = vrot.lane.b32.xlu0 %v817, 79
        %v821 = vpop.permute.xlu0 %820
        %vm822 = vcmask 646144
        %v823 = vsel %vm822, %v819, %v821
        %v826 = vadd.f32 %v814, %v823
        %v827 = vadd.f32 %v815, %v821
        %v828 = vrot.slane %v800, 2
        %v829 = vrot.slane %v802, 2
        %830 = vrot.lane.b32.xlu0 %v828, 78
        %v831 = vpop.permute.xlu0 %830
        %832 = vrot.lane.b32.xlu0 %v829, 78
        %v833 = vpop.permute.xlu0 %832
        %vm834 = vcmask 637952
        %v835 = vsel %vm834, %v831, %v833
        %v838 = vadd.f32 %v826, %v835
        %v839 = vadd.f32 %v827, %v833
        %v840 = vrot.slane %v800, 3
        %v841 = vrot.slane %v802, 3
        %842 = vrot.lane.b32.xlu0 %v840, 77
        %v843 = vpop.permute.xlu0 %842
        %844 = vrot.lane.b32.xlu0 %v841, 77
        %v845 = vpop.permute.xlu0 %844
        %vm846 = vcmask 629760
        %v847 = vsel %vm846, %v843, %v845
        %v850 = vadd.f32 %v838, %v847
        %v851 = vadd.f32 %v839, %v845
        %v852 = vrot.slane %v800, 4
        %v853 = vrot.slane %v802, 4
        %854 = vrot.lane.b32.xlu0 %v852, 76
        %v855 = vpop.permute.xlu0 %854
        %856 = vrot.lane.b32.xlu0 %v853, 76
        %v857 = vpop.permute.xlu0 %856
        %vm858 = vcmask 621568
        %v859 = vsel %vm858, %v855, %v857
        %v862 = vadd.f32 %v850, %v859
        %v863 = vadd.f32 %v851, %v857
        %v864 = vrot.slane %v800, 5
        %v865 = vrot.slane %v802, 5
        %866 = vrot.lane.b32.xlu0 %v864, 75
        %v867 = vpop.permute.xlu0 %866
        %868 = vrot.lane.b32.xlu0 %v865, 75
        %v869 = vpop.permute.xlu0 %868
        %vm870 = vcmask 613376
        %v871 = vsel %vm870, %v867, %v869
        %v874 = vadd.f32 %v862, %v871
        %v875 = vadd.f32 %v863, %v869
        %v876 = vrot.slane %v800, 6
        %v877 = vrot.slane %v802, 6
        %878 = vrot.lane.b32.xlu0 %v876, 74
        %v879 = vpop.permute.xlu0 %878
        %880 = vrot.lane.b32.xlu0 %v877, 74
        %v881 = vpop.permute.xlu0 %880
        %vm882 = vcmask 605184
        %v883 = vsel %vm882, %v879, %v881
        %v886 = vadd.f32 %v874, %v883
        %v887 = vadd.f32 %v875, %v881
        %v888 = vrot.slane %v800, 7
        %v889 = vrot.slane %v802, 7
        %890 = vrot.lane.b32.xlu0 %v888, 73
        %v891 = vpop.permute.xlu0 %890
        %892 = vrot.lane.b32.xlu0 %v889, 73
        %v893 = vpop.permute.xlu0 %892
        %vm894 = vcmask 596992
        %v895 = vsel %vm894, %v891, %v893
        %v898 = vadd.f32 %v886, %v895
        %v899 = vadd.f32 %v887, %v893
        %v900 = vld [vmem:[%s178 + $0x20] sm:$0xff]
        %v902 = vsel %vm224, %v900, 0
        %904 = vmatprep.subr.mxu0 %v208
        %905 = vmatpush1.msra.mxu0 %v207
        %906 = vmatprep.subr.mxu0 %v210
        %907 = vmatpush1.msra.mxu0 %v209
        %908 = vmatprep.subr.mxu0 %v212
        %909 = vmatpush1.msra.mxu0 %v211
        %910 = vmatprep.subr.mxu0 %v214
        %911 = vmatpush1.msra.mxu0 %v213
        %912 = vmatprep.subr.mxu0 %v216
        %913 = vmatpush1.msra.mxu0 %v215
        %914 = vmatprep.subr.mxu0 %v218
        %915 = vmatpush1.msra.mxu0 %v217
        %916 = vmatprep.subr.mxu0 %v220
        %917 = vmatpush1.msra.mxu0 %v219
        %918 = vmatprep.subr.mxu0 %v222
        %919 = vmatpush1.msra.mxu0 %v221
        %920 = vmatprep.subr.mxu0 0.0
        %921 = vmatpush1.msra.mxu0 0.0
        %922 = vmatprep.subr.mxu0 0.0
        %923 = vmatpush1.msra.mxu0 0.0
        %924 = vmatprep.subr.mxu0 0.0
        %925 = vmatpush1.msra.mxu0 0.0
        %926 = vmatprep.subr.mxu0 0.0
        %927 = vmatpush1.msra.mxu0 0.0
        %928 = vmatprep.subr.mxu0 0.0
        %929 = vmatpush1.msra.mxu0 0.0
        %930 = vmatprep.subr.mxu0 0.0
        %931 = vmatpush1.msra.mxu0 0.0
        %932 = vmatprep.subr.mxu0 0.0
        %933 = vmatpush1.msra.mxu0 0.0
        %934 = vmatprep.subr.mxu0 0.0
        %935 = vmatpush1.msra.mxu0 0.0
        %936 = vmatprep.subr.mxu0 0.0
        %937 = vmatpush1.msra.mxu0 0.0
        %938 = vmatprep.subr.mxu0 0.0
        %939 = vmatpush1.msra.mxu0 0.0
        %940 = vmatprep.subr.mxu0 0.0
        %941 = vmatpush1.msra.mxu0 0.0
        %942 = vmatprep.subr.mxu0 0.0
        %943 = vmatpush1.msra.mxu0 0.0
        %944 = vmatprep.subr.mxu0 0.0
        %945 = vmatpush1.msra.mxu0 0.0
        %946 = vmatprep.subr.mxu0 0.0
        %947 = vmatpush1.msra.mxu0 0.0
        %948 = vmatprep.subr.mxu0 0.0
        %949 = vmatpush1.msra.mxu0 0.0
        %950 = vmatprep.subr.mxu0 0.0
        %951 = vmatpush1.msra.mxu0 0.0
        %952 = vmatprep.subr.mxu0 0.0
        %953 = vmatpush1.msra.mxu0 0.0
        %954 = vmatprep.subr.mxu0 0.0
        %955 = vmatpush1.msra.mxu0 0.0
        %956 = vmatprep.subr.mxu0 0.0
        %957 = vmatpush1.msra.mxu0 0.0
        %958 = vmatprep.subr.mxu0 0.0
        %959 = vmatpush1.msra.mxu0 0.0
        %960 = vmatprep.subr.mxu0 0.0
        %961 = vmatpush1.msra.mxu0 0.0
        %962 = vmatprep.subr.mxu0 0.0
        %963 = vmatpush1.msra.mxu0 0.0
        %964 = vmatprep.subr.mxu0 0.0
        %965 = vmatpush1.msra.mxu0 0.0
        %966 = vmatprep.subr.mxu0 0.0
        %967 = vmatpush1.msra.mxu0 0.0
        %968 = vmatprep.mubr.f32.mxu0 0.0
        %969 = vmatmul.mubr.f32.gmra.mrb[0].mxu0 %v902
        %v970 = vpop.f32.mrb[0].mxu0
        %v971 = vadd.f32 0.0, %v970
        %v972 = vpop.f32.mrb[0].mxu0
        %v973 = vadd.f32 0.0, %v972
        %974 = vdwg.mxu0
        %977 = vrot.lane.b32.xlu0 %v971, 64
        %v978 = vpop.permute.xlu0 %977
        %979 = vrot.lane.b32.xlu0 %v973, 64
        %v980 = vpop.permute.xlu0 %979
        %v981 = vsel %vm224, %v978, %v980
        %v984 = vadd.f32 %v898, %v981
        %v985 = vadd.f32 %v899, %v980
        %v986 = vrot.slane %v971, 1
        %v987 = vrot.slane %v973, 1
        %988 = vrot.lane.b32.xlu0 %v986, 63
        %v989 = vpop.permute.xlu0 %988
        %990 = vrot.lane.b32.xlu0 %v987, 63
        %v991 = vpop.permute.xlu0 %990
        %vm992 = vcmask 515072
        %v993 = vsel %vm992, %v989, %v991
        %v996 = vadd.f32 %v984, %v993
        %v997 = vadd.f32 %v985, %v991
        %v998 = vrot.slane %v971, 2
        %v999 = vrot.slane %v973, 2
        %1000 = vrot.lane.b32.xlu0 %v998, 62
        %v1001 = vpop.permute.xlu0 %1000
        %1002 = vrot.lane.b32.xlu0 %v999, 62
        %v1003 = vpop.permute.xlu0 %1002
        %vm1004 = vcmask 506880
        %v1005 = vsel %vm1004, %v1001, %v1003
        %v1008 = vadd.f32 %v996, %v1005
        %v1009 = vadd.f32 %v997, %v1003
        %v1010 = vrot.slane %v971, 3
        %v1011 = vrot.slane %v973, 3
        %1012 = vrot.lane.b32.xlu0 %v1010, 61
        %v1013 = vpop.permute.xlu0 %1012
        %1014 = vrot.lane.b32.xlu0 %v1011, 61
        %v1015 = vpop.permute.xlu0 %1014
        %vm1016 = vcmask 498688
        %v1017 = vsel %vm1016, %v1013, %v1015
        %v1020 = vadd.f32 %v1008, %v1017
        %v1021 = vadd.f32 %v1009, %v1015
        %v1022 = vrot.slane %v971, 4
        %v1023 = vrot.slane %v973, 4
        %1024 = vrot.lane.b32.xlu0 %v1022, 60
        %v1025 = vpop.permute.xlu0 %1024
        %1026 = vrot.lane.b32.xlu0 %v1023, 60
        %v1027 = vpop.permute.xlu0 %1026
        %vm1028 = vcmask 490496
        %v1029 = vsel %vm1028, %v1025, %v1027
        %v1032 = vadd.f32 %v1020, %v1029
        %v1033 = vadd.f32 %v1021, %v1027
        %v1034 = vrot.slane %v971, 5
        %v1035 = vrot.slane %v973, 5
        %1036 = vrot.lane.b32.xlu0 %v1034, 59
        %v1037 = vpop.permute.xlu0 %1036
        %1038 = vrot.lane.b32.xlu0 %v1035, 59
        %v1039 = vpop.permute.xlu0 %1038
        %vm1040 = vcmask 482304
        %v1041 = vsel %vm1040, %v1037, %v1039
        %v1044 = vadd.f32 %v1032, %v1041
        %v1045 = vadd.f32 %v1033, %v1039
        %v1046 = vrot.slane %v971, 6
        %v1047 = vrot.slane %v973, 6
        %1048 = vrot.lane.b32.xlu0 %v1046, 58
        %v1049 = vpop.permute.xlu0 %1048
        %1050 = vrot.lane.b32.xlu0 %v1047, 58
        %v1051 = vpop.permute.xlu0 %1050
        %vm1052 = vcmask 474112
        %v1053 = vsel %vm1052, %v1049, %v1051
        %v1056 = vadd.f32 %v1044, %v1053
        %v1057 = vadd.f32 %v1045, %v1051
        %v1058 = vrot.slane %v971, 7
        %v1059 = vrot.slane %v973, 7
        %1060 = vrot.lane.b32.xlu0 %v1058, 57
        %v1061 = vpop.permute.xlu0 %1060
        %1062 = vrot.lane.b32.xlu0 %v1059, 57
        %v1063 = vpop.permute.xlu0 %1062
        %vm1064 = vcmask 465920
        %v1065 = vsel %vm1064, %v1061, %v1063
        %v1068 = vadd.f32 %v1056, %v1065
        %v1069 = vadd.f32 %v1057, %v1063
        %v1070 = vld [vmem:[%s178 + $0x28] sm:$0xff]
        %v1072 = vsel %vm224, %v1070, 0
        %1074 = vmatprep.subr.mxu0 %v208
        %1075 = vmatpush1.msra.mxu0 %v207
        %1076 = vmatprep.subr.mxu0 %v210
        %1077 = vmatpush1.msra.mxu0 %v209
        %1078 = vmatprep.subr.mxu0 %v212
        %1079 = vmatpush1.msra.mxu0 %v211
        %1080 = vmatprep.subr.mxu0 %v214
        %1081 = vmatpush1.msra.mxu0 %v213
        %1082 = vmatprep.subr.mxu0 %v216
        %1083 = vmatpush1.msra.mxu0 %v215
        %1084 = vmatprep.subr.mxu0 %v218
        %1085 = vmatpush1.msra.mxu0 %v217
        %1086 = vmatprep.subr.mxu0 %v220
        %1087 = vmatpush1.msra.mxu0 %v219
        %1088 = vmatprep.subr.mxu0 %v222
        %1089 = vmatpush1.msra.mxu0 %v221
        %1090 = vmatprep.subr.mxu0 0.0
        %1091 = vmatpush1.msra.mxu0 0.0
        %1092 = vmatprep.subr.mxu0 0.0
        %1093 = vmatpush1.msra.mxu0 0.0
        %1094 = vmatprep.subr.mxu0 0.0
        %1095 = vmatpush1.msra.mxu0 0.0
        %1096 = vmatprep.subr.mxu0 0.0
        %1097 = vmatpush1.msra.mxu0 0.0
        %1098 = vmatprep.subr.mxu0 0.0
        %1099 = vmatpush1.msra.mxu0 0.0
        %1100 = vmatprep.subr.mxu0 0.0
        %1101 = vmatpush1.msra.mxu0 0.0
        %1102 = vmatprep.subr.mxu0 0.0
        %1103 = vmatpush1.msra.mxu0 0.0
        %1104 = vmatprep.subr.mxu0 0.0
        %1105 = vmatpush1.msra.mxu0 0.0
        %1106 = vmatprep.subr.mxu0 0.0
        %1107 = vmatpush1.msra.mxu0 0.0
        %1108 = vmatprep.subr.mxu0 0.0
        %1109 = vmatpush1.msra.mxu0 0.0
        %1110 = vmatprep.subr.mxu0 0.0
        %1111 = vmatpush1.msra.mxu0 0.0
        %1112 = vmatprep.subr.mxu0 0.0
        %1113 = vmatpush1.msra.mxu0 0.0
        %1114 = vmatprep.subr.mxu0 0.0
        %1115 = vmatpush1.msra.mxu0 0.0
        %1116 = vmatprep.subr.mxu0 0.0
        %1117 = vmatpush1.msra.mxu0 0.0
        %1118 = vmatprep.subr.mxu0 0.0
        %1119 = vmatpush1.msra.mxu0 0.0
        %1120 = vmatprep.subr.mxu0 0.0
        %1121 = vmatpush1.msra.mxu0 0.0
        %1122 = vmatprep.subr.mxu0 0.0
        %1123 = vmatpush1.msra.mxu0 0.0
        %1124 = vmatprep.subr.mxu0 0.0
        %1125 = vmatpush1.msra.mxu0 0.0
        %1126 = vmatprep.subr.mxu0 0.0
        %1127 = vmatpush1.msra.mxu0 0.0
        %1128 = vmatprep.subr.mxu0 0.0
        %1129 = vmatpush1.msra.mxu0 0.0
        %1130 = vmatprep.subr.mxu0 0.0
        %1131 = vmatpush1.msra.mxu0 0.0
        %1132 = vmatprep.subr.mxu0 0.0
        %1133 = vmatpush1.msra.mxu0 0.0
        %1134 = vmatprep.subr.mxu0 0.0
        %1135 = vmatpush1.msra.mxu0 0.0
        %1136 = vmatprep.subr.mxu0 0.0
        %1137 = vmatpush1.msra.mxu0 0.0
        %1138 = vmatprep.mubr.f32.mxu0 0.0
        %1139 = vmatmul.mubr.f32.gmra.mrb[0].mxu0 %v1072
        %v1140 = vpop.f32.mrb[0].mxu0
        %v1141 = vadd.f32 0.0, %v1140
        %v1142 = vpop.f32.mrb[0].mxu0
        %v1143 = vadd.f32 0.0, %v1142
        %1144 = vdwg.mxu0
        %1147 = vrot.lane.b32.xlu0 %v1141, 48
        %v1148 = vpop.permute.xlu0 %1147
        %1149 = vrot.lane.b32.xlu0 %v1143, 48
        %v1150 = vpop.permute.xlu0 %1149
        %vm1151 = vcmask 392192
        %v1152 = vsel %vm1151, %v1148, %v1150
        %v1155 = vadd.f32 %v1068, %v1152
        %v1156 = vadd.f32 %v1069, %v1150
        %v1157 = vrot.slane %v1141, 1
        %v1158 = vrot.slane %v1143, 1
        %1159 = vrot.lane.b32.xlu0 %v1157, 47
        %v1160 = vpop.permute.xlu0 %1159
        %1161 = vrot.lane.b32.xlu0 %v1158, 47
        %v1162 = vpop.permute.xlu0 %1161
        %vm1163 = vcmask 384000
        %v1164 = vsel %vm1163, %v1160, %v1162
        %v1167 = vadd.f32 %v1155, %v1164
        %v1168 = vadd.f32 %v1156, %v1162
        %v1169 = vrot.slane %v1141, 2
        %v1170 = vrot.slane %v1143, 2
        %1171 = vrot.lane.b32.xlu0 %v1169, 46
        %v1172 = vpop.permute.xlu0 %1171
        %1173 = vrot.lane.b32.xlu0 %v1170, 46
        %v1174 = vpop.permute.xlu0 %1173
        %vm1175 = vcmask 375808
        %v1176 = vsel %vm1175, %v1172, %v1174
        %v1179 = vadd.f32 %v1167, %v1176
        %v1180 = vadd.f32 %v1168, %v1174
        %v1181 = vrot.slane %v1141, 3
        %v1182 = vrot.slane %v1143, 3
        %1183 = vrot.lane.b32.xlu0 %v1181, 45
        %v1184 = vpop.permute.xlu0 %1183
        %1185 = vrot.lane.b32.xlu0 %v1182, 45
        %v1186 = vpop.permute.xlu0 %1185
        %vm1187 = vcmask 367616
        %v1188 = vsel %vm1187, %v1184, %v1186
        %v1191 = vadd.f32 %v1179, %v1188
        %v1192 = vadd.f32 %v1180, %v1186
        %v1193 = vrot.slane %v1141, 4
        %v1194 = vrot.slane %v1143, 4
        %1195 = vrot.lane.b32.xlu0 %v1193, 44
        %v1196 = vpop.permute.xlu0 %1195
        %1197 = vrot.lane.b32.xlu0 %v1194, 44
        %v1198 = vpop.permute.xlu0 %1197
        %vm1199 = vcmask 359424
        %v1200 = vsel %vm1199, %v1196, %v1198
        %v1203 = vadd.f32 %v1191, %v1200
        %v1204 = vadd.f32 %v1192, %v1198
        %v1205 = vrot.slane %v1141, 5
        %v1206 = vrot.slane %v1143, 5
        %1207 = vrot.lane.b32.xlu0 %v1205, 43
        %v1208 = vpop.permute.xlu0 %1207
        %1209 = vrot.lane.b32.xlu0 %v1206, 43
        %v1210 = vpop.permute.xlu0 %1209
        %vm1211 = vcmask 351232
        %v1212 = vsel %vm1211, %v1208, %v1210
        %v1215 = vadd.f32 %v1203, %v1212
        %v1216 = vadd.f32 %v1204, %v1210
        %v1217 = vrot.slane %v1141, 6
        %v1218 = vrot.slane %v1143, 6
        %1219 = vrot.lane.b32.xlu0 %v1217, 42
        %v1220 = vpop.permute.xlu0 %1219
        %1221 = vrot.lane.b32.xlu0 %v1218, 42
        %v1222 = vpop.permute.xlu0 %1221
        %vm1223 = vcmask 343040
        %v1224 = vsel %vm1223, %v1220, %v1222
        %v1227 = vadd.f32 %v1215, %v1224
        %v1228 = vadd.f32 %v1216, %v1222
        %v1229 = vrot.slane %v1141, 7
        %v1230 = vrot.slane %v1143, 7
        %1231 = vrot.lane.b32.xlu0 %v1229, 41
        %v1232 = vpop.permute.xlu0 %1231
        %1233 = vrot.lane.b32.xlu0 %v1230, 41
        %v1234 = vpop.permute.xlu0 %1233
        %vm1235 = vcmask 334848
        %v1236 = vsel %vm1235, %v1232, %v1234
        %v1239 = vadd.f32 %v1227, %v1236
        %v1240 = vadd.f32 %v1228, %v1234
        %v1241 = vld [vmem:[%s178 + $0x30] sm:$0xff]
        %v1243 = vsel %vm224, %v1241, 0
        %1245 = vmatprep.subr.mxu0 %v208
        %1246 = vmatpush1.msra.mxu0 %v207
        %1247 = vmatprep.subr.mxu0 %v210
        %1248 = vmatpush1.msra.mxu0 %v209
        %1249 = vmatprep.subr.mxu0 %v212
        %1250 = vmatpush1.msra.mxu0 %v211
        %1251 = vmatprep.subr.mxu0 %v214
        %1252 = vmatpush1.msra.mxu0 %v213
        %1253 = vmatprep.subr.mxu0 %v216
        %1254 = vmatpush1.msra.mxu0 %v215
        %1255 = vmatprep.subr.mxu0 %v218
        %1256 = vmatpush1.msra.mxu0 %v217
        %1257 = vmatprep.subr.mxu0 %v220
        %1258 = vmatpush1.msra.mxu0 %v219
        %1259 = vmatprep.subr.mxu0 %v222
        %1260 = vmatpush1.msra.mxu0 %v221
        %1261 = vmatprep.subr.mxu0 0.0
        %1262 = vmatpush1.msra.mxu0 0.0
        %1263 = vmatprep.subr.mxu0 0.0
        %1264 = vmatpush1.msra.mxu0 0.0
        %1265 = vmatprep.subr.mxu0 0.0
        %1266 = vmatpush1.msra.mxu0 0.0
        %1267 = vmatprep.subr.mxu0 0.0
        %1268 = vmatpush1.msra.mxu0 0.0
        %1269 = vmatprep.subr.mxu0 0.0
        %1270 = vmatpush1.msra.mxu0 0.0
        %1271 = vmatprep.subr.mxu0 0.0
        %1272 = vmatpush1.msra.mxu0 0.0
        %1273 = vmatprep.subr.mxu0 0.0
        %1274 = vmatpush1.msra.mxu0 0.0
        %1275 = vmatprep.subr.mxu0 0.0
        %1276 = vmatpush1.msra.mxu0 0.0
        %1277 = vmatprep.subr.mxu0 0.0
        %1278 = vmatpush1.msra.mxu0 0.0
        %1279 = vmatprep.subr.mxu0 0.0
        %1280 = vmatpush1.msra.mxu0 0.0
        %1281 = vmatprep.subr.mxu0 0.0
        %1282 = vmatpush1.msra.mxu0 0.0
        %1283 = vmatprep.subr.mxu0 0.0
        %1284 = vmatpush1.msra.mxu0 0.0
        %1285 = vmatprep.subr.mxu0 0.0
        %1286 = vmatpush1.msra.mxu0 0.0
        %1287 = vmatprep.subr.mxu0 0.0
        %1288 = vmatpush1.msra.mxu0 0.0
        %1289 = vmatprep.subr.mxu0 0.0
        %1290 = vmatpush1.msra.mxu0 0.0
        %1291 = vmatprep.subr.mxu0 0.0
        %1292 = vmatpush1.msra.mxu0 0.0
        %1293 = vmatprep.subr.mxu0 0.0
        %1294 = vmatpush1.msra.mxu0 0.0
        %1295 = vmatprep.subr.mxu0 0.0
        %1296 = vmatpush1.msra.mxu0 0.0
        %1297 = vmatprep.subr.mxu0 0.0
        %1298 = vmatpush1.msra.mxu0 0.0
        %1299 = vmatprep.subr.mxu0 0.0
        %1300 = vmatpush1.msra.mxu0 0.0
        %1301 = vmatprep.subr.mxu0 0.0
        %1302 = vmatpush1.msra.mxu0 0.0
        %1303 = vmatprep.subr.mxu0 0.0
        %1304 = vmatpush1.msra.mxu0 0.0
        %1305 = vmatprep.subr.mxu0 0.0
        %1306 = vmatpush1.msra.mxu0 0.0
        %1307 = vmatprep.subr.mxu0 0.0
        %1308 = vmatpush1.msra.mxu0 0.0
        %1309 = vmatprep.mubr.f32.mxu0 0.0
        %1310 = vmatmul.mubr.f32.gmra.mrb[0].mxu0 %v1243
        %v1311 = vpop.f32.mrb[0].mxu0
        %v1312 = vadd.f32 0.0, %v1311
        %v1313 = vpop.f32.mrb[0].mxu0
        %v1314 = vadd.f32 0.0, %v1313
        %1315 = vdwg.mxu0
        %1318 = vrot.lane.b32.xlu0 %v1312, 32
        %v1319 = vpop.permute.xlu0 %1318
        %1320 = vrot.lane.b32.xlu0 %v1314, 32
        %v1321 = vpop.permute.xlu0 %1320
        %vm1322 = vcmask 261120
        %v1323 = vsel %vm1322, %v1319, %v1321
        %v1326 = vadd.f32 %v1239, %v1323
        %v1327 = vadd.f32 %v1240, %v1321
        %v1328 = vrot.slane %v1312, 1
        %v1329 = vrot.slane %v1314, 1
        %1330 = vrot.lane.b32.xlu0 %v1328, 31
        %v1331 = vpop.permute.xlu0 %1330
        %1332 = vrot.lane.b32.xlu0 %v1329, 31
        %v1333 = vpop.permute.xlu0 %1332
        %vm1334 = vcmask 252928
        %v1335 = vsel %vm1334, %v1331, %v1333
        %v1338 = vadd.f32 %v1326, %v1335
        %v1339 = vadd.f32 %v1327, %v1333
        %v1340 = vrot.slane %v1312, 2
        %v1341 = vrot.slane %v1314, 2
        %1342 = vrot.lane.b32.xlu0 %v1340, 30
        %v1343 = vpop.permute.xlu0 %1342
        %1344 = vrot.lane.b32.xlu0 %v1341, 30
        %v1345 = vpop.permute.xlu0 %1344
        %vm1346 = vcmask 244736
        %v1347 = vsel %vm1346, %v1343, %v1345
        %v1350 = vadd.f32 %v1338, %v1347
        %v1351 = vadd.f32 %v1339, %v1345
        %v1352 = vrot.slane %v1312, 3
        %v1353 = vrot.slane %v1314, 3
        %1354 = vrot.lane.b32.xlu0 %v1352, 29
        %v1355 = vpop.permute.xlu0 %1354
        %1356 = vrot.lane.b32.xlu0 %v1353, 29
        %v1357 = vpop.permute.xlu0 %1356
        %vm1358 = vcmask 236544
        %v1359 = vsel %vm1358, %v1355, %v1357
        %v1362 = vadd.f32 %v1350, %v1359
        %v1363 = vadd.f32 %v1351, %v1357
        %v1364 = vrot.slane %v1312, 4
        %v1365 = vrot.slane %v1314, 4
        %1366 = vrot.lane.b32.xlu0 %v1364, 28
        %v1367 = vpop.permute.xlu0 %1366
        %1368 = vrot.lane.b32.xlu0 %v1365, 28
        %v1369 = vpop.permute.xlu0 %1368
        %vm1370 = vcmask 228352
        %v1371 = vsel %vm1370, %v1367, %v1369
        %v1374 = vadd.f32 %v1362, %v1371
        %v1375 = vadd.f32 %v1363, %v1369
        %v1376 = vrot.slane %v1312, 5
        %v1377 = vrot.slane %v1314, 5
        %1378 = vrot.lane.b32.xlu0 %v1376, 27
        %v1379 = vpop.permute.xlu0 %1378
        %1380 = vrot.lane.b32.xlu0 %v1377, 27
        %v1381 = vpop.permute.xlu0 %1380
        %vm1382 = vcmask 220160
        %v1383 = vsel %vm1382, %v1379, %v1381
        %v1386 = vadd.f32 %v1374, %v1383
        %v1387 = vadd.f32 %v1375, %v1381
        %v1388 = vrot.slane %v1312, 6
        %v1389 = vrot.slane %v1314, 6
        %1390 = vrot.lane.b32.xlu0 %v1388, 26
        %v1391 = vpop.permute.xlu0 %1390
        %1392 = vrot.lane.b32.xlu0 %v1389, 26
        %v1393 = vpop.permute.xlu0 %1392
        %vm1394 = vcmask 211968
        %v1395 = vsel %vm1394, %v1391, %v1393
        %v1398 = vadd.f32 %v1386, %v1395
        %v1399 = vadd.f32 %v1387, %v1393
        %v1400 = vrot.slane %v1312, 7
        %v1401 = vrot.slane %v1314, 7
        %1402 = vrot.lane.b32.xlu0 %v1400, 25
        %v1403 = vpop.permute.xlu0 %1402
        %1404 = vrot.lane.b32.xlu0 %v1401, 25
        %v1405 = vpop.permute.xlu0 %1404
        %vm1406 = vcmask 203776
        %v1407 = vsel %vm1406, %v1403, %v1405
        %v1410 = vadd.f32 %v1398, %v1407
        %v1411 = vadd.f32 %v1399, %v1405
        %v1412 = vld [vmem:[%s178 + $0x38] sm:$0xff]
        %v1414 = vsel %vm224, %v1412, 0
        %1416 = vmatprep.subr.mxu0 %v208
        %1417 = vmatpush1.msra.mxu0 %v207
        %1418 = vmatprep.subr.mxu0 %v210
        %1419 = vmatpush1.msra.mxu0 %v209
        %1420 = vmatprep.subr.mxu0 %v212
        %1421 = vmatpush1.msra.mxu0 %v211
        %1422 = vmatprep.subr.mxu0 %v214
        %1423 = vmatpush1.msra.mxu0 %v213
        %1424 = vmatprep.subr.mxu0 %v216
        %1425 = vmatpush1.msra.mxu0 %v215
        %1426 = vmatprep.subr.mxu0 %v218
        %1427 = vmatpush1.msra.mxu0 %v217
        %1428 = vmatprep.subr.mxu0 %v220
        %1429 = vmatpush1.msra.mxu0 %v219
        %1430 = vmatprep.subr.mxu0 %v222
        %1431 = vmatpush1.msra.mxu0 %v221
        %1432 = vmatprep.subr.mxu0 0.0
        %1433 = vmatpush1.msra.mxu0 0.0
        %1434 = vmatprep.subr.mxu0 0.0
        %1435 = vmatpush1.msra.mxu0 0.0
        %1436 = vmatprep.subr.mxu0 0.0
        %1437 = vmatpush1.msra.mxu0 0.0
        %1438 = vmatprep.subr.mxu0 0.0
        %1439 = vmatpush1.msra.mxu0 0.0
        %1440 = vmatprep.subr.mxu0 0.0
        %1441 = vmatpush1.msra.mxu0 0.0
        %1442 = vmatprep.subr.mxu0 0.0
        %1443 = vmatpush1.msra.mxu0 0.0
        %1444 = vmatprep.subr.mxu0 0.0
        %1445 = vmatpush1.msra.mxu0 0.0
        %1446 = vmatprep.subr.mxu0 0.0
        %1447 = vmatpush1.msra.mxu0 0.0
        %1448 = vmatprep.subr.mxu0 0.0
        %1449 = vmatpush1.msra.mxu0 0.0
        %1450 = vmatprep.subr.mxu0 0.0
        %1451 = vmatpush1.msra.mxu0 0.0
        %1452 = vmatprep.subr.mxu0 0.0
        %1453 = vmatpush1.msra.mxu0 0.0
        %1454 = vmatprep.subr.mxu0 0.0
        %1455 = vmatpush1.msra.mxu0 0.0
        %1456 = vmatprep.subr.mxu0 0.0
        %1457 = vmatpush1.msra.mxu0 0.0
        %1458 = vmatprep.subr.mxu0 0.0
        %1459 = vmatpush1.msra.mxu0 0.0
        %1460 = vmatprep.subr.mxu0 0.0
        %1461 = vmatpush1.msra.mxu0 0.0
        %1462 = vmatprep.subr.mxu0 0.0
        %1463 = vmatpush1.msra.mxu0 0.0
        %1464 = vmatprep.subr.mxu0 0.0
        %1465 = vmatpush1.msra.mxu0 0.0
        %1466 = vmatprep.subr.mxu0 0.0
        %1467 = vmatpush1.msra.mxu0 0.0
        %1468 = vmatprep.subr.mxu0 0.0
        %1469 = vmatpush1.msra.mxu0 0.0
        %1470 = vmatprep.subr.mxu0 0.0
        %1471 = vmatpush1.msra.mxu0 0.0
        %1472 = vmatprep.subr.mxu0 0.0
        %1473 = vmatpush1.msra.mxu0 0.0
        %1474 = vmatprep.subr.mxu0 0.0
        %1475 = vmatpush1.msra.mxu0 0.0
        %1476 = vmatprep.subr.mxu0 0.0
        %1477 = vmatpush1.msra.mxu0 0.0
        %1478 = vmatprep.subr.mxu0 0.0
        %1479 = vmatpush1.msra.mxu0 0.0
        %1480 = vmatprep.mubr.f32.mxu0 0.0
        %1481 = vmatmul.mubr.f32.gmra.mrb[0].mxu0 %v1414
        %v1482 = vpop.f32.mrb[0].mxu0
        %v1483 = vadd.f32 0.0, %v1482
        %v1484 = vpop.f32.mrb[0].mxu0
        %v1485 = vadd.f32 0.0, %v1484
        %1486 = vdwg.mxu0
        %1489 = vrot.lane.b32.xlu0 %v1483, 16
        %v1490 = vpop.permute.xlu0 %1489
        %1491 = vrot.lane.b32.xlu0 %v1485, 16
        %v1492 = vpop.permute.xlu0 %1491
        %vm1493 = vcmask 130048
        %v1494 = vsel %vm1493, %v1490, %v1492
        %v1497 = vadd.f32 %v1410, %v1494
        %v1498 = vadd.f32 %v1411, %v1492
        %v1499 = vrot.slane %v1483, 1
        %v1500 = vrot.slane %v1485, 1
        %1501 = vrot.lane.b32.xlu0 %v1499, 15
        %v1502 = vpop.permute.xlu0 %1501
        %1503 = vrot.lane.b32.xlu0 %v1500, 15
        %v1504 = vpop.permute.xlu0 %1503
        %vm1505 = vcmask 121856
        %v1506 = vsel %vm1505, %v1502, %v1504
        %v1509 = vadd.f32 %v1497, %v1506
        %v1510 = vadd.f32 %v1498, %v1504
        %v1511 = vrot.slane %v1483, 2
        %v1512 = vrot.slane %v1485, 2
        %1513 = vrot.lane.b32.xlu0 %v1511, 14
        %v1514 = vpop.permute.xlu0 %1513
        %1515 = vrot.lane.b32.xlu0 %v1512, 14
        %v1516 = vpop.permute.xlu0 %1515
        %vm1517 = vcmask 113664
        %v1518 = vsel %vm1517, %v1514, %v1516
        %v1521 = vadd.f32 %v1509, %v1518
        %v1522 = vadd.f32 %v1510, %v1516
        %v1523 = vrot.slane %v1483, 3
        %v1524 = vrot.slane %v1485, 3
        %1525 = vrot.lane.b32.xlu0 %v1523, 13
        %v1526 = vpop.permute.xlu0 %1525
        %1527 = vrot.lane.b32.xlu0 %v1524, 13
        %v1528 = vpop.permute.xlu0 %1527
        %vm1529 = vcmask 105472
        %v1530 = vsel %vm1529, %v1526, %v1528
        %v1533 = vadd.f32 %v1521, %v1530
        %v1534 = vadd.f32 %v1522, %v1528
        %v1535 = vrot.slane %v1483, 4
        %v1536 = vrot.slane %v1485, 4
        %1537 = vrot.lane.b32.xlu0 %v1535, 12
        %v1538 = vpop.permute.xlu0 %1537
        %1539 = vrot.lane.b32.xlu0 %v1536, 12
        %v1540 = vpop.permute.xlu0 %1539
        %vm1541 = vcmask 97280
        %v1542 = vsel %vm1541, %v1538, %v1540
        %v1545 = vadd.f32 %v1533, %v1542
        %v1546 = vadd.f32 %v1534, %v1540
        %v1547 = vrot.slane %v1483, 5
        %v1548 = vrot.slane %v1485, 5
        %1549 = vrot.lane.b32.xlu0 %v1547, 11
        %v1550 = vpop.permute.xlu0 %1549
        %1551 = vrot.lane.b32.xlu0 %v1548, 11
        %v1552 = vpop.permute.xlu0 %1551
        %vm1553 = vcmask 89088
        %v1554 = vsel %vm1553, %v1550, %v1552
        %v1557 = vadd.f32 %v1545, %v1554
        %v1558 = vadd.f32 %v1546, %v1552
        %v1559 = vrot.slane %v1483, 6
        %v1560 = vrot.slane %v1485, 6
        %1561 = vrot.lane.b32.xlu0 %v1559, 10
        %v1562 = vpop.permute.xlu0 %1561
        %1563 = vrot.lane.b32.xlu0 %v1560, 10
        %v1564 = vpop.permute.xlu0 %1563
        %vm1565 = vcmask 80896
        %v1566 = vsel %vm1565, %v1562, %v1564
        %v1569 = vadd.f32 %v1557, %v1566
        %v1570 = vadd.f32 %v1558, %v1564
        %v1571 = vrot.slane %v1483, 7
        %v1572 = vrot.slane %v1485, 7
        %1573 = vrot.lane.b32.xlu0 %v1571, 9
        %v1574 = vpop.permute.xlu0 %1573
        %1575 = vrot.lane.b32.xlu0 %v1572, 9
        %v1576 = vpop.permute.xlu0 %1575
        %vm1577 = vcmask 72704
        %v1578 = vsel %vm1577, %v1574, %v1576
        %v1581 = vadd.f32 %v1569, %v1578
        %v1582 = vadd.f32 %v1570, %v1576
        %v1583 = vmul.f32 %v1581, 0.1
        %v1584 = vmul.f32 %v1582, 0.1
        %v1587 = vcombine.low %v1583, %v1584
        %v1589 = vunpack.c.l.s4 1966171168
        %v1590 = vunpack.c.0.s8 %v1589
        %v1591 = vlaneseq
        %v1592 = vshrl.u32 %v1591, 7
        %v1593 = vsub.s32 %v1590, %v1592
        %v1594 = vrot.slane %v1587, %v1593
        %v1596 = vunpack.c.l.s4 1966171168
        %v1597 = vunpack.c.0.s8 %v1596
        %v1598 = vlaneseq
        %v1599 = vshrl.u32 %v1598, 7
        %v1600 = vsub.s32 %v1597, %v1599
        %v1601 = vrot.slane %v1594, %v1600
        %v1603 = vlaneseq
        %vm1604 = vcmp.ge.s32.totalorder %v1603, 0
        %vm1605 = vcmp.lt.s32.totalorder %v1603, 137
        %vm1606 = vmand %vm1604, %vm1605
        %1607 = vst.msk [vmem:[%s203] sm:$0x3] %vm1606, %v1601
        %s1608 = scalar_lea.vmem %s169, 128 [#allocation2]
        %v1609 = vld [vmem:[%s1608] sm:$0xff]
        %v1610 = vld [vmem:[%s1608 + $0x8] sm:$0xff]
        %v1611 = vld [vmem:[%s1608 + $0x10] sm:$0xff]
        %v1612 = vld [vmem:[%s1608 + $0x18] sm:$0xff]
        %v1613 = vld [vmem:[%s1608 + $0x20] sm:$0xff]
        %v1614 = vld [vmem:[%s1608 + $0x28] sm:$0xff]
        %v1615 = vld [vmem:[%s1608 + $0x30] sm:$0xff]
        %v1616 = vld [vmem:[%s1608 + $0x38] sm:$0xff]
        %v1617 = vld [vmem:[%s1608 + $0x40] sm:$0xff]
        %v1618 = vld [vmem:[%s1608 + $0x48] sm:$0xff]
        %v1619 = vld [vmem:[%s1608 + $0x50] sm:$0xff]
        %v1620 = vld [vmem:[%s1608 + $0x58] sm:$0xff]
        %v1621 = vld [vmem:[%s1608 + $0x60] sm:$0xff]
        %v1622 = vld [vmem:[%s1608 + $0x68] sm:$0xff]
        %v1623 = vld [vmem:[%s1608 + $0x70] sm:$0xff]
        %v1624 = vld [vmem:[%s1608 + $0x78] sm:$0xff]
        %s1625 = scalar_lea.vmem %s178, 64 [#allocation5]
        %v1626 = vld [vmem:[%s1625] sm:$0xff]
        %v1628 = vsel %vm224, %v1626, 0
        %1630 = vmatprep.subr.mxu0 %v1610
        %1631 = vmatpush1.msra.mxu0 %v1609
        %1632 = vmatprep.subr.mxu0 %v1612
        %1633 = vmatpush1.msra.mxu0 %v1611
        %1634 = vmatprep.subr.mxu0 %v1614
        %1635 = vmatpush1.msra.mxu0 %v1613
        %1636 = vmatprep.subr.mxu0 %v1616
        %1637 = vmatpush1.msra.mxu0 %v1615
        %1638 = vmatprep.subr.mxu0 %v1618
        %1639 = vmatpush1.msra.mxu0 %v1617
        %1640 = vmatprep.subr.mxu0 %v1620
        %1641 = vmatpush1.msra.mxu0 %v1619
        %1642 = vmatprep.subr.mxu0 %v1622
        %1643 = vmatpush1.msra.mxu0 %v1621
        %1644 = vmatprep.subr.mxu0 %v1624
        %1645 = vmatpush1.msra.mxu0 %v1623
        %1646 = vmatprep.subr.mxu0 0.0
        %1647 = vmatpush1.msra.mxu0 0.0
        %1648 = vmatprep.subr.mxu0 0.0
        %1649 = vmatpush1.msra.mxu0 0.0
        %1650 = vmatprep.subr.mxu0 0.0
        %1651 = vmatpush1.msra.mxu0 0.0
        %1652 = vmatprep.subr.mxu0 0.0
        %1653 = vmatpush1.msra.mxu0 0.0
        %1654 = vmatprep.subr.mxu0 0.0
        %1655 = vmatpush1.msra.mxu0 0.0
        %1656 = vmatprep.subr.mxu0 0.0
        %1657 = vmatpush1.msra.mxu0 0.0
        %1658 = vmatprep.subr.mxu0 0.0
        %1659 = vmatpush1.msra.mxu0 0.0
        %1660 = vmatprep.subr.mxu0 0.0
        %1661 = vmatpush1.msra.mxu0 0.0
        %1662 = vmatprep.subr.mxu0 0.0
        %1663 = vmatpush1.msra.mxu0 0.0
        %1664 = vmatprep.subr.mxu0 0.0
        %1665 = vmatpush1.msra.mxu0 0.0
        %1666 = vmatprep.subr.mxu0 0.0
        %1667 = vmatpush1.msra.mxu0 0.0
        %1668 = vmatprep.subr.mxu0 0.0
        %1669 = vmatpush1.msra.mxu0 0.0
        %1670 = vmatprep.subr.mxu0 0.0
        %1671 = vmatpush1.msra.mxu0 0.0
        %1672 = vmatprep.subr.mxu0 0.0
        %1673 = vmatpush1.msra.mxu0 0.0
        %1674 = vmatprep.subr.mxu0 0.0
        %1675 = vmatpush1.msra.mxu0 0.0
        %1676 = vmatprep.subr.mxu0 0.0
        %1677 = vmatpush1.msra.mxu0 0.0
        %1678 = vmatprep.subr.mxu0 0.0
        %1679 = vmatpush1.msra.mxu0 0.0
        %1680 = vmatprep.subr.mxu0 0.0
        %1681 = vmatpush1.msra.mxu0 0.0
        %1682 = vmatprep.subr.mxu0 0.0
        %1683 = vmatpush1.msra.mxu0 0.0
        %1684 = vmatprep.subr.mxu0 0.0
        %1685 = vmatpush1.msra.mxu0 0.0
        %1686 = vmatprep.subr.mxu0 0.0
        %1687 = vmatpush1.msra.mxu0 0.0
        %1688 = vmatprep.subr.mxu0 0.0
        %1689 = vmatpush1.msra.mxu0 0.0
        %1690 = vmatprep.subr.mxu0 0.0
        %1691 = vmatpush1.msra.mxu0 0.0
        %1692 = vmatprep.subr.mxu0 0.0
        %1693 = vmatpush1.msra.mxu0 0.0
        %1694 = vmatprep.mubr.f32.mxu0 0.0
        %1695 = vmatmul.mubr.f32.gmra.mrb[0].mxu0 %v1628
        %v1696 = vpop.f32.mrb[0].mxu0
        %v1697 = vadd.f32 0.0, %v1696
        %v1698 = vpop.f32.mrb[0].mxu0
        %v1699 = vadd.f32 0.0, %v1698
        %1700 = vdwg.mxu0
        %v1701 = vadd.f32 %v1697, 0.0
        %v1702 = vadd.f32 %v1699, 0.0
        %v1705 = vrot.slane %v1697, 1
        %v1706 = vrot.slane %v1699, 1
        %1707 = vrot.lane.b32.xlu0 %v1705, 127
        %v1708 = vpop.permute.xlu0 %1707
        %1709 = vrot.lane.b32.xlu0 %v1706, 127
        %v1710 = vpop.permute.xlu0 %1709
        %v1711 = vsel %vm309, %v1708, %v1710
        %v1714 = vadd.f32 %v1701, %v1711
        %v1715 = vadd.f32 %v1702, %v1710
        %v1716 = vrot.slane %v1697, 2
        %v1717 = vrot.slane %v1699, 2
        %1718 = vrot.lane.b32.xlu0 %v1716, 126
        %v1719 = vpop.permute.xlu0 %1718
        %1720 = vrot.lane.b32.xlu0 %v1717, 126
        %v1721 = vpop.permute.xlu0 %1720
        %v1722 = vsel %vm321, %v1719, %v1721
        %v1725 = vadd.f32 %v1714, %v1722
        %v1726 = vadd.f32 %v1715, %v1721
        %v1727 = vrot.slane %v1697, 3
        %v1728 = vrot.slane %v1699, 3
        %1729 = vrot.lane.b32.xlu0 %v1727, 125
        %v1730 = vpop.permute.xlu0 %1729
        %1731 = vrot.lane.b32.xlu0 %v1728, 125
        %v1732 = vpop.permute.xlu0 %1731
        %v1733 = vsel %vm333, %v1730, %v1732
        %v1736 = vadd.f32 %v1725, %v1733
        %v1737 = vadd.f32 %v1726, %v1732
        %v1738 = vrot.slane %v1697, 4
        %v1739 = vrot.slane %v1699, 4
        %1740 = vrot.lane.b32.xlu0 %v1738, 124
        %v1741 = vpop.permute.xlu0 %1740
        %1742 = vrot.lane.b32.xlu0 %v1739, 124
        %v1743 = vpop.permute.xlu0 %1742
        %v1744 = vsel %vm345, %v1741, %v1743
        %v1747 = vadd.f32 %v1736, %v1744
        %v1748 = vadd.f32 %v1737, %v1743
        %v1749 = vrot.slane %v1697, 5
        %v1750 = vrot.slane %v1699, 5
        %1751 = vrot.lane.b32.xlu0 %v1749, 123
        %v1752 = vpop.permute.xlu0 %1751
        %1753 = vrot.lane.b32.xlu0 %v1750, 123
        %v1754 = vpop.permute.xlu0 %1753
        %v1755 = vsel %vm357, %v1752, %v1754
        %v1758 = vadd.f32 %v1747, %v1755
        %v1759 = vadd.f32 %v1748, %v1754
        %v1760 = vrot.slane %v1697, 6
        %v1761 = vrot.slane %v1699, 6
        %1762 = vrot.lane.b32.xlu0 %v1760, 122
        %v1763 = vpop.permute.xlu0 %1762
        %1764 = vrot.lane.b32.xlu0 %v1761, 122
        %v1765 = vpop.permute.xlu0 %1764
        %v1766 = vsel %vm369, %v1763, %v1765
        %v1769 = vadd.f32 %v1758, %v1766
        %v1770 = vadd.f32 %v1759, %v1765
        %v1771 = vrot.slane %v1697, 7
        %v1772 = vrot.slane %v1699, 7
        %1773 = vrot.lane.b32.xlu0 %v1771, 121
        %v1774 = vpop.permute.xlu0 %1773
        %1775 = vrot.lane.b32.xlu0 %v1772, 121
        %v1776 = vpop.permute.xlu0 %1775
        %v1777 = vsel %vm381, %v1774, %v1776
        %v1780 = vadd.f32 %v1769, %v1777
        %v1781 = vadd.f32 %v1770, %v1776
        %v1782 = vld [vmem:[%s1625 + $0x8] sm:$0xff]
        %v1784 = vsel %vm224, %v1782, 0
        %1786 = vmatprep.subr.mxu0 %v1610
        %1787 = vmatpush1.msra.mxu0 %v1609
        %1788 = vmatprep.subr.mxu0 %v1612
        %1789 = vmatpush1.msra.mxu0 %v1611
        %1790 = vmatprep.subr.mxu0 %v1614
        %1791 = vmatpush1.msra.mxu0 %v1613
        %1792 = vmatprep.subr.mxu0 %v1616
        %1793 = vmatpush1.msra.mxu0 %v1615
        %1794 = vmatprep.subr.mxu0 %v1618
        %1795 = vmatpush1.msra.mxu0 %v1617
        %1796 = vmatprep.subr.mxu0 %v1620
        %1797 = vmatpush1.msra.mxu0 %v1619
        %1798 = vmatprep.subr.mxu0 %v1622
        %1799 = vmatpush1.msra.mxu0 %v1621
        %1800 = vmatprep.subr.mxu0 %v1624
        %1801 = vmatpush1.msra.mxu0 %v1623
        %1802 = vmatprep.subr.mxu0 0.0
        %1803 = vmatpush1.msra.mxu0 0.0
        %1804 = vmatprep.subr.mxu0 0.0
        %1805 = vmatpush1.msra.mxu0 0.0
        %1806 = vmatprep.subr.mxu0 0.0
        %1807 = vmatpush1.msra.mxu0 0.0
        %1808 = vmatprep.subr.mxu0 0.0
        %1809 = vmatpush1.msra.mxu0 0.0
        %1810 = vmatprep.subr.mxu0 0.0
        %1811 = vmatpush1.msra.mxu0 0.0
        %1812 = vmatprep.subr.mxu0 0.0
        %1813 = vmatpush1.msra.mxu0 0.0
        %1814 = vmatprep.subr.mxu0 0.0
        %1815 = vmatpush1.msra.mxu0 0.0
        %1816 = vmatprep.subr.mxu0 0.0
        %1817 = vmatpush1.msra.mxu0 0.0
        %1818 = vmatprep.subr.mxu0 0.0
        %1819 = vmatpush1.msra.mxu0 0.0
        %1820 = vmatprep.subr.mxu0 0.0
        %1821 = vmatpush1.msra.mxu0 0.0
        %1822 = vmatprep.subr.mxu0 0.0
        %1823 = vmatpush1.msra.mxu0 0.0
        %1824 = vmatprep.subr.mxu0 0.0
        %1825 = vmatpush1.msra.mxu0 0.0
        %1826 = vmatprep.subr.mxu0 0.0
        %1827 = vmatpush1.msra.mxu0 0.0
        %1828 = vmatprep.subr.mxu0 0.0
        %1829 = vmatpush1.msra.mxu0 0.0
        %1830 = vmatprep.subr.mxu0 0.0
        %1831 = vmatpush1.msra.mxu0 0.0
        %1832 = vmatprep.subr.mxu0 0.0
        %1833 = vmatpush1.msra.mxu0 0.0
        %1834 = vmatprep.subr.mxu0 0.0
        %1835 = vmatpush1.msra.mxu0 0.0
        %1836 = vmatprep.subr.mxu0 0.0
        %1837 = vmatpush1.msra.mxu0 0.0
        %1838 = vmatprep.subr.mxu0 0.0
        %1839 = vmatpush1.msra.mxu0 0.0
        %1840 = vmatprep.subr.mxu0 0.0
        %1841 = vmatpush1.msra.mxu0 0.0
        %1842 = vmatprep.subr.mxu0 0.0
        %1843 = vmatpush1.msra.mxu0 0.0
        %1844 = vmatprep.subr.mxu0 0.0
        %1845 = vmatpush1.msra.mxu0 0.0
        %1846 = vmatprep.subr.mxu0 0.0
        %1847 = vmatpush1.msra.mxu0 0.0
        %1848 = vmatprep.subr.mxu0 0.0
        %1849 = vmatpush1.msra.mxu0 0.0
        %1850 = vmatprep.mubr.f32.mxu0 0.0
        %1851 = vmatmul.mubr.f32.gmra.mrb[0].mxu0 %v1784
        %v1852 = vpop.f32.mrb[0].mxu0
        %v1853 = vadd.f32 0.0, %v1852
        %v1854 = vpop.f32.mrb[0].mxu0
        %v1855 = vadd.f32 0.0, %v1854
        %1856 = vdwg.mxu0
        %1859 = vrot.lane.b32.xlu0 %v1853, 112
        %v1860 = vpop.permute.xlu0 %1859
        %1861 = vrot.lane.b32.xlu0 %v1855, 112
        %v1862 = vpop.permute.xlu0 %1861
        %v1863 = vsel %vm468, %v1860, %v1862
        %v1866 = vadd.f32 %v1780, %v1863
        %v1867 = vadd.f32 %v1781, %v1862
        %v1868 = vrot.slane %v1853, 1
        %v1869 = vrot.slane %v1855, 1
        %1870 = vrot.lane.b32.xlu0 %v1868, 111
        %v1871 = vpop.permute.xlu0 %1870
        %1872 = vrot.lane.b32.xlu0 %v1869, 111
        %v1873 = vpop.permute.xlu0 %1872
        %v1874 = vsel %vm480, %v1871, %v1873
        %v1877 = vadd.f32 %v1866, %v1874
        %v1878 = vadd.f32 %v1867, %v1873
        %v1879 = vrot.slane %v1853, 2
        %v1880 = vrot.slane %v1855, 2
        %1881 = vrot.lane.b32.xlu0 %v1879, 110
        %v1882 = vpop.permute.xlu0 %1881
        %1883 = vrot.lane.b32.xlu0 %v1880, 110
        %v1884 = vpop.permute.xlu0 %1883
        %v1885 = vsel %vm492, %v1882, %v1884
        %v1888 = vadd.f32 %v1877, %v1885
        %v1889 = vadd.f32 %v1878, %v1884
        %v1890 = vrot.slane %v1853, 3
        %v1891 = vrot.slane %v1855, 3
        %1892 = vrot.lane.b32.xlu0 %v1890, 109
        %v1893 = vpop.permute.xlu0 %1892
        %1894 = vrot.lane.b32.xlu0 %v1891, 109
        %v1895 = vpop.permute.xlu0 %1894
        %v1896 = vsel %vm504, %v1893, %v1895
        %v1899 = vadd.f32 %v1888, %v1896
        %v1900 = vadd.f32 %v1889, %v1895
        %v1901 = vrot.slane %v1853, 4
        %v1902 = vrot.slane %v1855, 4
        %1903 = vrot.lane.b32.xlu0 %v1901, 108
        %v1904 = vpop.permute.xlu0 %1903
        %1905 = vrot.lane.b32.xlu0 %v1902, 108
        %v1906 = vpop.permute.xlu0 %1905
        %v1907 = vsel %vm516, %v1904, %v1906
        %v1910 = vadd.f32 %v1899, %v1907
        %v1911 = vadd.f32 %v1900, %v1906
        %v1912 = vrot.slane %v1853, 5
        %v1913 = vrot.slane %v1855, 5
        %1914 = vrot.lane.b32.xlu0 %v1912, 107
        %v1915 = vpop.permute.xlu0 %1914
        %1916 = vrot.lane.b32.xlu0 %v1913, 107
        %v1917 = vpop.permute.xlu0 %1916
        %v1918 = vsel %vm528, %v1915, %v1917
        %v1921 = vadd.f32 %v1910, %v1918
        %v1922 = vadd.f32 %v1911, %v1917
        %v1923 = vrot.slane %v1853, 6
        %v1924 = vrot.slane %v1855, 6
        %1925 = vrot.lane.b32.xlu0 %v1923, 106
        %v1926 = vpop.permute.xlu0 %1925
        %1927 = vrot.lane.b32.xlu0 %v1924, 106
        %v1928 = vpop.permute.xlu0 %1927
        %v1929 = vsel %vm540, %v1926, %v1928
        %v1932 = vadd.f32 %v1921, %v1929
        %v1933 = vadd.f32 %v1922, %v1928
        %v1934 = vrot.slane %v1853, 7
        %v1935 = vrot.slane %v1855, 7
        %1936 = vrot.lane.b32.xlu0 %v1934, 105
        %v1937 = vpop.permute.xlu0 %1936
        %1938 = vrot.lane.b32.xlu0 %v1935, 105
        %v1939 = vpop.permute.xlu0 %1938
        %v1940 = vsel %vm552, %v1937, %v1939
        %v1943 = vadd.f32 %v1932, %v1940
        %v1944 = vadd.f32 %v1933, %v1939
        %v1945 = vld [vmem:[%s1625 + $0x10] sm:$0xff]
        %v1947 = vsel %vm224, %v1945, 0
        %1949 = vmatprep.subr.mxu0 %v1610
        %1950 = vmatpush1.msra.mxu0 %v1609
        %1951 = vmatprep.subr.mxu0 %v1612
        %1952 = vmatpush1.msra.mxu0 %v1611
        %1953 = vmatprep.subr.mxu0 %v1614
        %1954 = vmatpush1.msra.mxu0 %v1613
        %1955 = vmatprep.subr.mxu0 %v1616
        %1956 = vmatpush1.msra.mxu0 %v1615
        %1957 = vmatprep.subr.mxu0 %v1618
        %1958 = vmatpush1.msra.mxu0 %v1617
        %1959 = vmatprep.subr.mxu0 %v1620
        %1960 = vmatpush1.msra.mxu0 %v1619
        %1961 = vmatprep.subr.mxu0 %v1622
        %1962 = vmatpush1.msra.mxu0 %v1621
        %1963 = vmatprep.subr.mxu0 %v1624
        %1964 = vmatpush1.msra.mxu0 %v1623
        %1965 = vmatprep.subr.mxu0 0.0
        %1966 = vmatpush1.msra.mxu0 0.0
        %1967 = vmatprep.subr.mxu0 0.0
        %1968 = vmatpush1.msra.mxu0 0.0
        %1969 = vmatprep.subr.mxu0 0.0
        %1970 = vmatpush1.msra.mxu0 0.0
        %1971 = vmatprep.subr.mxu0 0.0
        %1972 = vmatpush1.msra.mxu0 0.0
        %1973 = vmatprep.subr.mxu0 0.0
        %1974 = vmatpush1.msra.mxu0 0.0
        %1975 = vmatprep.subr.mxu0 0.0
        %1976 = vmatpush1.msra.mxu0 0.0
        %1977 = vmatprep.subr.mxu0 0.0
        %1978 = vmatpush1.msra.mxu0 0.0
        %1979 = vmatprep.subr.mxu0 0.0
        %1980 = vmatpush1.msra.mxu0 0.0
        %1981 = vmatprep.subr.mxu0 0.0
        %1982 = vmatpush1.msra.mxu0 0.0
        %1983 = vmatprep.subr.mxu0 0.0
        %1984 = vmatpush1.msra.mxu0 0.0
        %1985 = vmatprep.subr.mxu0 0.0
        %1986 = vmatpush1.msra.mxu0 0.0
        %1987 = vmatprep.subr.mxu0 0.0
        %1988 = vmatpush1.msra.mxu0 0.0
        %1989 = vmatprep.subr.mxu0 0.0
        %1990 = vmatpush1.msra.mxu0 0.0
        %1991 = vmatprep.subr.mxu0 0.0
        %1992 = vmatpush1.msra.mxu0 0.0
        %1993 = vmatprep.subr.mxu0 0.0
        %1994 = vmatpush1.msra.mxu0 0.0
        %1995 = vmatprep.subr.mxu0 0.0
        %1996 = vmatpush1.msra.mxu0 0.0
        %1997 = vmatprep.subr.mxu0 0.0
        %1998 = vmatpush1.msra.mxu0 0.0
        %1999 = vmatprep.subr.mxu0 0.0
        %2000 = vmatpush1.msra.mxu0 0.0
        %2001 = vmatprep.subr.mxu0 0.0
        %2002 = vmatpush1.msra.mxu0 0.0
        %2003 = vmatprep.subr.mxu0 0.0
        %2004 = vmatpush1.msra.mxu0 0.0
        %2005 = vmatprep.subr.mxu0 0.0
        %2006 = vmatpush1.msra.mxu0 0.0
        %2007 = vmatprep.subr.mxu0 0.0
        %2008 = vmatpush1.msra.mxu0 0.0
        %2009 = vmatprep.subr.mxu0 0.0
        %2010 = vmatpush1.msra.mxu0 0.0
        %2011 = vmatprep.subr.mxu0 0.0
        %2012 = vmatpush1.msra.mxu0 0.0
        %2013 = vmatprep.mubr.f32.mxu0 0.0
        %2014 = vmatmul.mubr.f32.gmra.mrb[0].mxu0 %v1947
        %v2015 = vpop.f32.mrb[0].mxu0
        %v2016 = vadd.f32 0.0, %v2015
        %v2017 = vpop.f32.mrb[0].mxu0
        %v2018 = vadd.f32 0.0, %v2017
        %2019 = vdwg.mxu0
        %2022 = vrot.lane.b32.xlu0 %v2016, 96
        %v2023 = vpop.permute.xlu0 %2022
        %2024 = vrot.lane.b32.xlu0 %v2018, 96
        %v2025 = vpop.permute.xlu0 %2024
        %v2026 = vsel %vm639, %v2023, %v2025
        %v2029 = vadd.f32 %v1943, %v2026
        %v2030 = vadd.f32 %v1944, %v2025
        %v2031 = vrot.slane %v2016, 1
        %v2032 = vrot.slane %v2018, 1
        %2033 = vrot.lane.b32.xlu0 %v2031, 95
        %v2034 = vpop.permute.xlu0 %2033
        %2035 = vrot.lane.b32.xlu0 %v2032, 95
        %v2036 = vpop.permute.xlu0 %2035
        %v2037 = vsel %vm651, %v2034, %v2036
        %v2040 = vadd.f32 %v2029, %v2037
        %v2041 = vadd.f32 %v2030, %v2036
        %v2042 = vrot.slane %v2016, 2
        %v2043 = vrot.slane %v2018, 2
        %2044 = vrot.lane.b32.xlu0 %v2042, 94
        %v2045 = vpop.permute.xlu0 %2044
        %2046 = vrot.lane.b32.xlu0 %v2043, 94
        %v2047 = vpop.permute.xlu0 %2046
        %v2048 = vsel %vm663, %v2045, %v2047
        %v2051 = vadd.f32 %v2040, %v2048
        %v2052 = vadd.f32 %v2041, %v2047
        %v2053 = vrot.slane %v2016, 3
        %v2054 = vrot.slane %v2018, 3
        %2055 = vrot.lane.b32.xlu0 %v2053, 93
        %v2056 = vpop.permute.xlu0 %2055
        %2057 = vrot.lane.b32.xlu0 %v2054, 93
        %v2058 = vpop.permute.xlu0 %2057
        %v2059 = vsel %vm675, %v2056, %v2058
        %v2062 = vadd.f32 %v2051, %v2059
        %v2063 = vadd.f32 %v2052, %v2058
        %v2064 = vrot.slane %v2016, 4
        %v2065 = vrot.slane %v2018, 4
        %2066 = vrot.lane.b32.xlu0 %v2064, 92
        %v2067 = vpop.permute.xlu0 %2066
        %2068 = vrot.lane.b32.xlu0 %v2065, 92
        %v2069 = vpop.permute.xlu0 %2068
        %v2070 = vsel %vm687, %v2067, %v2069
        %v2073 = vadd.f32 %v2062, %v2070
        %v2074 = vadd.f32 %v2063, %v2069
        %v2075 = vrot.slane %v2016, 5
        %v2076 = vrot.slane %v2018, 5
        %2077 = vrot.lane.b32.xlu0 %v2075, 91
        %v2078 = vpop.permute.xlu0 %2077
        %2079 = vrot.lane.b32.xlu0 %v2076, 91
        %v2080 = vpop.permute.xlu0 %2079
        %v2081 = vsel %vm699, %v2078, %v2080
        %v2084 = vadd.f32 %v2073, %v2081
        %v2085 = vadd.f32 %v2074, %v2080
        %v2086 = vrot.slane %v2016, 6
        %v2087 = vrot.slane %v2018, 6
        %2088 = vrot.lane.b32.xlu0 %v2086, 90
        %v2089 = vpop.permute.xlu0 %2088
        %2090 = vrot.lane.b32.xlu0 %v2087, 90
        %v2091 = vpop.permute.xlu0 %2090
        %v2092 = vsel %vm711, %v2089, %v2091
        %v2095 = vadd.f32 %v2084, %v2092
        %v2096 = vadd.f32 %v2085, %v2091
        %v2097 = vrot.slane %v2016, 7
        %v2098 = vrot.slane %v2018, 7
        %2099 = vrot.lane.b32.xlu0 %v2097, 89
        %v2100 = vpop.permute.xlu0 %2099
        %2101 = vrot.lane.b32.xlu0 %v2098, 89
        %v2102 = vpop.permute.xlu0 %2101
        %v2103 = vsel %vm723, %v2100, %v2102
        %v2106 = vadd.f32 %v2095, %v2103
        %v2107 = vadd.f32 %v2096, %v2102
        %v2108 = vld [vmem:[%s1625 + $0x18] sm:$0xff]
        %v2110 = vsel %vm224, %v2108, 0
        %2112 = vmatprep.subr.mxu0 %v1610
        %2113 = vmatpush1.msra.mxu0 %v1609
        %2114 = vmatprep.subr.mxu0 %v1612
        %2115 = vmatpush1.msra.mxu0 %v1611
        %2116 = vmatprep.subr.mxu0 %v1614
        %2117 = vmatpush1.msra.mxu0 %v1613
        %2118 = vmatprep.subr.mxu0 %v1616
        %2119 = vmatpush1.msra.mxu0 %v1615
        %2120 = vmatprep.subr.mxu0 %v1618
        %2121 = vmatpush1.msra.mxu0 %v1617
        %2122 = vmatprep.subr.mxu0 %v1620
        %2123 = vmatpush1.msra.mxu0 %v1619
        %2124 = vmatprep.subr.mxu0 %v1622
        %2125 = vmatpush1.msra.mxu0 %v1621
        %2126 = vmatprep.subr.mxu0 %v1624
        %2127 = vmatpush1.msra.mxu0 %v1623
        %2128 = vmatprep.subr.mxu0 0.0
        %2129 = vmatpush1.msra.mxu0 0.0
        %2130 = vmatprep.subr.mxu0 0.0
        %2131 = vmatpush1.msra.mxu0 0.0
        %2132 = vmatprep.subr.mxu0 0.0
        %2133 = vmatpush1.msra.mxu0 0.0
        %2134 = vmatprep.subr.mxu0 0.0
        %2135 = vmatpush1.msra.mxu0 0.0
        %2136 = vmatprep.subr.mxu0 0.0
        %2137 = vmatpush1.msra.mxu0 0.0
        %2138 = vmatprep.subr.mxu0 0.0
        %2139 = vmatpush1.msra.mxu0 0.0
        %2140 = vmatprep.subr.mxu0 0.0
        %2141 = vmatpush1.msra.mxu0 0.0
        %2142 = vmatprep.subr.mxu0 0.0
        %2143 = vmatpush1.msra.mxu0 0.0
        %2144 = vmatprep.subr.mxu0 0.0
        %2145 = vmatpush1.msra.mxu0 0.0
        %2146 = vmatprep.subr.mxu0 0.0
        %2147 = vmatpush1.msra.mxu0 0.0
        %2148 = vmatprep.subr.mxu0 0.0
        %2149 = vmatpush1.msra.mxu0 0.0
        %2150 = vmatprep.subr.mxu0 0.0
        %2151 = vmatpush1.msra.mxu0 0.0
        %2152 = vmatprep.subr.mxu0 0.0
        %2153 = vmatpush1.msra.mxu0 0.0
        %2154 = vmatprep.subr.mxu0 0.0
        %2155 = vmatpush1.msra.mxu0 0.0
        %2156 = vmatprep.subr.mxu0 0.0
        %2157 = vmatpush1.msra.mxu0 0.0
        %2158 = vmatprep.subr.mxu0 0.0
        %2159 = vmatpush1.msra.mxu0 0.0
        %2160 = vmatprep.subr.mxu0 0.0
        %2161 = vmatpush1.msra.mxu0 0.0
        %2162 = vmatprep.subr.mxu0 0.0
        %2163 = vmatpush1.msra.mxu0 0.0
        %2164 = vmatprep.subr.mxu0 0.0
        %2165 = vmatpush1.msra.mxu0 0.0
        %2166 = vmatprep.subr.mxu0 0.0
        %2167 = vmatpush1.msra.mxu0 0.0
        %2168 = vmatprep.subr.mxu0 0.0
        %2169 = vmatpush1.msra.mxu0 0.0
        %2170 = vmatprep.subr.mxu0 0.0
        %2171 = vmatpush1.msra.mxu0 0.0
        %2172 = vmatprep.subr.mxu0 0.0
        %2173 = vmatpush1.msra.mxu0 0.0
        %2174 = vmatprep.subr.mxu0 0.0
        %2175 = vmatpush1.msra.mxu0 0.0
        %2176 = vmatprep.mubr.f32.mxu0 0.0
        %2177 = vmatmul.mubr.f32.gmra.mrb[0].mxu0 %v2110
        %v2178 = vpop.f32.mrb[0].mxu0
        %v2179 = vadd.f32 0.0, %v2178
        %v2180 = vpop.f32.mrb[0].mxu0
        %v2181 = vadd.f32 0.0, %v2180
        %2182 = vdwg.mxu0
        %2185 = vrot.lane.b32.xlu0 %v2179, 80
        %v2186 = vpop.permute.xlu0 %2185
        %2187 = vrot.lane.b32.xlu0 %v2181, 80
        %v2188 = vpop.permute.xlu0 %2187
        %v2189 = vsel %vm810, %v2186, %v2188
        %v2192 = vadd.f32 %v2106, %v2189
        %v2193 = vadd.f32 %v2107, %v2188
        %v2194 = vrot.slane %v2179, 1
        %v2195 = vrot.slane %v2181, 1
        %2196 = vrot.lane.b32.xlu0 %v2194, 79
        %v2197 = vpop.permute.xlu0 %2196
        %2198 = vrot.lane.b32.xlu0 %v2195, 79
        %v2199 = vpop.permute.xlu0 %2198
        %v2200 = vsel %vm822, %v2197, %v2199
        %v2203 = vadd.f32 %v2192, %v2200
        %v2204 = vadd.f32 %v2193, %v2199
        %v2205 = vrot.slane %v2179, 2
        %v2206 = vrot.slane %v2181, 2
        %2207 = vrot.lane.b32.xlu0 %v2205, 78
        %v2208 = vpop.permute.xlu0 %2207
        %2209 = vrot.lane.b32.xlu0 %v2206, 78
        %v2210 = vpop.permute.xlu0 %2209
        %v2211 = vsel %vm834, %v2208, %v2210
        %v2214 = vadd.f32 %v2203, %v2211
        %v2215 = vadd.f32 %v2204, %v2210
        %v2216 = vrot.slane %v2179, 3
        %v2217 = vrot.slane %v2181, 3
        %2218 = vrot.lane.b32.xlu0 %v2216, 77
        %v2219 = vpop.permute.xlu0 %2218
        %2220 = vrot.lane.b32.xlu0 %v2217, 77
        %v2221 = vpop.permute.xlu0 %2220
        %v2222 = vsel %vm846, %v2219, %v2221
        %v2225 = vadd.f32 %v2214, %v2222
        %v2226 = vadd.f32 %v2215, %v2221
        %v2227 = vrot.slane %v2179, 4
        %v2228 = vrot.slane %v2181, 4
        %2229 = vrot.lane.b32.xlu0 %v2227, 76
        %v2230 = vpop.permute.xlu0 %2229
        %2231 = vrot.lane.b32.xlu0 %v2228, 76
        %v2232 = vpop.permute.xlu0 %2231
        %v2233 = vsel %vm858, %v2230, %v2232
        %v2236 = vadd.f32 %v2225, %v2233
        %v2237 = vadd.f32 %v2226, %v2232
        %v2238 = vrot.slane %v2179, 5
        %v2239 = vrot.slane %v2181, 5
        %2240 = vrot.lane.b32.xlu0 %v2238, 75
        %v2241 = vpop.permute.xlu0 %2240
        %2242 = vrot.lane.b32.xlu0 %v2239, 75
        %v2243 = vpop.permute.xlu0 %2242
        %v2244 = vsel %vm870, %v2241, %v2243
        %v2247 = vadd.f32 %v2236, %v2244
        %v2248 = vadd.f32 %v2237, %v2243
        %v2249 = vrot.slane %v2179, 6
        %v2250 = vrot.slane %v2181, 6
        %2251 = vrot.lane.b32.xlu0 %v2249, 74
        %v2252 = vpop.permute.xlu0 %2251
        %2253 = vrot.lane.b32.xlu0 %v2250, 74
        %v2254 = vpop.permute.xlu0 %2253
        %v2255 = vsel %vm882, %v2252, %v2254
        %v2258 = vadd.f32 %v2247, %v2255
        %v2259 = vadd.f32 %v2248, %v2254
        %v2260 = vrot.slane %v2179, 7
        %v2261 = vrot.slane %v2181, 7
        %2262 = vrot.lane.b32.xlu0 %v2260, 73
        %v2263 = vpop.permute.xlu0 %2262
        %2264 = vrot.lane.b32.xlu0 %v2261, 73
        %v2265 = vpop.permute.xlu0 %2264
        %v2266 = vsel %vm894, %v2263, %v2265
        %v2269 = vadd.f32 %v2258, %v2266
        %v2270 = vadd.f32 %v2259, %v2265
        %v2271 = vld [vmem:[%s1625 + $0x20] sm:$0xff]
        %v2273 = vsel %vm224, %v2271, 0
        %2275 = vmatprep.subr.mxu0 %v1610
        %2276 = vmatpush1.msra.mxu0 %v1609
        %2277 = vmatprep.subr.mxu0 %v1612
        %2278 = vmatpush1.msra.mxu0 %v1611
        %2279 = vmatprep.subr.mxu0 %v1614
        %2280 = vmatpush1.msra.mxu0 %v1613
        %2281 = vmatprep.subr.mxu0 %v1616
        %2282 = vmatpush1.msra.mxu0 %v1615
        %2283 = vmatprep.subr.mxu0 %v1618
        %2284 = vmatpush1.msra.mxu0 %v1617
        %2285 = vmatprep.subr.mxu0 %v1620
        %2286 = vmatpush1.msra.mxu0 %v1619
        %2287 = vmatprep.subr.mxu0 %v1622
        %2288 = vmatpush1.msra.mxu0 %v1621
        %2289 = vmatprep.subr.mxu0 %v1624
        %2290 = vmatpush1.msra.mxu0 %v1623
        %2291 = vmatprep.subr.mxu0 0.0
        %2292 = vmatpush1.msra.mxu0 0.0
        %2293 = vmatprep.subr.mxu0 0.0
        %2294 = vmatpush1.msra.mxu0 0.0
        %2295 = vmatprep.subr.mxu0 0.0
        %2296 = vmatpush1.msra.mxu0 0.0
        %2297 = vmatprep.subr.mxu0 0.0
        %2298 = vmatpush1.msra.mxu0 0.0
        %2299 = vmatprep.subr.mxu0 0.0
        %2300 = vmatpush1.msra.mxu0 0.0
        %2301 = vmatprep.subr.mxu0 0.0
        %2302 = vmatpush1.msra.mxu0 0.0
        %2303 = vmatprep.subr.mxu0 0.0
        %2304 = vmatpush1.msra.mxu0 0.0
        %2305 = vmatprep.subr.mxu0 0.0
        %2306 = vmatpush1.msra.mxu0 0.0
        %2307 = vmatprep.subr.mxu0 0.0
        %2308 = vmatpush1.msra.mxu0 0.0
        %2309 = vmatprep.subr.mxu0 0.0
        %2310 = vmatpush1.msra.mxu0 0.0
        %2311 = vmatprep.subr.mxu0 0.0
        %2312 = vmatpush1.msra.mxu0 0.0
        %2313 = vmatprep.subr.mxu0 0.0
        %2314 = vmatpush1.msra.mxu0 0.0
        %2315 = vmatprep.subr.mxu0 0.0
        %2316 = vmatpush1.msra.mxu0 0.0
        %2317 = vmatprep.subr.mxu0 0.0
        %2318 = vmatpush1.msra.mxu0 0.0
        %2319 = vmatprep.subr.mxu0 0.0
        %2320 = vmatpush1.msra.mxu0 0.0
        %2321 = vmatprep.subr.mxu0 0.0
        %2322 = vmatpush1.msra.mxu0 0.0
        %2323 = vmatprep.subr.mxu0 0.0
        %2324 = vmatpush1.msra.mxu0 0.0
        %2325 = vmatprep.subr.mxu0 0.0
        %2326 = vmatpush1.msra.mxu0 0.0
        %2327 = vmatprep.subr.mxu0 0.0
        %2328 = vmatpush1.msra.mxu0 0.0
        %2329 = vmatprep.subr.mxu0 0.0
        %2330 = vmatpush1.msra.mxu0 0.0
        %2331 = vmatprep.subr.mxu0 0.0
        %2332 = vmatpush1.msra.mxu0 0.0
        %2333 = vmatprep.subr.mxu0 0.0
        %2334 = vmatpush1.msra.mxu0 0.0
        %2335 = vmatprep.subr.mxu0 0.0
        %2336 = vmatpush1.msra.mxu0 0.0
        %2337 = vmatprep.subr.mxu0 0.0
        %2338 = vmatpush1.msra.mxu0 0.0
        %2339 = vmatprep.mubr.f32.mxu0 0.0
        %2340 = vmatmul.mubr.f32.gmra.mrb[0].mxu0 %v2273
        %v2341 = vpop.f32.mrb[0].mxu0
        %v2342 = vadd.f32 0.0, %v2341
        %v2343 = vpop.f32.mrb[0].mxu0
        %v2344 = vadd.f32 0.0, %v2343
        %2345 = vdwg.mxu0
        %2348 = vrot.lane.b32.xlu0 %v2342, 64
        %v2349 = vpop.permute.xlu0 %2348
        %2350 = vrot.lane.b32.xlu0 %v2344, 64
        %v2351 = vpop.permute.xlu0 %2350
        %v2352 = vsel %vm224, %v2349, %v2351
        %v2355 = vadd.f32 %v2269, %v2352
        %v2356 = vadd.f32 %v2270, %v2351
        %v2357 = vrot.slane %v2342, 1
        %v2358 = vrot.slane %v2344, 1
        %2359 = vrot.lane.b32.xlu0 %v2357, 63
        %v2360 = vpop.permute.xlu0 %2359
        %2361 = vrot.lane.b32.xlu0 %v2358, 63
        %v2362 = vpop.permute.xlu0 %2361
        %v2363 = vsel %vm992, %v2360, %v2362
        %v2366 = vadd.f32 %v2355, %v2363
        %v2367 = vadd.f32 %v2356, %v2362
        %v2368 = vrot.slane %v2342, 2
        %v2369 = vrot.slane %v2344, 2
        %2370 = vrot.lane.b32.xlu0 %v2368, 62
        %v2371 = vpop.permute.xlu0 %2370
        %2372 = vrot.lane.b32.xlu0 %v2369, 62
        %v2373 = vpop.permute.xlu0 %2372
        %v2374 = vsel %vm1004, %v2371, %v2373
        %v2377 = vadd.f32 %v2366, %v2374
        %v2378 = vadd.f32 %v2367, %v2373
        %v2379 = vrot.slane %v2342, 3
        %v2380 = vrot.slane %v2344, 3
        %2381 = vrot.lane.b32.xlu0 %v2379, 61
        %v2382 = vpop.permute.xlu0 %2381
        %2383 = vrot.lane.b32.xlu0 %v2380, 61
        %v2384 = vpop.permute.xlu0 %2383
        %v2385 = vsel %vm1016, %v2382, %v2384
        %v2388 = vadd.f32 %v2377, %v2385
        %v2389 = vadd.f32 %v2378, %v2384
        %v2390 = vrot.slane %v2342, 4
        %v2391 = vrot.slane %v2344, 4
        %2392 = vrot.lane.b32.xlu0 %v2390, 60
        %v2393 = vpop.permute.xlu0 %2392
        %2394 = vrot.lane.b32.xlu0 %v2391, 60
        %v2395 = vpop.permute.xlu0 %2394
        %v2396 = vsel %vm1028, %v2393, %v2395
        %v2399 = vadd.f32 %v2388, %v2396
        %v2400 = vadd.f32 %v2389, %v2395
        %v2401 = vrot.slane %v2342, 5
        %v2402 = vrot.slane %v2344, 5
        %2403 = vrot.lane.b32.xlu0 %v2401, 59
        %v2404 = vpop.permute.xlu0 %2403
        %2405 = vrot.lane.b32.xlu0 %v2402, 59
        %v2406 = vpop.permute.xlu0 %2405
        %v2407 = vsel %vm1040, %v2404, %v2406
        %v2410 = vadd.f32 %v2399, %v2407
        %v2411 = vadd.f32 %v2400, %v2406
        %v2412 = vrot.slane %v2342, 6
        %v2413 = vrot.slane %v2344, 6
        %2414 = vrot.lane.b32.xlu0 %v2412, 58
        %v2415 = vpop.permute.xlu0 %2414
        %2416 = vrot.lane.b32.xlu0 %v2413, 58
        %v2417 = vpop.permute.xlu0 %2416
        %v2418 = vsel %vm1052, %v2415, %v2417
        %v2421 = vadd.f32 %v2410, %v2418
        %v2422 = vadd.f32 %v2411, %v2417
        %v2423 = vrot.slane %v2342, 7
        %v2424 = vrot.slane %v2344, 7
        %2425 = vrot.lane.b32.xlu0 %v2423, 57
        %v2426 = vpop.permute.xlu0 %2425
        %2427 = vrot.lane.b32.xlu0 %v2424, 57
        %v2428 = vpop.permute.xlu0 %2427
        %v2429 = vsel %vm1064, %v2426, %v2428
        %v2432 = vadd.f32 %v2421, %v2429
        %v2433 = vadd.f32 %v2422, %v2428
        %v2434 = vld [vmem:[%s1625 + $0x28] sm:$0xff]
        %v2436 = vsel %vm224, %v2434, 0
        %2438 = vmatprep.subr.mxu0 %v1610
        %2439 = vmatpush1.msra.mxu0 %v1609
        %2440 = vmatprep.subr.mxu0 %v1612
        %2441 = vmatpush1.msra.mxu0 %v1611
        %2442 = vmatprep.subr.mxu0 %v1614
        %2443 = vmatpush1.msra.mxu0 %v1613
        %2444 = vmatprep.subr.mxu0 %v1616
        %2445 = vmatpush1.msra.mxu0 %v1615
        %2446 = vmatprep.subr.mxu0 %v1618
        %2447 = vmatpush1.msra.mxu0 %v1617
        %2448 = vmatprep.subr.mxu0 %v1620
        %2449 = vmatpush1.msra.mxu0 %v1619
        %2450 = vmatprep.subr.mxu0 %v1622
        %2451 = vmatpush1.msra.mxu0 %v1621
        %2452 = vmatprep.subr.mxu0 %v1624
        %2453 = vmatpush1.msra.mxu0 %v1623
        %2454 = vmatprep.subr.mxu0 0.0
        %2455 = vmatpush1.msra.mxu0 0.0
        %2456 = vmatprep.subr.mxu0 0.0
        %2457 = vmatpush1.msra.mxu0 0.0
        %2458 = vmatprep.subr.mxu0 0.0
        %2459 = vmatpush1.msra.mxu0 0.0
        %2460 = vmatprep.subr.mxu0 0.0
        %2461 = vmatpush1.msra.mxu0 0.0
        %2462 = vmatprep.subr.mxu0 0.0
        %2463 = vmatpush1.msra.mxu0 0.0
        %2464 = vmatprep.subr.mxu0 0.0
        %2465 = vmatpush1.msra.mxu0 0.0
        %2466 = vmatprep.subr.mxu0 0.0
        %2467 = vmatpush1.msra.mxu0 0.0
        %2468 = vmatprep.subr.mxu0 0.0
        %2469 = vmatpush1.msra.mxu0 0.0
        %2470 = vmatprep.subr.mxu0 0.0
        %2471 = vmatpush1.msra.mxu0 0.0
        %2472 = vmatprep.subr.mxu0 0.0
        %2473 = vmatpush1.msra.mxu0 0.0
        %2474 = vmatprep.subr.mxu0 0.0
        %2475 = vmatpush1.msra.mxu0 0.0
        %2476 = vmatprep.subr.mxu0 0.0
        %2477 = vmatpush1.msra.mxu0 0.0
        %2478 = vmatprep.subr.mxu0 0.0
        %2479 = vmatpush1.msra.mxu0 0.0
        %2480 = vmatprep.subr.mxu0 0.0
        %2481 = vmatpush1.msra.mxu0 0.0
        %2482 = vmatprep.subr.mxu0 0.0
        %2483 = vmatpush1.msra.mxu0 0.0
        %2484 = vmatprep.subr.mxu0 0.0
        %2485 = vmatpush1.msra.mxu0 0.0
        %2486 = vmatprep.subr.mxu0 0.0
        %2487 = vmatpush1.msra.mxu0 0.0
        %2488 = vmatprep.subr.mxu0 0.0
        %2489 = vmatpush1.msra.mxu0 0.0
        %2490 = vmatprep.subr.mxu0 0.0
        %2491 = vmatpush1.msra.mxu0 0.0
        %2492 = vmatprep.subr.mxu0 0.0
        %2493 = vmatpush1.msra.mxu0 0.0
        %2494 = vmatprep.subr.mxu0 0.0
        %2495 = vmatpush1.msra.mxu0 0.0
        %2496 = vmatprep.subr.mxu0 0.0
        %2497 = vmatpush1.msra.mxu0 0.0
        %2498 = vmatprep.subr.mxu0 0.0
        %2499 = vmatpush1.msra.mxu0 0.0
        %2500 = vmatprep.subr.mxu0 0.0
        %2501 = vmatpush1.msra.mxu0 0.0
        %2502 = vmatprep.mubr.f32.mxu0 0.0
        %2503 = vmatmul.mubr.f32.gmra.mrb[0].mxu0 %v2436
        %v2504 = vpop.f32.mrb[0].mxu0
        %v2505 = vadd.f32 0.0, %v2504
        %v2506 = vpop.f32.mrb[0].mxu0
        %v2507 = vadd.f32 0.0, %v2506
        %2508 = vdwg.mxu0
        %2511 = vrot.lane.b32.xlu0 %v2505, 48
        %v2512 = vpop.permute.xlu0 %2511
        %2513 = vrot.lane.b32.xlu0 %v2507, 48
        %v2514 = vpop.permute.xlu0 %2513
        %v2515 = vsel %vm1151, %v2512, %v2514
        %v2518 = vadd.f32 %v2432, %v2515
        %v2519 = vadd.f32 %v2433, %v2514
        %v2520 = vrot.slane %v2505, 1
        %v2521 = vrot.slane %v2507, 1
        %2522 = vrot.lane.b32.xlu0 %v2520, 47
        %v2523 = vpop.permute.xlu0 %2522
        %2524 = vrot.lane.b32.xlu0 %v2521, 47
        %v2525 = vpop.permute.xlu0 %2524
        %v2526 = vsel %vm1163, %v2523, %v2525
        %v2529 = vadd.f32 %v2518, %v2526
        %v2530 = vadd.f32 %v2519, %v2525
        %v2531 = vrot.slane %v2505, 2
        %v2532 = vrot.slane %v2507, 2
        %2533 = vrot.lane.b32.xlu0 %v2531, 46
        %v2534 = vpop.permute.xlu0 %2533
        %2535 = vrot.lane.b32.xlu0 %v2532, 46
        %v2536 = vpop.permute.xlu0 %2535
        %v2537 = vsel %vm1175, %v2534, %v2536
        %v2540 = vadd.f32 %v2529, %v2537
        %v2541 = vadd.f32 %v2530, %v2536
        %v2542 = vrot.slane %v2505, 3
        %v2543 = vrot.slane %v2507, 3
        %2544 = vrot.lane.b32.xlu0 %v2542, 45
        %v2545 = vpop.permute.xlu0 %2544
        %2546 = vrot.lane.b32.xlu0 %v2543, 45
        %v2547 = vpop.permute.xlu0 %2546
        %v2548 = vsel %vm1187, %v2545, %v2547
        %v2551 = vadd.f32 %v2540, %v2548
        %v2552 = vadd.f32 %v2541, %v2547
        %v2553 = vrot.slane %v2505, 4
        %v2554 = vrot.slane %v2507, 4
        %2555 = vrot.lane.b32.xlu0 %v2553, 44
        %v2556 = vpop.permute.xlu0 %2555
        %2557 = vrot.lane.b32.xlu0 %v2554, 44
        %v2558 = vpop.permute.xlu0 %2557
        %v2559 = vsel %vm1199, %v2556, %v2558
        %v2562 = vadd.f32 %v2551, %v2559
        %v2563 = vadd.f32 %v2552, %v2558
        %v2564 = vrot.slane %v2505, 5
        %v2565 = vrot.slane %v2507, 5
        %2566 = vrot.lane.b32.xlu0 %v2564, 43
        %v2567 = vpop.permute.xlu0 %2566
        %2568 = vrot.lane.b32.xlu0 %v2565, 43
        %v2569 = vpop.permute.xlu0 %2568
        %v2570 = vsel %vm1211, %v2567, %v2569
        %v2573 = vadd.f32 %v2562, %v2570
        %v2574 = vadd.f32 %v2563, %v2569
        %v2575 = vrot.slane %v2505, 6
        %v2576 = vrot.slane %v2507, 6
        %2577 = vrot.lane.b32.xlu0 %v2575, 42
        %v2578 = vpop.permute.xlu0 %2577
        %2579 = vrot.lane.b32.xlu0 %v2576, 42
        %v2580 = vpop.permute.xlu0 %2579
        %v2581 = vsel %vm1223, %v2578, %v2580
        %v2584 = vadd.f32 %v2573, %v2581
        %v2585 = vadd.f32 %v2574, %v2580
        %v2586 = vrot.slane %v2505, 7
        %v2587 = vrot.slane %v2507, 7
        %2588 = vrot.lane.b32.xlu0 %v2586, 41
        %v2589 = vpop.permute.xlu0 %2588
        %2590 = vrot.lane.b32.xlu0 %v2587, 41
        %v2591 = vpop.permute.xlu0 %2590
        %v2592 = vsel %vm1235, %v2589, %v2591
        %v2595 = vadd.f32 %v2584, %v2592
        %v2596 = vadd.f32 %v2585, %v2591
        %v2597 = vld [vmem:[%s1625 + $0x30] sm:$0xff]
        %v2599 = vsel %vm224, %v2597, 0
        %2601 = vmatprep.subr.mxu0 %v1610
        %2602 = vmatpush1.msra.mxu0 %v1609
        %2603 = vmatprep.subr.mxu0 %v1612
        %2604 = vmatpush1.msra.mxu0 %v1611
        %2605 = vmatprep.subr.mxu0 %v1614
        %2606 = vmatpush1.msra.mxu0 %v1613
        %2607 = vmatprep.subr.mxu0 %v1616
        %2608 = vmatpush1.msra.mxu0 %v1615
        %2609 = vmatprep.subr.mxu0 %v1618
        %2610 = vmatpush1.msra.mxu0 %v1617
        %2611 = vmatprep.subr.mxu0 %v1620
        %2612 = vmatpush1.msra.mxu0 %v1619
        %2613 = vmatprep.subr.mxu0 %v1622
        %2614 = vmatpush1.msra.mxu0 %v1621
        %2615 = vmatprep.subr.mxu0 %v1624
        %2616 = vmatpush1.msra.mxu0 %v1623
        %2617 = vmatprep.subr.mxu0 0.0
        %2618 = vmatpush1.msra.mxu0 0.0
        %2619 = vmatprep.subr.mxu0 0.0
        %2620 = vmatpush1.msra.mxu0 0.0
        %2621 = vmatprep.subr.mxu0 0.0
        %2622 = vmatpush1.msra.mxu0 0.0
        %2623 = vmatprep.subr.mxu0 0.0
        %2624 = vmatpush1.msra.mxu0 0.0
        %2625 = vmatprep.subr.mxu0 0.0
        %2626 = vmatpush1.msra.mxu0 0.0
        %2627 = vmatprep.subr.mxu0 0.0
        %2628 = vmatpush1.msra.mxu0 0.0
        %2629 = vmatprep.subr.mxu0 0.0
        %2630 = vmatpush1.msra.mxu0 0.0
        %2631 = vmatprep.subr.mxu0 0.0
        %2632 = vmatpush1.msra.mxu0 0.0
        %2633 = vmatprep.subr.mxu0 0.0
        %2634 = vmatpush1.msra.mxu0 0.0
        %2635 = vmatprep.subr.mxu0 0.0
        %2636 = vmatpush1.msra.mxu0 0.0
        %2637 = vmatprep.subr.mxu0 0.0
        %2638 = vmatpush1.msra.mxu0 0.0
        %2639 = vmatprep.subr.mxu0 0.0
        %2640 = vmatpush1.msra.mxu0 0.0
        %2641 = vmatprep.subr.mxu0 0.0
        %2642 = vmatpush1.msra.mxu0 0.0
        %2643 = vmatprep.subr.mxu0 0.0
        %2644 = vmatpush1.msra.mxu0 0.0
        %2645 = vmatprep.subr.mxu0 0.0
        %2646 = vmatpush1.msra.mxu0 0.0
        %2647 = vmatprep.subr.mxu0 0.0
        %2648 = vmatpush1.msra.mxu0 0.0
        %2649 = vmatprep.subr.mxu0 0.0
        %2650 = vmatpush1.msra.mxu0 0.0
        %2651 = vmatprep.subr.mxu0 0.0
        %2652 = vmatpush1.msra.mxu0 0.0
        %2653 = vmatprep.subr.mxu0 0.0
        %2654 = vmatpush1.msra.mxu0 0.0
        %2655 = vmatprep.subr.mxu0 0.0
        %2656 = vmatpush1.msra.mxu0 0.0
        %2657 = vmatprep.subr.mxu0 0.0
        %2658 = vmatpush1.msra.mxu0 0.0
        %2659 = vmatprep.subr.mxu0 0.0
        %2660 = vmatpush1.msra.mxu0 0.0
        %2661 = vmatprep.subr.mxu0 0.0
        %2662 = vmatpush1.msra.mxu0 0.0
        %2663 = vmatprep.subr.mxu0 0.0
        %2664 = vmatpush1.msra.mxu0 0.0
        %2665 = vmatprep.mubr.f32.mxu0 0.0
        %2666 = vmatmul.mubr.f32.gmra.mrb[0].mxu0 %v2599
        %v2667 = vpop.f32.mrb[0].mxu0
        %v2668 = vadd.f32 0.0, %v2667
        %v2669 = vpop.f32.mrb[0].mxu0
        %v2670 = vadd.f32 0.0, %v2669
        %2671 = vdwg.mxu0
        %2674 = vrot.lane.b32.xlu0 %v2668, 32
        %v2675 = vpop.permute.xlu0 %2674
        %2676 = vrot.lane.b32.xlu0 %v2670, 32
        %v2677 = vpop.permute.xlu0 %2676
        %v2678 = vsel %vm1322, %v2675, %v2677
        %v2681 = vadd.f32 %v2595, %v2678
        %v2682 = vadd.f32 %v2596, %v2677
        %v2683 = vrot.slane %v2668, 1
        %v2684 = vrot.slane %v2670, 1
        %2685 = vrot.lane.b32.xlu0 %v2683, 31
        %v2686 = vpop.permute.xlu0 %2685
        %2687 = vrot.lane.b32.xlu0 %v2684, 31
        %v2688 = vpop.permute.xlu0 %2687
        %v2689 = vsel %vm1334, %v2686, %v2688
        %v2692 = vadd.f32 %v2681, %v2689
        %v2693 = vadd.f32 %v2682, %v2688
        %v2694 = vrot.slane %v2668, 2
        %v2695 = vrot.slane %v2670, 2
        %2696 = vrot.lane.b32.xlu0 %v2694, 30
        %v2697 = vpop.permute.xlu0 %2696
        %2698 = vrot.lane.b32.xlu0 %v2695, 30
        %v2699 = vpop.permute.xlu0 %2698
        %v2700 = vsel %vm1346, %v2697, %v2699
        %v2703 = vadd.f32 %v2692, %v2700
        %v2704 = vadd.f32 %v2693, %v2699
        %v2705 = vrot.slane %v2668, 3
        %v2706 = vrot.slane %v2670, 3
        %2707 = vrot.lane.b32.xlu0 %v2705, 29
        %v2708 = vpop.permute.xlu0 %2707
        %2709 = vrot.lane.b32.xlu0 %v2706, 29
        %v2710 = vpop.permute.xlu0 %2709
        %v2711 = vsel %vm1358, %v2708, %v2710
        %v2714 = vadd.f32 %v2703, %v2711
        %v2715 = vadd.f32 %v2704, %v2710
        %v2716 = vrot.slane %v2668, 4
        %v2717 = vrot.slane %v2670, 4
        %2718 = vrot.lane.b32.xlu0 %v2716, 28
        %v2719 = vpop.permute.xlu0 %2718
        %2720 = vrot.lane.b32.xlu0 %v2717, 28
        %v2721 = vpop.permute.xlu0 %2720
        %v2722 = vsel %vm1370, %v2719, %v2721
        %v2725 = vadd.f32 %v2714, %v2722
        %v2726 = vadd.f32 %v2715, %v2721
        %v2727 = vrot.slane %v2668, 5
        %v2728 = vrot.slane %v2670, 5
        %2729 = vrot.lane.b32.xlu0 %v2727, 27
        %v2730 = vpop.permute.xlu0 %2729
        %2731 = vrot.lane.b32.xlu0 %v2728, 27
        %v2732 = vpop.permute.xlu0 %2731
        %v2733 = vsel %vm1382, %v2730, %v2732
        %v2736 = vadd.f32 %v2725, %v2733
        %v2737 = vadd.f32 %v2726, %v2732
        %v2738 = vrot.slane %v2668, 6
        %v2739 = vrot.slane %v2670, 6
        %2740 = vrot.lane.b32.xlu0 %v2738, 26
        %v2741 = vpop.permute.xlu0 %2740
        %2742 = vrot.lane.b32.xlu0 %v2739, 26
        %v2743 = vpop.permute.xlu0 %2742
        %v2744 = vsel %vm1394, %v2741, %v2743
        %v2747 = vadd.f32 %v2736, %v2744
        %v2748 = vadd.f32 %v2737, %v2743
        %v2749 = vrot.slane %v2668, 7
        %v2750 = vrot.slane %v2670, 7
        %2751 = vrot.lane.b32.xlu0 %v2749, 25
        %v2752 = vpop.permute.xlu0 %2751
        %2753 = vrot.lane.b32.xlu0 %v2750, 25
        %v2754 = vpop.permute.xlu0 %2753
        %v2755 = vsel %vm1406, %v2752, %v2754
        %v2758 = vadd.f32 %v2747, %v2755
        %v2759 = vadd.f32 %v2748, %v2754
        %v2760 = vld [vmem:[%s1625 + $0x38] sm:$0xff]
        %v2762 = vsel %vm224, %v2760, 0
        %2764 = vmatprep.subr.mxu0 %v1610
        %2765 = vmatpush1.msra.mxu0 %v1609
        %2766 = vmatprep.subr.mxu0 %v1612
        %2767 = vmatpush1.msra.mxu0 %v1611
        %2768 = vmatprep.subr.mxu0 %v1614
        %2769 = vmatpush1.msra.mxu0 %v1613
        %2770 = vmatprep.subr.mxu0 %v1616
        %2771 = vmatpush1.msra.mxu0 %v1615
        %2772 = vmatprep.subr.mxu0 %v1618
        %2773 = vmatpush1.msra.mxu0 %v1617
        %2774 = vmatprep.subr.mxu0 %v1620
        %2775 = vmatpush1.msra.mxu0 %v1619
        %2776 = vmatprep.subr.mxu0 %v1622
        %2777 = vmatpush1.msra.mxu0 %v1621
        %2778 = vmatprep.subr.mxu0 %v1624
        %2779 = vmatpush1.msra.mxu0 %v1623
        %2780 = vmatprep.subr.mxu0 0.0
        %2781 = vmatpush1.msra.mxu0 0.0
        %2782 = vmatprep.subr.mxu0 0.0
        %2783 = vmatpush1.msra.mxu0 0.0
        %2784 = vmatprep.subr.mxu0 0.0
        %2785 = vmatpush1.msra.mxu0 0.0
        %2786 = vmatprep.subr.mxu0 0.0
        %2787 = vmatpush1.msra.mxu0 0.0
        %2788 = vmatprep.subr.mxu0 0.0
        %2789 = vmatpush1.msra.mxu0 0.0
        %2790 = vmatprep.subr.mxu0 0.0
        %2791 = vmatpush1.msra.mxu0 0.0
        %2792 = vmatprep.subr.mxu0 0.0
        %2793 = vmatpush1.msra.mxu0 0.0
        %2794 = vmatprep.subr.mxu0 0.0
        %2795 = vmatpush1.msra.mxu0 0.0
        %2796 = vmatprep.subr.mxu0 0.0
        %2797 = vmatpush1.msra.mxu0 0.0
        %2798 = vmatprep.subr.mxu0 0.0
        %2799 = vmatpush1.msra.mxu0 0.0
        %2800 = vmatprep.subr.mxu0 0.0
        %2801 = vmatpush1.msra.mxu0 0.0
        %2802 = vmatprep.subr.mxu0 0.0
        %2803 = vmatpush1.msra.mxu0 0.0
        %2804 = vmatprep.subr.mxu0 0.0
        %2805 = vmatpush1.msra.mxu0 0.0
        %2806 = vmatprep.subr.mxu0 0.0
        %2807 = vmatpush1.msra.mxu0 0.0
        %2808 = vmatprep.subr.mxu0 0.0
        %2809 = vmatpush1.msra.mxu0 0.0
        %2810 = vmatprep.subr.mxu0 0.0
        %2811 = vmatpush1.msra.mxu0 0.0
        %2812 = vmatprep.subr.mxu0 0.0
        %2813 = vmatpush1.msra.mxu0 0.0
        %2814 = vmatprep.subr.mxu0 0.0
        %2815 = vmatpush1.msra.mxu0 0.0
        %2816 = vmatprep.subr.mxu0 0.0
        %2817 = vmatpush1.msra.mxu0 0.0
        %2818 = vmatprep.subr.mxu0 0.0
        %2819 = vmatpush1.msra.mxu0 0.0
        %2820 = vmatprep.subr.mxu0 0.0
        %2821 = vmatpush1.msra.mxu0 0.0
        %2822 = vmatprep.subr.mxu0 0.0
        %2823 = vmatpush1.msra.mxu0 0.0
        %2824 = vmatprep.subr.mxu0 0.0
        %2825 = vmatpush1.msra.mxu0 0.0
        %2826 = vmatprep.subr.mxu0 0.0
        %2827 = vmatpush1.msra.mxu0 0.0
        %2828 = vmatprep.mubr.f32.mxu0 0.0
        %2829 = vmatmul.mubr.f32.gmra.mrb[0].mxu0 %v2762
        %v2830 = vpop.f32.mrb[0].mxu0
        %v2831 = vadd.f32 0.0, %v2830
        %v2832 = vpop.f32.mrb[0].mxu0
        %v2833 = vadd.f32 0.0, %v2832
        %2834 = vdwg.mxu0
        %2837 = vrot.lane.b32.xlu0 %v2831, 16
        %v2838 = vpop.permute.xlu0 %2837
        %2839 = vrot.lane.b32.xlu0 %v2833, 16
        %v2840 = vpop.permute.xlu0 %2839
        %v2841 = vsel %vm1493, %v2838, %v2840
        %v2844 = vadd.f32 %v2758, %v2841
        %v2845 = vadd.f32 %v2759, %v2840
        %v2846 = vrot.slane %v2831, 1
        %v2847 = vrot.slane %v2833, 1
        %2848 = vrot.lane.b32.xlu0 %v2846, 15
        %v2849 = vpop.permute.xlu0 %2848
        %2850 = vrot.lane.b32.xlu0 %v2847, 15
        %v2851 = vpop.permute.xlu0 %2850
        %v2852 = vsel %vm1505, %v2849, %v2851
        %v2855 = vadd.f32 %v2844, %v2852
        %v2856 = vadd.f32 %v2845, %v2851
        %v2857 = vrot.slane %v2831, 2
        %v2858 = vrot.slane %v2833, 2
        %2859 = vrot.lane.b32.xlu0 %v2857, 14
        %v2860 = vpop.permute.xlu0 %2859
        %2861 = vrot.lane.b32.xlu0 %v2858, 14
        %v2862 = vpop.permute.xlu0 %2861
        %v2863 = vsel %vm1517, %v2860, %v2862
        %v2866 = vadd.f32 %v2855, %v2863
        %v2867 = vadd.f32 %v2856, %v2862
        %v2868 = vrot.slane %v2831, 3
        %v2869 = vrot.slane %v2833, 3
        %2870 = vrot.lane.b32.xlu0 %v2868, 13
        %v2871 = vpop.permute.xlu0 %2870
        %2872 = vrot.lane.b32.xlu0 %v2869, 13
        %v2873 = vpop.permute.xlu0 %2872
        %v2874 = vsel %vm1529, %v2871, %v2873
        %v2877 = vadd.f32 %v2866, %v2874
        %v2878 = vadd.f32 %v2867, %v2873
        %v2879 = vrot.slane %v2831, 4
        %v2880 = vrot.slane %v2833, 4
        %2881 = vrot.lane.b32.xlu0 %v2879, 12
        %v2882 = vpop.permute.xlu0 %2881
        %2883 = vrot.lane.b32.xlu0 %v2880, 12
        %v2884 = vpop.permute.xlu0 %2883
        %v2885 = vsel %vm1541, %v2882, %v2884
        %v2888 = vadd.f32 %v2877, %v2885
        %v2889 = vadd.f32 %v2878, %v2884
        %v2890 = vrot.slane %v2831, 5
        %v2891 = vrot.slane %v2833, 5
        %2892 = vrot.lane.b32.xlu0 %v2890, 11
        %v2893 = vpop.permute.xlu0 %2892
        %2894 = vrot.lane.b32.xlu0 %v2891, 11
        %v2895 = vpop.permute.xlu0 %2894
        %v2896 = vsel %vm1553, %v2893, %v2895
        %v2899 = vadd.f32 %v2888, %v2896
        %v2900 = vadd.f32 %v2889, %v2895
        %v2901 = vrot.slane %v2831, 6
        %v2902 = vrot.slane %v2833, 6
        %2903 = vrot.lane.b32.xlu0 %v2901, 10
        %v2904 = vpop.permute.xlu0 %2903
        %2905 = vrot.lane.b32.xlu0 %v2902, 10
        %v2906 = vpop.permute.xlu0 %2905
        %v2907 = vsel %vm1565, %v2904, %v2906
        %v2910 = vadd.f32 %v2899, %v2907
        %v2911 = vadd.f32 %v2900, %v2906
        %v2912 = vrot.slane %v2831, 7
        %v2913 = vrot.slane %v2833, 7
        %2914 = vrot.lane.b32.xlu0 %v2912, 9
        %v2915 = vpop.permute.xlu0 %2914
        %2916 = vrot.lane.b32.xlu0 %v2913, 9
        %v2917 = vpop.permute.xlu0 %2916
        %v2918 = vsel %vm1577, %v2915, %v2917
        %v2921 = vadd.f32 %v2910, %v2918
        %v2922 = vadd.f32 %v2911, %v2917
        %v2923 = vmul.f32 %v2921, 0.1
        %v2924 = vmul.f32 %v2922, 0.1
        %v2927 = vcombine.low %v2923, %v2924
        %v2929 = vunpack.c.l.s4 1966171168
        %v2930 = vunpack.c.0.s8 %v2929
        %v2931 = vlaneseq
        %v2932 = vshrl.u32 %v2931, 7
        %v2933 = vsub.s32 %v2930, %v2932
        %v2934 = vrot.slane %v2927, %v2933
        %v2936 = vunpack.c.l.s4 1966171168
        %v2937 = vunpack.c.0.s8 %v2936
        %v2938 = vlaneseq
        %v2939 = vshrl.u32 %v2938, 7
        %v2940 = vsub.s32 %v2937, %v2939
        %v2941 = vrot.slane %v2934, %v2940
        %s2943 = scalar_lea.vmem %s203, 2 [#allocation7]
        %2944 = vst.msk [vmem:[%s2943] sm:$0x3] %vm1606, %v2941
        %s2945 = sand.u32 %s82, 1
        %s2946 = scalar_lea.sflag [#allocation4], %s2945
        %s2947 = sand.u32 %s82, 1
        %s2948 = smul.addr %s2947, 4
        %s2949 = scalar_lea.vmem [#allocation7], %s2948
        // Predicated region
        $region37: #{tpu_custom_call.1} parent=27 // pred_check
          %p2950 = pneg %p92
        $region38: #{tpu_custom_call.1} parent=27 // pred_check_branch
          %2952 = sbr.rel (%p2950) target = $region40
        $region39: #{tpu_custom_call.1} parent=27 // pred_region
          %s2953 = smul.u32 2, %s22
          %s2955 = ssub.s32 64, 64
          %2956 = vsyncadd %s2946, %s2955
          %s2957 = smul.addr %s2953, 2
          %s2958 = smul.addr %s2957, 16
          %s2959 = scalar_lea.hbm %s2, %s2958
          %s2960 = sshll.u32 %s2949, 4
          %s2961 = int_to_ptr.vmem [resolvable:$true] %s2960
          %2966 = dma.vmem_to_hbm [thread:$0]  %s2961, 64, %s2959, %s2946, 32, 32, 2
        $region40: #{tpu_custom_call.1} parent=27 // pred_fallthru
          _
      $region28: #{tpu_custom_call.1} parent=5 // pred_fallthru
        _
      %p2967 = scmp.le.s32.totalorder 2, %s17
      // Predicated region
      $region41: #{tpu_custom_call.1} parent=5 // pred_check
        %p2968 = pneg %p2967
      $region42: #{tpu_custom_call.1} parent=5 // pred_check_branch
        %2970 = sbr.rel (%p2968) target = $region44
      $region43: #{tpu_custom_call.1} parent=5 // pred_region
        %s2971 = ssub.s32 %s17, 2
        // Predicated region
        $region45: #{tpu_custom_call.1} parent=43 // pred_check
          %p2972 = pneg %p98
        $region46: #{tpu_custom_call.1} parent=43 // pred_check_branch
          %2974 = sbr.rel (%p2972) target = $region48
        $region47: #{tpu_custom_call.1} parent=43 // pred_region
          %s2975 = sand.u32 %s83, 1
          %s2976 = scalar_lea.sflag [#allocation4], %s2975
          %s2977 = sand.u32 %s83, 1
          %s2978 = smul.addr %s2977, 4
          %s2979 = scalar_lea.vmem [#allocation7], %s2978
          %2980 = dma.done %s2976, 64
        $region48: #{tpu_custom_call.1} parent=43 // pred_fallthru
          _
      $region44: #{tpu_custom_call.1} parent=5 // pred_fallthru
        _
    $region6: #{tpu_custom_call.1} parent=1 // loop_footer
      %s21 = sadd.s32 1, %s17
    $region7: #{tpu_custom_call.1} parent=1 // loop_footer_branch
      %16 = sbr.rel target = $region3
    $region8: #{tpu_custom_call.1} parent=1 // loop_exit
      _
    %2981 = vsyncpa [#allocation3], 1
    %s2982 = scalar_lea.sflag [#allocation3], 1
    %2983 = vsyncpa %s2982, 1
    %2984 = vsyncpa [#allocation6], 1
    %s2985 = scalar_lea.sflag [#allocation6], 1
    %2986 = vsyncpa %s2985, 1
    %2987 = vsyncpa [#allocation4], 1
    %s2988 = scalar_lea.sflag [#allocation4], 1
    %2989 = vsyncpa %s2988, 1

</llo_original>
